<compile_context>
chip_gen: v7x
topology: tpu7x:2x2x1
jax: 0.10.0
libtpu: 0.0.40
codegen_flags: <defaults>
</compile_context>

<pallas_src>
import functools
import math

import jax
import jax.numpy as jnp
from jax.experimental import pallas as pl
from jax.experimental.pallas import tpu as pltpu


# ----------------------------- fused Pallas kernel ---------------------------------

def _layernorm(x, g, b, eps):
    mu = jnp.mean(x, axis=-1, keepdims=True)
    var = jnp.mean((x - mu) ** 2, axis=-1, keepdims=True)
    return (x - mu) * jax.lax.rsqrt(var + eps) * g + b


def _fused_forward_kernel(
    h0_ref, bias_ref,                       # embedded input, additive attention bias
    emb_g_ref, emb_b_ref,                   # embedding LayerNorm
    wqkv_ref, bqkv_ref, wo_ref, bo_ref,     # per-layer attention weights (stacked on axis 0)
    sa_g_ref, sa_b_ref,
    w1_ref, b1_ref, w2_ref, b2_ref,         # per-layer FFN weights
    out_g_ref, out_b_ref,
    c1w_ref, c1b_ref, c2w_ref, c2b_ref, c3w_ref, c3b_ref,   # classifier head
    logits_ref,
    *, n_layers, n_heads, batch, seq, hidden, eps):

    dh = hidden // n_heads

    h = _layernorm(h0_ref[...], emb_g_ref[...], emb_b_ref[...], eps)     # (B*S, H)
    bias = bias_ref[...]                                                 # (B*S, B*S)

    for l in range(n_layers):
        # ---- fused QKV projection (1/sqrt(Dh) already folded into W_q / b_q) ----
        qkv = jnp.dot(h, wqkv_ref[l], preferred_element_type=jnp.float32) + bqkv_ref[l]
        q = qkv[:, 0 * hidden:1 * hidden]
        k = qkv[:, 1 * hidden:2 * hidden]
        v = qkv[:, 2 * hidden:3 * hidden]

        # ---- multi-head self-attention: all (batch, head) pairs, no grid ----
        ctx_heads = []
        for hd in range(n_heads):
            sl = slice(hd * dh, (hd + 1) * dh)
            q_h, k_h, v_h = q[:, sl], k[:, sl], v[:, sl]
            # scores: contract head dims -> (B*S, B*S); block-diag bias keeps batches apart
            s = jax.lax.dot_general(q_h, k_h, (((1,), (1,)), ((), ())),
                                    preferred_element_type=jnp.float32) + bias
            s = s - jnp.max(s, axis=-1, keepdims=True)
            p = jnp.exp(s)
            p = p * pl.reciprocal(jnp.sum(p, axis=-1, keepdims=True), approx=True)
            ctx_heads.append(jnp.dot(p, v_h, preferred_element_type=jnp.float32))
        ctx = jnp.concatenate(ctx_heads, axis=-1)                        # (B*S, H)

        attn_out = jnp.dot(ctx, wo_ref[l], preferred_element_type=jnp.float32) + bo_ref[l]
        h = _layernorm(h + attn_out, sa_g_ref[l], sa_b_ref[l], eps)      # fused residual+LN

        # ---- FFN ----
        f = jnp.dot(h, w1_ref[l], preferred_element_type=jnp.float32) + b1_ref[l]
        f = jax.nn.gelu(f, approximate=True)
        f = jnp.dot(f, w2_ref[l], preferred_element_type=jnp.float32) + b2_ref[l]
        h = _layernorm(h + f, out_g_ref[l], out_b_ref[l], eps)           # fused residual+LN

    # ---- CLS pooling: last_hidden_state[:, 0, :]  (row b*seq for each batch) ----
    pooled = jnp.concatenate([h[b * seq:b * seq + 1, :] for b in range(batch)], axis=0)

    # ---- classifier head (Dropout = identity at inference) ----
    x = jnp.dot(pooled, c1w_ref[...], preferred_element_type=jnp.float32) + c1b_ref[...]
    x = jnp.maximum(x, 0.0)
    x = jnp.dot(x, c2w_ref[...], preferred_element_type=jnp.float32) + c2b_ref[...]
    x = jnp.maximum(x, 0.0)
    logits = jnp.dot(x, c3w_ref[...], preferred_element_type=jnp.float32) + c3b_ref[...]
    logits_ref[...] = logits.astype(logits_ref.dtype)


# ----------------------------- wrapper ---------------------------------

_VMEM = pl.BlockSpec(memory_space=pltpu.MemorySpace.VMEM)


def sentiment_forward(params, input_ids, attention_mask, *, n_heads, n_layers, eps=1e-12):
    B, S = input_ids.shape
    H = params["word_emb"].shape[1]          # static (from array shape)
    out_dim = params["c3w"].shape[1]

    # --- embedding gather + positional add (JAX glue; gather has no clean tiled equivalent here)
    word = jnp.take(params["word_emb"], input_ids, axis=0)               # (B, S, H)
    pos = params["pos_emb"][:S][None, :, :]                              # (1, S, H)
    h0 = (word + pos).reshape(B * S, H).astype(jnp.float32)

    # --- additive attention bias: block-diagonal per batch + key-padding, (B*S, B*S)
    batch_ids = jnp.repeat(jnp.arange(B, dtype=jnp.int32), S)
    same_batch = batch_ids[:, None] == batch_ids[None, :]
    key_keep = attention_mask.reshape(-1).astype(bool)
    bias = jnp.where(same_batch & key_keep[None, :], 0.0, -1e9).astype(jnp.float32)

    kernel = functools.partial(
        _fused_forward_kernel,
        n_layers=n_layers, n_heads=n_heads,
        batch=B, seq=S, hidden=H, eps=eps)

    args = (h0, bias,
            params["emb_ln_g"], params["emb_ln_b"],
            params["wqkv"], params["bqkv"], params["wo"], params["bo"],
            params["sa_ln_g"], params["sa_ln_b"],
            params["w1"], params["b1"], params["w2"], params["b2"],
            params["out_ln_g"], params["out_ln_b"],
            params["c1w"], params["c1b"], params["c2w"], params["c2b"],
            params["c3w"], params["c3b"])

    return pl.pallas_call(
        kernel,
        out_shape=jax.ShapeDtypeStruct((B, out_dim), jnp.float32),
        in_specs=[_VMEM] * len(args),
        out_specs=_VMEM,
    )(*args)


# ----------------------------- params ---------------------------------

def init_params(key, *, vocab=100, max_pos=64, hidden=32, n_layers=2,
                n_heads=4, ffn=64, output_dim=3):
    ks = iter(jax.random.split(key, 64))

    def w(shape):
        return jax.random.normal(next(ks), shape, jnp.float32) * 0.02

    dh = hidden // n_heads
    scale = 1.0 / math.sqrt(dh)

    # fold softmax 1/sqrt(Dh) into the Q projection
    wq = w((n_layers, hidden, hidden)) * scale
    wk = w((n_layers, hidden, hidden))
    wv = w((n_layers, hidden, hidden))
    bq = jnp.zeros((n_layers, 1, hidden), jnp.float32)   # zero bias; scale-fold is a no-op on it
    bk = jnp.zeros((n_layers, 1, hidden), jnp.float32)
    bv = jnp.zeros((n_layers, 1, hidden), jnp.float32)

    params = {
        "word_emb": w((vocab, hidden)),
        "pos_emb": w((max_pos, hidden)),
        "emb_ln_g": jnp.ones((1, hidden), jnp.float32),
        "emb_ln_b": jnp.zeros((1, hidden), jnp.float32),
        # per-layer weights stacked on a leading layer axis
        "wqkv": jnp.concatenate([wq, wk, wv], axis=-1),            # (L, H, 3H)
        "bqkv": jnp.concatenate([bq, bk, bv], axis=-1),            # (L, 1, 3H)
        "wo": w((n_layers, hidden, hidden)),
        "bo": jnp.zeros((n_layers, 1, hidden), jnp.float32),
        "sa_ln_g": jnp.ones((n_layers, 1, hidden), jnp.float32),
        "sa_ln_b": jnp.zeros((n_layers, 1, hidden), jnp.float32),
        "w1": w((n_layers, hidden, ffn)),
        "b1": jnp.zeros((n_layers, 1, ffn), jnp.float32),
        "w2": w((n_layers, ffn, hidden)),
        "b2": jnp.zeros((n_layers, 1, hidden), jnp.float32),
        "out_ln_g": jnp.ones((n_layers, 1, hidden), jnp.float32),
        "out_ln_b": jnp.zeros((n_layers, 1, hidden), jnp.float32),
        # classifier: Linear(H, H//2) ReLU Dropout Linear(H//2, H//4) ReLU Dropout Linear(H//4, out)
        "c1w": w((hidden, hidden // 2)),
        "c1b": jnp.zeros((1, hidden // 2), jnp.float32),
        "c2w": w((hidden // 2, hidden // 4)),
        "c2b": jnp.zeros((1, hidden // 4), jnp.float32),
        "c3w": w((hidden // 4, output_dim)),
        "c3b": jnp.zeros((1, output_dim), jnp.float32),
    }
    return params


# ----------------------------- main ---------------------------------

if __name__ == "__main__":
    B, S = 2, 8
    VOCAB, HIDDEN, N_HEADS, N_LAYERS, FFN, OUT = 100, 32, 4, 2, 64, 3

    key = jax.random.PRNGKey(0)
    kp, ki = jax.random.split(key)
    params = init_params(kp, vocab=VOCAB, hidden=HIDDEN, n_layers=N_LAYERS,
                         n_heads=N_HEADS, ffn=FFN, output_dim=OUT)

    input_ids = jax.random.randint(ki, (B, S), 0, VOCAB, dtype=jnp.int32)
    attention_mask = jnp.ones((B, S), dtype=jnp.int32).at[1, 6:].set(0)   # pad tail of 2nd example

    fwd = jax.jit(functools.partial(sentiment_forward, n_heads=N_HEADS, n_layers=N_LAYERS))
    logits = fwd(params, input_ids, attention_mask)
    jax.block_until_ready(logits)
    assert logits.shape == (B, OUT)
    print("KERNEL_OK")
</pallas_src>

<mosaic_0001>
module attributes {stable_mosaic.version = 11 : i64} {
  func.func @_fused_forward_kernel(%arg0: memref<16x32xf32, #tpu.memory_space<vmem>>, %arg1: memref<16x16xf32, #tpu.memory_space<vmem>>, %arg2: memref<1x32xf32, #tpu.memory_space<vmem>>, %arg3: memref<1x32xf32, #tpu.memory_space<vmem>>, %arg4: memref<2x32x96xf32, #tpu.memory_space<vmem>>, %arg5: memref<2x1x96xf32, #tpu.memory_space<vmem>>, %arg6: memref<2x32x32xf32, #tpu.memory_space<vmem>>, %arg7: memref<2x1x32xf32, #tpu.memory_space<vmem>>, %arg8: memref<2x1x32xf32, #tpu.memory_space<vmem>>, %arg9: memref<2x1x32xf32, #tpu.memory_space<vmem>>, %arg10: memref<2x32x64xf32, #tpu.memory_space<vmem>>, %arg11: memref<2x1x64xf32, #tpu.memory_space<vmem>>, %arg12: memref<2x64x32xf32, #tpu.memory_space<vmem>>, %arg13: memref<2x1x32xf32, #tpu.memory_space<vmem>>, %arg14: memref<2x1x32xf32, #tpu.memory_space<vmem>>, %arg15: memref<2x1x32xf32, #tpu.memory_space<vmem>>, %arg16: memref<32x16xf32, #tpu.memory_space<vmem>>, %arg17: memref<1x16xf32, #tpu.memory_space<vmem>>, %arg18: memref<16x8xf32, #tpu.memory_space<vmem>>, %arg19: memref<1x8xf32, #tpu.memory_space<vmem>>, %arg20: memref<8x3xf32, #tpu.memory_space<vmem>>, %arg21: memref<1x3xf32, #tpu.memory_space<vmem>>, %arg22: memref<2x3xf32, #tpu.memory_space<vmem>>) attributes {dimension_semantics = [], scalar_prefetch = 0 : i64, scratch_operands = 0 : i64, tpu.core_type = #tpu.core_type<tc>} {
    %c0 = arith.constant 0 : index
    %c0_0 = arith.constant 0 : index
    %0 = vector.load %arg0[%c0, %c0_0] : memref<16x32xf32, #tpu.memory_space<vmem>>, vector<16x32xf32>
    %c0_1 = arith.constant 0 : index
    %c0_2 = arith.constant 0 : index
    %1 = vector.load %arg2[%c0_1, %c0_2] : memref<1x32xf32, #tpu.memory_space<vmem>>, vector<1x32xf32>
    %c0_3 = arith.constant 0 : index
    %c0_4 = arith.constant 0 : index
    %2 = vector.load %arg3[%c0_3, %c0_4] : memref<1x32xf32, #tpu.memory_space<vmem>>, vector<1x32xf32>
    %cst = arith.constant dense<0.000000e+00> : vector<16xf32>
    %3 = vector.multi_reduction <add>, %0, %cst [1] : vector<16x32xf32> to vector<16xf32>
    %4 = vector.shape_cast %3 : vector<16xf32> to vector<16x1xf32>
    %cst_5 = arith.constant 3.200000e+01 : f32
    %5 = vector.broadcast %cst_5 : f32 to vector<16x1xf32>
    %6 = arith.divf %4, %5 : vector<16x1xf32>
    %7 = vector.broadcast %6 : vector<16x1xf32> to vector<16x32xf32>
    %8 = arith.subf %0, %7 : vector<16x32xf32>
    %9 = arith.mulf %8, %8 : vector<16x32xf32>
    %cst_6 = arith.constant dense<0.000000e+00> : vector<16xf32>
    %10 = vector.multi_reduction <add>, %9, %cst_6 [1] : vector<16x32xf32> to vector<16xf32>
    %11 = vector.shape_cast %10 : vector<16xf32> to vector<16x1xf32>
    %cst_7 = arith.constant 3.200000e+01 : f32
    %12 = vector.broadcast %cst_7 : f32 to vector<16x1xf32>
    %13 = arith.divf %11, %12 : vector<16x1xf32>
    %14 = vector.broadcast %6 : vector<16x1xf32> to vector<16x32xf32>
    %15 = arith.subf %0, %14 : vector<16x32xf32>
    %cst_8 = arith.constant 9.99999996E-13 : f32
    %16 = vector.broadcast %cst_8 : f32 to vector<16x1xf32>
    %17 = arith.addf %13, %16 : vector<16x1xf32>
    %18 = math.rsqrt %17 : vector<16x1xf32>
    %19 = vector.broadcast %18 : vector<16x1xf32> to vector<16x32xf32>
    %20 = arith.mulf %15, %19 : vector<16x32xf32>
    %21 = vector.broadcast %1 : vector<1x32xf32> to vector<16x32xf32>
    %22 = arith.mulf %20, %21 : vector<16x32xf32>
    %23 = vector.broadcast %2 : vector<1x32xf32> to vector<16x32xf32>
    %24 = arith.addf %22, %23 : vector<16x32xf32>
    %c0_9 = arith.constant 0 : index
    %c0_10 = arith.constant 0 : index
    %25 = vector.load %arg1[%c0_9, %c0_10] : memref<16x16xf32, #tpu.memory_space<vmem>>, vector<16x16xf32>
    %c0_11 = arith.constant 0 : index
    %c0_12 = arith.constant 0 : index
    %c0_13 = arith.constant 0 : index
    %26 = vector.load %arg4[%c0_11, %c0_12, %c0_13] : memref<2x32x96xf32, #tpu.memory_space<vmem>>, vector<1x32x96xf32>
    %27 = vector.shape_cast %26 : vector<1x32x96xf32> to vector<32x96xf32>
    %cst_14 = arith.constant dense<0.000000e+00> : vector<16x96xf32>
    %28 = tpu.matmul %24, %27, %cst_14 {dimension_numbers = #tpu.dot_dimension_numbers<[1], [0], [0], [1], [0, 0, 1, 1], [], []>} : vector<16x32xf32>, vector<32x96xf32>, vector<16x96xf32> -> vector<16x96xf32>
    %c0_15 = arith.constant 0 : index
    %c0_16 = arith.constant 0 : index
    %c0_17 = arith.constant 0 : index
    %29 = vector.load %arg5[%c0_15, %c0_16, %c0_17] : memref<2x1x96xf32, #tpu.memory_space<vmem>>, vector<1x1x96xf32>
    %30 = vector.shape_cast %29 : vector<1x1x96xf32> to vector<1x96xf32>
    %31 = vector.broadcast %30 : vector<1x96xf32> to vector<16x96xf32>
    %32 = arith.addf %28, %31 : vector<16x96xf32>
    %33 = vector.extract_strided_slice %32 {offsets = [0, 0], sizes = [16, 32], strides = [1, 1]} : vector<16x96xf32> to vector<16x32xf32>
    %34 = vector.extract_strided_slice %32 {offsets = [0, 32], sizes = [16, 32], strides = [1, 1]} : vector<16x96xf32> to vector<16x32xf32>
    %35 = vector.extract_strided_slice %32 {offsets = [0, 64], sizes = [16, 32], strides = [1, 1]} : vector<16x96xf32> to vector<16x32xf32>
    %36 = vector.extract_strided_slice %33 {offsets = [0, 0], sizes = [16, 8], strides = [1, 1]} : vector<16x32xf32> to vector<16x8xf32>
    %37 = vector.extract_strided_slice %34 {offsets = [0, 0], sizes = [16, 8], strides = [1, 1]} : vector<16x32xf32> to vector<16x8xf32>
    %38 = vector.extract_strided_slice %35 {offsets = [0, 0], sizes = [16, 8], strides = [1, 1]} : vector<16x32xf32> to vector<16x8xf32>
    %cst_18 = arith.constant dense<0.000000e+00> : vector<16x16xf32>
    %39 = tpu.matmul %36, %37, %cst_18 {dimension_numbers = #tpu.dot_dimension_numbers<[1], [1], [0], [0], [0, 0, 1, 0], [], []>} : vector<16x8xf32>, vector<16x8xf32>, vector<16x16xf32> -> vector<16x16xf32>
    %40 = arith.addf %39, %25 : vector<16x16xf32>
    %cst_19 = arith.constant dense<0xFF800000> : vector<16xf32>
    %41 = vector.multi_reduction <maximumf>, %40, %cst_19 [1] : vector<16x16xf32> to vector<16xf32>
    %42 = vector.shape_cast %41 : vector<16xf32> to vector<16x1xf32>
    %43 = vector.broadcast %42 : vector<16x1xf32> to vector<16x16xf32>
    %44 = arith.subf %40, %43 : vector<16x16xf32>
    %45 = math.exp %44 : vector<16x16xf32>
    %cst_20 = arith.constant dense<0.000000e+00> : vector<16xf32>
    %46 = vector.multi_reduction <add>, %45, %cst_20 [1] : vector<16x16xf32> to vector<16xf32>
    %47 = vector.shape_cast %46 : vector<16xf32> to vector<16x1xf32>
    %48 = tpu.reciprocal %47 {approx = true} : vector<16x1xf32> -> vector<16x1xf32>
    %49 = vector.broadcast %48 : vector<16x1xf32> to vector<16x16xf32>
    %50 = arith.mulf %45, %49 : vector<16x16xf32>
    %cst_21 = arith.constant dense<0.000000e+00> : vector<16x8xf32>
    %51 = tpu.matmul %50, %38, %cst_21 {dimension_numbers = #tpu.dot_dimension_numbers<[1], [0], [0], [1], [0, 0, 1, 1], [], []>} : vector<16x16xf32>, vector<16x8xf32>, vector<16x8xf32> -> vector<16x8xf32>
    %52 = vector.extract_strided_slice %33 {offsets = [0, 8], sizes = [16, 8], strides = [1, 1]} : vector<16x32xf32> to vector<16x8xf32>
    %53 = vector.extract_strided_slice %34 {offsets = [0, 8], sizes = [16, 8], strides = [1, 1]} : vector<16x32xf32> to vector<16x8xf32>
    %54 = vector.extract_strided_slice %35 {offsets = [0, 8], sizes = [16, 8], strides = [1, 1]} : vector<16x32xf32> to vector<16x8xf32>
    %cst_22 = arith.constant dense<0.000000e+00> : vector<16x16xf32>
    %55 = tpu.matmul %52, %53, %cst_22 {dimension_numbers = #tpu.dot_dimension_numbers<[1], [1], [0], [0], [0, 0, 1, 0], [], []>} : vector<16x8xf32>, vector<16x8xf32>, vector<16x16xf32> -> vector<16x16xf32>
    %56 = arith.addf %55, %25 : vector<16x16xf32>
    %cst_23 = arith.constant dense<0xFF800000> : vector<16xf32>
    %57 = vector.multi_reduction <maximumf>, %56, %cst_23 [1] : vector<16x16xf32> to vector<16xf32>
    %58 = vector.shape_cast %57 : vector<16xf32> to vector<16x1xf32>
    %59 = vector.broadcast %58 : vector<16x1xf32> to vector<16x16xf32>
    %60 = arith.subf %56, %59 : vector<16x16xf32>
    %61 = math.exp %60 : vector<16x16xf32>
    %cst_24 = arith.constant dense<0.000000e+00> : vector<16xf32>
    %62 = vector.multi_reduction <add>, %61, %cst_24 [1] : vector<16x16xf32> to vector<16xf32>
    %63 = vector.shape_cast %62 : vector<16xf32> to vector<16x1xf32>
    %64 = tpu.reciprocal %63 {approx = true} : vector<16x1xf32> -> vector<16x1xf32>
    %65 = vector.broadcast %64 : vector<16x1xf32> to vector<16x16xf32>
    %66 = arith.mulf %61, %65 : vector<16x16xf32>
    %cst_25 = arith.constant dense<0.000000e+00> : vector<16x8xf32>
    %67 = tpu.matmul %66, %54, %cst_25 {dimension_numbers = #tpu.dot_dimension_numbers<[1], [0], [0], [1], [0, 0, 1, 1], [], []>} : vector<16x16xf32>, vector<16x8xf32>, vector<16x8xf32> -> vector<16x8xf32>
    %68 = vector.extract_strided_slice %33 {offsets = [0, 16], sizes = [16, 8], strides = [1, 1]} : vector<16x32xf32> to vector<16x8xf32>
    %69 = vector.extract_strided_slice %34 {offsets = [0, 16], sizes = [16, 8], strides = [1, 1]} : vector<16x32xf32> to vector<16x8xf32>
    %70 = vector.extract_strided_slice %35 {offsets = [0, 16], sizes = [16, 8], strides = [1, 1]} : vector<16x32xf32> to vector<16x8xf32>
    %cst_26 = arith.constant dense<0.000000e+00> : vector<16x16xf32>
    %71 = tpu.matmul %68, %69, %cst_26 {dimension_numbers = #tpu.dot_dimension_numbers<[1], [1], [0], [0], [0, 0, 1, 0], [], []>} : vector<16x8xf32>, vector<16x8xf32>, vector<16x16xf32> -> vector<16x16xf32>
    %72 = arith.addf %71, %25 : vector<16x16xf32>
    %cst_27 = arith.constant dense<0xFF800000> : vector<16xf32>
    %73 = vector.multi_reduction <maximumf>, %72, %cst_27 [1] : vector<16x16xf32> to vector<16xf32>
    %74 = vector.shape_cast %73 : vector<16xf32> to vector<16x1xf32>
    %75 = vector.broadcast %74 : vector<16x1xf32> to vector<16x16xf32>
    %76 = arith.subf %72, %75 : vector<16x16xf32>
    %77 = math.exp %76 : vector<16x16xf32>
    %cst_28 = arith.constant dense<0.000000e+00> : vector<16xf32>
    %78 = vector.multi_reduction <add>, %77, %cst_28 [1] : vector<16x16xf32> to vector<16xf32>
    %79 = vector.shape_cast %78 : vector<16xf32> to vector<16x1xf32>
    %80 = tpu.reciprocal %79 {approx = true} : vector<16x1xf32> -> vector<16x1xf32>
    %81 = vector.broadcast %80 : vector<16x1xf32> to vector<16x16xf32>
    %82 = arith.mulf %77, %81 : vector<16x16xf32>
    %cst_29 = arith.constant dense<0.000000e+00> : vector<16x8xf32>
    %83 = tpu.matmul %82, %70, %cst_29 {dimension_numbers = #tpu.dot_dimension_numbers<[1], [0], [0], [1], [0, 0, 1, 1], [], []>} : vector<16x16xf32>, vector<16x8xf32>, vector<16x8xf32> -> vector<16x8xf32>
    %84 = vector.extract_strided_slice %33 {offsets = [0, 24], sizes = [16, 8], strides = [1, 1]} : vector<16x32xf32> to vector<16x8xf32>
    %85 = vector.extract_strided_slice %34 {offsets = [0, 24], sizes = [16, 8], strides = [1, 1]} : vector<16x32xf32> to vector<16x8xf32>
    %86 = vector.extract_strided_slice %35 {offsets = [0, 24], sizes = [16, 8], strides = [1, 1]} : vector<16x32xf32> to vector<16x8xf32>
    %cst_30 = arith.constant dense<0.000000e+00> : vector<16x16xf32>
    %87 = tpu.matmul %84, %85, %cst_30 {dimension_numbers = #tpu.dot_dimension_numbers<[1], [1], [0], [0], [0, 0, 1, 0], [], []>} : vector<16x8xf32>, vector<16x8xf32>, vector<16x16xf32> -> vector<16x16xf32>
    %88 = arith.addf %87, %25 : vector<16x16xf32>
    %cst_31 = arith.constant dense<0xFF800000> : vector<16xf32>
    %89 = vector.multi_reduction <maximumf>, %88, %cst_31 [1] : vector<16x16xf32> to vector<16xf32>
    %90 = vector.shape_cast %89 : vector<16xf32> to vector<16x1xf32>
    %91 = vector.broadcast %90 : vector<16x1xf32> to vector<16x16xf32>
    %92 = arith.subf %88, %91 : vector<16x16xf32>
    %93 = math.exp %92 : vector<16x16xf32>
    %cst_32 = arith.constant dense<0.000000e+00> : vector<16xf32>
    %94 = vector.multi_reduction <add>, %93, %cst_32 [1] : vector<16x16xf32> to vector<16xf32>
    %95 = vector.shape_cast %94 : vector<16xf32> to vector<16x1xf32>
    %96 = tpu.reciprocal %95 {approx = true} : vector<16x1xf32> -> vector<16x1xf32>
    %97 = vector.broadcast %96 : vector<16x1xf32> to vector<16x16xf32>
    %98 = arith.mulf %93, %97 : vector<16x16xf32>
    %cst_33 = arith.constant dense<0.000000e+00> : vector<16x8xf32>
    %99 = tpu.matmul %98, %86, %cst_33 {dimension_numbers = #tpu.dot_dimension_numbers<[1], [0], [0], [1], [0, 0, 1, 1], [], []>} : vector<16x16xf32>, vector<16x8xf32>, vector<16x8xf32> -> vector<16x8xf32>
    %100 = tpu.concatenate %51, %67, %83, %99 in 1 : vector<16x8xf32>, vector<16x8xf32>, vector<16x8xf32>, vector<16x8xf32> -> vector<16x32xf32>
    %c0_34 = arith.constant 0 : index
    %c0_35 = arith.constant 0 : index
    %c0_36 = arith.constant 0 : index
    %101 = vector.load %arg6[%c0_34, %c0_35, %c0_36] : memref<2x32x32xf32, #tpu.memory_space<vmem>>, vector<1x32x32xf32>
    %102 = vector.shape_cast %101 : vector<1x32x32xf32> to vector<32x32xf32>
    %cst_37 = arith.constant dense<0.000000e+00> : vector<16x32xf32>
    %103 = tpu.matmul %100, %102, %cst_37 {dimension_numbers = #tpu.dot_dimension_numbers<[1], [0], [0], [1], [0, 0, 1, 1], [], []>} : vector<16x32xf32>, vector<32x32xf32>, vector<16x32xf32> -> vector<16x32xf32>
    %c0_38 = arith.constant 0 : index
    %c0_39 = arith.constant 0 : index
    %c0_40 = arith.constant 0 : index
    %104 = vector.load %arg7[%c0_38, %c0_39, %c0_40] : memref<2x1x32xf32, #tpu.memory_space<vmem>>, vector<1x1x32xf32>
    %105 = vector.shape_cast %104 : vector<1x1x32xf32> to vector<1x32xf32>
    %106 = vector.broadcast %105 : vector<1x32xf32> to vector<16x32xf32>
    %107 = arith.addf %103, %106 : vector<16x32xf32>
    %108 = arith.addf %24, %107 : vector<16x32xf32>
    %c0_41 = arith.constant 0 : index
    %c0_42 = arith.constant 0 : index
    %c0_43 = arith.constant 0 : index
    %109 = vector.load %arg8[%c0_41, %c0_42, %c0_43] : memref<2x1x32xf32, #tpu.memory_space<vmem>>, vector<1x1x32xf32>
    %110 = vector.shape_cast %109 : vector<1x1x32xf32> to vector<1x32xf32>
    %c0_44 = arith.constant 0 : index
    %c0_45 = arith.constant 0 : index
    %c0_46 = arith.constant 0 : index
    %111 = vector.load %arg9[%c0_44, %c0_45, %c0_46] : memref<2x1x32xf32, #tpu.memory_space<vmem>>, vector<1x1x32xf32>
    %112 = vector.shape_cast %111 : vector<1x1x32xf32> to vector<1x32xf32>
    %cst_47 = arith.constant dense<0.000000e+00> : vector<16xf32>
    %113 = vector.multi_reduction <add>, %108, %cst_47 [1] : vector<16x32xf32> to vector<16xf32>
    %114 = vector.shape_cast %113 : vector<16xf32> to vector<16x1xf32>
    %cst_48 = arith.constant 3.200000e+01 : f32
    %115 = vector.broadcast %cst_48 : f32 to vector<16x1xf32>
    %116 = arith.divf %114, %115 : vector<16x1xf32>
    %117 = vector.broadcast %116 : vector<16x1xf32> to vector<16x32xf32>
    %118 = arith.subf %108, %117 : vector<16x32xf32>
    %119 = arith.mulf %118, %118 : vector<16x32xf32>
    %cst_49 = arith.constant dense<0.000000e+00> : vector<16xf32>
    %120 = vector.multi_reduction <add>, %119, %cst_49 [1] : vector<16x32xf32> to vector<16xf32>
    %121 = vector.shape_cast %120 : vector<16xf32> to vector<16x1xf32>
    %cst_50 = arith.constant 3.200000e+01 : f32
    %122 = vector.broadcast %cst_50 : f32 to vector<16x1xf32>
    %123 = arith.divf %121, %122 : vector<16x1xf32>
    %124 = vector.broadcast %116 : vector<16x1xf32> to vector<16x32xf32>
    %125 = arith.subf %108, %124 : vector<16x32xf32>
    %cst_51 = arith.constant 9.99999996E-13 : f32
    %126 = vector.broadcast %cst_51 : f32 to vector<16x1xf32>
    %127 = arith.addf %123, %126 : vector<16x1xf32>
    %128 = math.rsqrt %127 : vector<16x1xf32>
    %129 = vector.broadcast %128 : vector<16x1xf32> to vector<16x32xf32>
    %130 = arith.mulf %125, %129 : vector<16x32xf32>
    %131 = vector.broadcast %110 : vector<1x32xf32> to vector<16x32xf32>
    %132 = arith.mulf %130, %131 : vector<16x32xf32>
    %133 = vector.broadcast %112 : vector<1x32xf32> to vector<16x32xf32>
    %134 = arith.addf %132, %133 : vector<16x32xf32>
    %c0_52 = arith.constant 0 : index
    %c0_53 = arith.constant 0 : index
    %c0_54 = arith.constant 0 : index
    %135 = vector.load %arg10[%c0_52, %c0_53, %c0_54] : memref<2x32x64xf32, #tpu.memory_space<vmem>>, vector<1x32x64xf32>
    %136 = vector.shape_cast %135 : vector<1x32x64xf32> to vector<32x64xf32>
    %cst_55 = arith.constant dense<0.000000e+00> : vector<16x64xf32>
    %137 = tpu.matmul %134, %136, %cst_55 {dimension_numbers = #tpu.dot_dimension_numbers<[1], [0], [0], [1], [0, 0, 1, 1], [], []>} : vector<16x32xf32>, vector<32x64xf32>, vector<16x64xf32> -> vector<16x64xf32>
    %c0_56 = arith.constant 0 : index
    %c0_57 = arith.constant 0 : index
    %c0_58 = arith.constant 0 : index
    %138 = vector.load %arg11[%c0_56, %c0_57, %c0_58] : memref<2x1x64xf32, #tpu.memory_space<vmem>>, vector<1x1x64xf32>
    %139 = vector.shape_cast %138 : vector<1x1x64xf32> to vector<1x64xf32>
    %140 = vector.broadcast %139 : vector<1x64xf32> to vector<16x64xf32>
    %141 = arith.addf %137, %140 : vector<16x64xf32>
    %142 = arith.mulf %141, %141 : vector<16x64xf32>
    %143 = arith.mulf %141, %142 : vector<16x64xf32>
    %cst_59 = arith.constant 4.471500e-02 : f32
    %144 = vector.broadcast %cst_59 : f32 to vector<16x64xf32>
    %145 = arith.mulf %144, %143 : vector<16x64xf32>
    %146 = arith.addf %141, %145 : vector<16x64xf32>
    %cst_60 = arith.constant 0.797884583 : f32
    %147 = vector.broadcast %cst_60 : f32 to vector<16x64xf32>
    %148 = arith.mulf %147, %146 : vector<16x64xf32>
    %149 = math.tanh %148 : vector<16x64xf32>
    %cst_61 = arith.constant 1.000000e+00 : f32
    %150 = vector.broadcast %cst_61 : f32 to vector<16x64xf32>
    %151 = arith.addf %150, %149 : vector<16x64xf32>
    %cst_62 = arith.constant 5.000000e-01 : f32
    %152 = vector.broadcast %cst_62 : f32 to vector<16x64xf32>
    %153 = arith.mulf %152, %151 : vector<16x64xf32>
    %154 = arith.mulf %141, %153 : vector<16x64xf32>
    %c0_63 = arith.constant 0 : index
    %c0_64 = arith.constant 0 : index
    %c0_65 = arith.constant 0 : index
    %155 = vector.load %arg12[%c0_63, %c0_64, %c0_65] : memref<2x64x32xf32, #tpu.memory_space<vmem>>, vector<1x64x32xf32>
    %156 = vector.shape_cast %155 : vector<1x64x32xf32> to vector<64x32xf32>
    %cst_66 = arith.constant dense<0.000000e+00> : vector<16x32xf32>
    %157 = tpu.matmul %154, %156, %cst_66 {dimension_numbers = #tpu.dot_dimension_numbers<[1], [0], [0], [1], [0, 0, 1, 1], [], []>} : vector<16x64xf32>, vector<64x32xf32>, vector<16x32xf32> -> vector<16x32xf32>
    %c0_67 = arith.constant 0 : index
    %c0_68 = arith.constant 0 : index
    %c0_69 = arith.constant 0 : index
    %158 = vector.load %arg13[%c0_67, %c0_68, %c0_69] : memref<2x1x32xf32, #tpu.memory_space<vmem>>, vector<1x1x32xf32>
    %159 = vector.shape_cast %158 : vector<1x1x32xf32> to vector<1x32xf32>
    %160 = vector.broadcast %159 : vector<1x32xf32> to vector<16x32xf32>
    %161 = arith.addf %157, %160 : vector<16x32xf32>
    %162 = arith.addf %134, %161 : vector<16x32xf32>
    %c0_70 = arith.constant 0 : index
    %c0_71 = arith.constant 0 : index
    %c0_72 = arith.constant 0 : index
    %163 = vector.load %arg14[%c0_70, %c0_71, %c0_72] : memref<2x1x32xf32, #tpu.memory_space<vmem>>, vector<1x1x32xf32>
    %164 = vector.shape_cast %163 : vector<1x1x32xf32> to vector<1x32xf32>
    %c0_73 = arith.constant 0 : index
    %c0_74 = arith.constant 0 : index
    %c0_75 = arith.constant 0 : index
    %165 = vector.load %arg15[%c0_73, %c0_74, %c0_75] : memref<2x1x32xf32, #tpu.memory_space<vmem>>, vector<1x1x32xf32>
    %166 = vector.shape_cast %165 : vector<1x1x32xf32> to vector<1x32xf32>
    %cst_76 = arith.constant dense<0.000000e+00> : vector<16xf32>
    %167 = vector.multi_reduction <add>, %162, %cst_76 [1] : vector<16x32xf32> to vector<16xf32>
    %168 = vector.shape_cast %167 : vector<16xf32> to vector<16x1xf32>
    %cst_77 = arith.constant 3.200000e+01 : f32
    %169 = vector.broadcast %cst_77 : f32 to vector<16x1xf32>
    %170 = arith.divf %168, %169 : vector<16x1xf32>
    %171 = vector.broadcast %170 : vector<16x1xf32> to vector<16x32xf32>
    %172 = arith.subf %162, %171 : vector<16x32xf32>
    %173 = arith.mulf %172, %172 : vector<16x32xf32>
    %cst_78 = arith.constant dense<0.000000e+00> : vector<16xf32>
    %174 = vector.multi_reduction <add>, %173, %cst_78 [1] : vector<16x32xf32> to vector<16xf32>
    %175 = vector.shape_cast %174 : vector<16xf32> to vector<16x1xf32>
    %cst_79 = arith.constant 3.200000e+01 : f32
    %176 = vector.broadcast %cst_79 : f32 to vector<16x1xf32>
    %177 = arith.divf %175, %176 : vector<16x1xf32>
    %178 = vector.broadcast %170 : vector<16x1xf32> to vector<16x32xf32>
    %179 = arith.subf %162, %178 : vector<16x32xf32>
    %cst_80 = arith.constant 9.99999996E-13 : f32
    %180 = vector.broadcast %cst_80 : f32 to vector<16x1xf32>
    %181 = arith.addf %177, %180 : vector<16x1xf32>
    %182 = math.rsqrt %181 : vector<16x1xf32>
    %183 = vector.broadcast %182 : vector<16x1xf32> to vector<16x32xf32>
    %184 = arith.mulf %179, %183 : vector<16x32xf32>
    %185 = vector.broadcast %164 : vector<1x32xf32> to vector<16x32xf32>
    %186 = arith.mulf %184, %185 : vector<16x32xf32>
    %187 = vector.broadcast %166 : vector<1x32xf32> to vector<16x32xf32>
    %188 = arith.addf %186, %187 : vector<16x32xf32>
    %c1 = arith.constant 1 : index
    %c0_81 = arith.constant 0 : index
    %c0_82 = arith.constant 0 : index
    %189 = vector.load %arg4[%c1, %c0_81, %c0_82] : memref<2x32x96xf32, #tpu.memory_space<vmem>>, vector<1x32x96xf32>
    %190 = vector.shape_cast %189 : vector<1x32x96xf32> to vector<32x96xf32>
    %cst_83 = arith.constant dense<0.000000e+00> : vector<16x96xf32>
    %191 = tpu.matmul %188, %190, %cst_83 {dimension_numbers = #tpu.dot_dimension_numbers<[1], [0], [0], [1], [0, 0, 1, 1], [], []>} : vector<16x32xf32>, vector<32x96xf32>, vector<16x96xf32> -> vector<16x96xf32>
    %c1_84 = arith.constant 1 : index
    %c0_85 = arith.constant 0 : index
    %c0_86 = arith.constant 0 : index
    %192 = vector.load %arg5[%c1_84, %c0_85, %c0_86] : memref<2x1x96xf32, #tpu.memory_space<vmem>>, vector<1x1x96xf32>
    %193 = vector.shape_cast %192 : vector<1x1x96xf32> to vector<1x96xf32>
    %194 = vector.broadcast %193 : vector<1x96xf32> to vector<16x96xf32>
    %195 = arith.addf %191, %194 : vector<16x96xf32>
    %196 = vector.extract_strided_slice %195 {offsets = [0, 0], sizes = [16, 32], strides = [1, 1]} : vector<16x96xf32> to vector<16x32xf32>
    %197 = vector.extract_strided_slice %195 {offsets = [0, 32], sizes = [16, 32], strides = [1, 1]} : vector<16x96xf32> to vector<16x32xf32>
    %198 = vector.extract_strided_slice %195 {offsets = [0, 64], sizes = [16, 32], strides = [1, 1]} : vector<16x96xf32> to vector<16x32xf32>
    %199 = vector.extract_strided_slice %196 {offsets = [0, 0], sizes = [16, 8], strides = [1, 1]} : vector<16x32xf32> to vector<16x8xf32>
    %200 = vector.extract_strided_slice %197 {offsets = [0, 0], sizes = [16, 8], strides = [1, 1]} : vector<16x32xf32> to vector<16x8xf32>
    %201 = vector.extract_strided_slice %198 {offsets = [0, 0], sizes = [16, 8], strides = [1, 1]} : vector<16x32xf32> to vector<16x8xf32>
    %cst_87 = arith.constant dense<0.000000e+00> : vector<16x16xf32>
    %202 = tpu.matmul %199, %200, %cst_87 {dimension_numbers = #tpu.dot_dimension_numbers<[1], [1], [0], [0], [0, 0, 1, 0], [], []>} : vector<16x8xf32>, vector<16x8xf32>, vector<16x16xf32> -> vector<16x16xf32>
    %203 = arith.addf %202, %25 : vector<16x16xf32>
    %cst_88 = arith.constant dense<0xFF800000> : vector<16xf32>
    %204 = vector.multi_reduction <maximumf>, %203, %cst_88 [1] : vector<16x16xf32> to vector<16xf32>
    %205 = vector.shape_cast %204 : vector<16xf32> to vector<16x1xf32>
    %206 = vector.broadcast %205 : vector<16x1xf32> to vector<16x16xf32>
    %207 = arith.subf %203, %206 : vector<16x16xf32>
    %208 = math.exp %207 : vector<16x16xf32>
    %cst_89 = arith.constant dense<0.000000e+00> : vector<16xf32>
    %209 = vector.multi_reduction <add>, %208, %cst_89 [1] : vector<16x16xf32> to vector<16xf32>
    %210 = vector.shape_cast %209 : vector<16xf32> to vector<16x1xf32>
    %211 = tpu.reciprocal %210 {approx = true} : vector<16x1xf32> -> vector<16x1xf32>
    %212 = vector.broadcast %211 : vector<16x1xf32> to vector<16x16xf32>
    %213 = arith.mulf %208, %212 : vector<16x16xf32>
    %cst_90 = arith.constant dense<0.000000e+00> : vector<16x8xf32>
    %214 = tpu.matmul %213, %201, %cst_90 {dimension_numbers = #tpu.dot_dimension_numbers<[1], [0], [0], [1], [0, 0, 1, 1], [], []>} : vector<16x16xf32>, vector<16x8xf32>, vector<16x8xf32> -> vector<16x8xf32>
    %215 = vector.extract_strided_slice %196 {offsets = [0, 8], sizes = [16, 8], strides = [1, 1]} : vector<16x32xf32> to vector<16x8xf32>
    %216 = vector.extract_strided_slice %197 {offsets = [0, 8], sizes = [16, 8], strides = [1, 1]} : vector<16x32xf32> to vector<16x8xf32>
    %217 = vector.extract_strided_slice %198 {offsets = [0, 8], sizes = [16, 8], strides = [1, 1]} : vector<16x32xf32> to vector<16x8xf32>
    %cst_91 = arith.constant dense<0.000000e+00> : vector<16x16xf32>
    %218 = tpu.matmul %215, %216, %cst_91 {dimension_numbers = #tpu.dot_dimension_numbers<[1], [1], [0], [0], [0, 0, 1, 0], [], []>} : vector<16x8xf32>, vector<16x8xf32>, vector<16x16xf32> -> vector<16x16xf32>
    %219 = arith.addf %218, %25 : vector<16x16xf32>
    %cst_92 = arith.constant dense<0xFF800000> : vector<16xf32>
    %220 = vector.multi_reduction <maximumf>, %219, %cst_92 [1] : vector<16x16xf32> to vector<16xf32>
    %221 = vector.shape_cast %220 : vector<16xf32> to vector<16x1xf32>
    %222 = vector.broadcast %221 : vector<16x1xf32> to vector<16x16xf32>
    %223 = arith.subf %219, %222 : vector<16x16xf32>
    %224 = math.exp %223 : vector<16x16xf32>
    %cst_93 = arith.constant dense<0.000000e+00> : vector<16xf32>
    %225 = vector.multi_reduction <add>, %224, %cst_93 [1] : vector<16x16xf32> to vector<16xf32>
    %226 = vector.shape_cast %225 : vector<16xf32> to vector<16x1xf32>
    %227 = tpu.reciprocal %226 {approx = true} : vector<16x1xf32> -> vector<16x1xf32>
    %228 = vector.broadcast %227 : vector<16x1xf32> to vector<16x16xf32>
    %229 = arith.mulf %224, %228 : vector<16x16xf32>
    %cst_94 = arith.constant dense<0.000000e+00> : vector<16x8xf32>
    %230 = tpu.matmul %229, %217, %cst_94 {dimension_numbers = #tpu.dot_dimension_numbers<[1], [0], [0], [1], [0, 0, 1, 1], [], []>} : vector<16x16xf32>, vector<16x8xf32>, vector<16x8xf32> -> vector<16x8xf32>
    %231 = vector.extract_strided_slice %196 {offsets = [0, 16], sizes = [16, 8], strides = [1, 1]} : vector<16x32xf32> to vector<16x8xf32>
    %232 = vector.extract_strided_slice %197 {offsets = [0, 16], sizes = [16, 8], strides = [1, 1]} : vector<16x32xf32> to vector<16x8xf32>
    %233 = vector.extract_strided_slice %198 {offsets = [0, 16], sizes = [16, 8], strides = [1, 1]} : vector<16x32xf32> to vector<16x8xf32>
    %cst_95 = arith.constant dense<0.000000e+00> : vector<16x16xf32>
    %234 = tpu.matmul %231, %232, %cst_95 {dimension_numbers = #tpu.dot_dimension_numbers<[1], [1], [0], [0], [0, 0, 1, 0], [], []>} : vector<16x8xf32>, vector<16x8xf32>, vector<16x16xf32> -> vector<16x16xf32>
    %235 = arith.addf %234, %25 : vector<16x16xf32>
    %cst_96 = arith.constant dense<0xFF800000> : vector<16xf32>
    %236 = vector.multi_reduction <maximumf>, %235, %cst_96 [1] : vector<16x16xf32> to vector<16xf32>
    %237 = vector.shape_cast %236 : vector<16xf32> to vector<16x1xf32>
    %238 = vector.broadcast %237 : vector<16x1xf32> to vector<16x16xf32>
    %239 = arith.subf %235, %238 : vector<16x16xf32>
    %240 = math.exp %239 : vector<16x16xf32>
    %cst_97 = arith.constant dense<0.000000e+00> : vector<16xf32>
    %241 = vector.multi_reduction <add>, %240, %cst_97 [1] : vector<16x16xf32> to vector<16xf32>
    %242 = vector.shape_cast %241 : vector<16xf32> to vector<16x1xf32>
    %243 = tpu.reciprocal %242 {approx = true} : vector<16x1xf32> -> vector<16x1xf32>
    %244 = vector.broadcast %243 : vector<16x1xf32> to vector<16x16xf32>
    %245 = arith.mulf %240, %244 : vector<16x16xf32>
    %cst_98 = arith.constant dense<0.000000e+00> : vector<16x8xf32>
    %246 = tpu.matmul %245, %233, %cst_98 {dimension_numbers = #tpu.dot_dimension_numbers<[1], [0], [0], [1], [0, 0, 1, 1], [], []>} : vector<16x16xf32>, vector<16x8xf32>, vector<16x8xf32> -> vector<16x8xf32>
    %247 = vector.extract_strided_slice %196 {offsets = [0, 24], sizes = [16, 8], strides = [1, 1]} : vector<16x32xf32> to vector<16x8xf32>
    %248 = vector.extract_strided_slice %197 {offsets = [0, 24], sizes = [16, 8], strides = [1, 1]} : vector<16x32xf32> to vector<16x8xf32>
    %249 = vector.extract_strided_slice %198 {offsets = [0, 24], sizes = [16, 8], strides = [1, 1]} : vector<16x32xf32> to vector<16x8xf32>
    %cst_99 = arith.constant dense<0.000000e+00> : vector<16x16xf32>
    %250 = tpu.matmul %247, %248, %cst_99 {dimension_numbers = #tpu.dot_dimension_numbers<[1], [1], [0], [0], [0, 0, 1, 0], [], []>} : vector<16x8xf32>, vector<16x8xf32>, vector<16x16xf32> -> vector<16x16xf32>
    %251 = arith.addf %250, %25 : vector<16x16xf32>
    %cst_100 = arith.constant dense<0xFF800000> : vector<16xf32>
    %252 = vector.multi_reduction <maximumf>, %251, %cst_100 [1] : vector<16x16xf32> to vector<16xf32>
    %253 = vector.shape_cast %252 : vector<16xf32> to vector<16x1xf32>
    %254 = vector.broadcast %253 : vector<16x1xf32> to vector<16x16xf32>
    %255 = arith.subf %251, %254 : vector<16x16xf32>
    %256 = math.exp %255 : vector<16x16xf32>
    %cst_101 = arith.constant dense<0.000000e+00> : vector<16xf32>
    %257 = vector.multi_reduction <add>, %256, %cst_101 [1] : vector<16x16xf32> to vector<16xf32>
    %258 = vector.shape_cast %257 : vector<16xf32> to vector<16x1xf32>
    %259 = tpu.reciprocal %258 {approx = true} : vector<16x1xf32> -> vector<16x1xf32>
    %260 = vector.broadcast %259 : vector<16x1xf32> to vector<16x16xf32>
    %261 = arith.mulf %256, %260 : vector<16x16xf32>
    %cst_102 = arith.constant dense<0.000000e+00> : vector<16x8xf32>
    %262 = tpu.matmul %261, %249, %cst_102 {dimension_numbers = #tpu.dot_dimension_numbers<[1], [0], [0], [1], [0, 0, 1, 1], [], []>} : vector<16x16xf32>, vector<16x8xf32>, vector<16x8xf32> -> vector<16x8xf32>
    %263 = tpu.concatenate %214, %230, %246, %262 in 1 : vector<16x8xf32>, vector<16x8xf32>, vector<16x8xf32>, vector<16x8xf32> -> vector<16x32xf32>
    %c1_103 = arith.constant 1 : index
    %c0_104 = arith.constant 0 : index
    %c0_105 = arith.constant 0 : index
    %264 = vector.load %arg6[%c1_103, %c0_104, %c0_105] : memref<2x32x32xf32, #tpu.memory_space<vmem>>, vector<1x32x32xf32>
    %265 = vector.shape_cast %264 : vector<1x32x32xf32> to vector<32x32xf32>
    %cst_106 = arith.constant dense<0.000000e+00> : vector<16x32xf32>
    %266 = tpu.matmul %263, %265, %cst_106 {dimension_numbers = #tpu.dot_dimension_numbers<[1], [0], [0], [1], [0, 0, 1, 1], [], []>} : vector<16x32xf32>, vector<32x32xf32>, vector<16x32xf32> -> vector<16x32xf32>
    %c1_107 = arith.constant 1 : index
    %c0_108 = arith.constant 0 : index
    %c0_109 = arith.constant 0 : index
    %267 = vector.load %arg7[%c1_107, %c0_108, %c0_109] : memref<2x1x32xf32, #tpu.memory_space<vmem>>, vector<1x1x32xf32>
    %268 = vector.shape_cast %267 : vector<1x1x32xf32> to vector<1x32xf32>
    %269 = vector.broadcast %268 : vector<1x32xf32> to vector<16x32xf32>
    %270 = arith.addf %266, %269 : vector<16x32xf32>
    %271 = arith.addf %188, %270 : vector<16x32xf32>
    %c1_110 = arith.constant 1 : index
    %c0_111 = arith.constant 0 : index
    %c0_112 = arith.constant 0 : index
    %272 = vector.load %arg8[%c1_110, %c0_111, %c0_112] : memref<2x1x32xf32, #tpu.memory_space<vmem>>, vector<1x1x32xf32>
    %273 = vector.shape_cast %272 : vector<1x1x32xf32> to vector<1x32xf32>
    %c1_113 = arith.constant 1 : index
    %c0_114 = arith.constant 0 : index
    %c0_115 = arith.constant 0 : index
    %274 = vector.load %arg9[%c1_113, %c0_114, %c0_115] : memref<2x1x32xf32, #tpu.memory_space<vmem>>, vector<1x1x32xf32>
    %275 = vector.shape_cast %274 : vector<1x1x32xf32> to vector<1x32xf32>
    %cst_116 = arith.constant dense<0.000000e+00> : vector<16xf32>
    %276 = vector.multi_reduction <add>, %271, %cst_116 [1] : vector<16x32xf32> to vector<16xf32>
    %277 = vector.shape_cast %276 : vector<16xf32> to vector<16x1xf32>
    %cst_117 = arith.constant 3.200000e+01 : f32
    %278 = vector.broadcast %cst_117 : f32 to vector<16x1xf32>
    %279 = arith.divf %277, %278 : vector<16x1xf32>
    %280 = vector.broadcast %279 : vector<16x1xf32> to vector<16x32xf32>
    %281 = arith.subf %271, %280 : vector<16x32xf32>
    %282 = arith.mulf %281, %281 : vector<16x32xf32>
    %cst_118 = arith.constant dense<0.000000e+00> : vector<16xf32>
    %283 = vector.multi_reduction <add>, %282, %cst_118 [1] : vector<16x32xf32> to vector<16xf32>
    %284 = vector.shape_cast %283 : vector<16xf32> to vector<16x1xf32>
    %cst_119 = arith.constant 3.200000e+01 : f32
    %285 = vector.broadcast %cst_119 : f32 to vector<16x1xf32>
    %286 = arith.divf %284, %285 : vector<16x1xf32>
    %287 = vector.broadcast %279 : vector<16x1xf32> to vector<16x32xf32>
    %288 = arith.subf %271, %287 : vector<16x32xf32>
    %cst_120 = arith.constant 9.99999996E-13 : f32
    %289 = vector.broadcast %cst_120 : f32 to vector<16x1xf32>
    %290 = arith.addf %286, %289 : vector<16x1xf32>
    %291 = math.rsqrt %290 : vector<16x1xf32>
    %292 = vector.broadcast %291 : vector<16x1xf32> to vector<16x32xf32>
    %293 = arith.mulf %288, %292 : vector<16x32xf32>
    %294 = vector.broadcast %273 : vector<1x32xf32> to vector<16x32xf32>
    %295 = arith.mulf %293, %294 : vector<16x32xf32>
    %296 = vector.broadcast %275 : vector<1x32xf32> to vector<16x32xf32>
    %297 = arith.addf %295, %296 : vector<16x32xf32>
    %c1_121 = arith.constant 1 : index
    %c0_122 = arith.constant 0 : index
    %c0_123 = arith.constant 0 : index
    %298 = vector.load %arg10[%c1_121, %c0_122, %c0_123] : memref<2x32x64xf32, #tpu.memory_space<vmem>>, vector<1x32x64xf32>
    %299 = vector.shape_cast %298 : vector<1x32x64xf32> to vector<32x64xf32>
    %cst_124 = arith.constant dense<0.000000e+00> : vector<16x64xf32>
    %300 = tpu.matmul %297, %299, %cst_124 {dimension_numbers = #tpu.dot_dimension_numbers<[1], [0], [0], [1], [0, 0, 1, 1], [], []>} : vector<16x32xf32>, vector<32x64xf32>, vector<16x64xf32> -> vector<16x64xf32>
    %c1_125 = arith.constant 1 : index
    %c0_126 = arith.constant 0 : index
    %c0_127 = arith.constant 0 : index
    %301 = vector.load %arg11[%c1_125, %c0_126, %c0_127] : memref<2x1x64xf32, #tpu.memory_space<vmem>>, vector<1x1x64xf32>
    %302 = vector.shape_cast %301 : vector<1x1x64xf32> to vector<1x64xf32>
    %303 = vector.broadcast %302 : vector<1x64xf32> to vector<16x64xf32>
    %304 = arith.addf %300, %303 : vector<16x64xf32>
    %305 = arith.mulf %304, %304 : vector<16x64xf32>
    %306 = arith.mulf %304, %305 : vector<16x64xf32>
    %cst_128 = arith.constant 4.471500e-02 : f32
    %307 = vector.broadcast %cst_128 : f32 to vector<16x64xf32>
    %308 = arith.mulf %307, %306 : vector<16x64xf32>
    %309 = arith.addf %304, %308 : vector<16x64xf32>
    %cst_129 = arith.constant 0.797884583 : f32
    %310 = vector.broadcast %cst_129 : f32 to vector<16x64xf32>
    %311 = arith.mulf %310, %309 : vector<16x64xf32>
    %312 = math.tanh %311 : vector<16x64xf32>
    %cst_130 = arith.constant 1.000000e+00 : f32
    %313 = vector.broadcast %cst_130 : f32 to vector<16x64xf32>
    %314 = arith.addf %313, %312 : vector<16x64xf32>
    %cst_131 = arith.constant 5.000000e-01 : f32
    %315 = vector.broadcast %cst_131 : f32 to vector<16x64xf32>
    %316 = arith.mulf %315, %314 : vector<16x64xf32>
    %317 = arith.mulf %304, %316 : vector<16x64xf32>
    %c1_132 = arith.constant 1 : index
    %c0_133 = arith.constant 0 : index
    %c0_134 = arith.constant 0 : index
    %318 = vector.load %arg12[%c1_132, %c0_133, %c0_134] : memref<2x64x32xf32, #tpu.memory_space<vmem>>, vector<1x64x32xf32>
    %319 = vector.shape_cast %318 : vector<1x64x32xf32> to vector<64x32xf32>
    %cst_135 = arith.constant dense<0.000000e+00> : vector<16x32xf32>
    %320 = tpu.matmul %317, %319, %cst_135 {dimension_numbers = #tpu.dot_dimension_numbers<[1], [0], [0], [1], [0, 0, 1, 1], [], []>} : vector<16x64xf32>, vector<64x32xf32>, vector<16x32xf32> -> vector<16x32xf32>
    %c1_136 = arith.constant 1 : index
    %c0_137 = arith.constant 0 : index
    %c0_138 = arith.constant 0 : index
    %321 = vector.load %arg13[%c1_136, %c0_137, %c0_138] : memref<2x1x32xf32, #tpu.memory_space<vmem>>, vector<1x1x32xf32>
    %322 = vector.shape_cast %321 : vector<1x1x32xf32> to vector<1x32xf32>
    %323 = vector.broadcast %322 : vector<1x32xf32> to vector<16x32xf32>
    %324 = arith.addf %320, %323 : vector<16x32xf32>
    %325 = arith.addf %297, %324 : vector<16x32xf32>
    %c1_139 = arith.constant 1 : index
    %c0_140 = arith.constant 0 : index
    %c0_141 = arith.constant 0 : index
    %326 = vector.load %arg14[%c1_139, %c0_140, %c0_141] : memref<2x1x32xf32, #tpu.memory_space<vmem>>, vector<1x1x32xf32>
    %327 = vector.shape_cast %326 : vector<1x1x32xf32> to vector<1x32xf32>
    %c1_142 = arith.constant 1 : index
    %c0_143 = arith.constant 0 : index
    %c0_144 = arith.constant 0 : index
    %328 = vector.load %arg15[%c1_142, %c0_143, %c0_144] : memref<2x1x32xf32, #tpu.memory_space<vmem>>, vector<1x1x32xf32>
    %329 = vector.shape_cast %328 : vector<1x1x32xf32> to vector<1x32xf32>
    %cst_145 = arith.constant dense<0.000000e+00> : vector<16xf32>
    %330 = vector.multi_reduction <add>, %325, %cst_145 [1] : vector<16x32xf32> to vector<16xf32>
    %331 = vector.shape_cast %330 : vector<16xf32> to vector<16x1xf32>
    %cst_146 = arith.constant 3.200000e+01 : f32
    %332 = vector.broadcast %cst_146 : f32 to vector<16x1xf32>
    %333 = arith.divf %331, %332 : vector<16x1xf32>
    %334 = vector.broadcast %333 : vector<16x1xf32> to vector<16x32xf32>
    %335 = arith.subf %325, %334 : vector<16x32xf32>
    %336 = arith.mulf %335, %335 : vector<16x32xf32>
    %cst_147 = arith.constant dense<0.000000e+00> : vector<16xf32>
    %337 = vector.multi_reduction <add>, %336, %cst_147 [1] : vector<16x32xf32> to vector<16xf32>
    %338 = vector.shape_cast %337 : vector<16xf32> to vector<16x1xf32>
    %cst_148 = arith.constant 3.200000e+01 : f32
    %339 = vector.broadcast %cst_148 : f32 to vector<16x1xf32>
    %340 = arith.divf %338, %339 : vector<16x1xf32>
    %341 = vector.broadcast %333 : vector<16x1xf32> to vector<16x32xf32>
    %342 = arith.subf %325, %341 : vector<16x32xf32>
    %cst_149 = arith.constant 9.99999996E-13 : f32
    %343 = vector.broadcast %cst_149 : f32 to vector<16x1xf32>
    %344 = arith.addf %340, %343 : vector<16x1xf32>
    %345 = math.rsqrt %344 : vector<16x1xf32>
    %346 = vector.broadcast %345 : vector<16x1xf32> to vector<16x32xf32>
    %347 = arith.mulf %342, %346 : vector<16x32xf32>
    %348 = vector.broadcast %327 : vector<1x32xf32> to vector<16x32xf32>
    %349 = arith.mulf %347, %348 : vector<16x32xf32>
    %350 = vector.broadcast %329 : vector<1x32xf32> to vector<16x32xf32>
    %351 = arith.addf %349, %350 : vector<16x32xf32>
    %352 = vector.extract_strided_slice %351 {offsets = [0, 0], sizes = [1, 32], strides = [1, 1]} : vector<16x32xf32> to vector<1x32xf32>
    %353 = vector.extract_strided_slice %351 {offsets = [8, 0], sizes = [1, 32], strides = [1, 1]} : vector<16x32xf32> to vector<1x32xf32>
    %354 = tpu.concatenate %352, %353 in 0 : vector<1x32xf32>, vector<1x32xf32> -> vector<2x32xf32>
    %c0_150 = arith.constant 0 : index
    %c0_151 = arith.constant 0 : index
    %355 = vector.load %arg16[%c0_150, %c0_151] : memref<32x16xf32, #tpu.memory_space<vmem>>, vector<32x16xf32>
    %cst_152 = arith.constant dense<0.000000e+00> : vector<2x16xf32>
    %356 = tpu.matmul %354, %355, %cst_152 {dimension_numbers = #tpu.dot_dimension_numbers<[1], [0], [0], [1], [0, 0, 1, 1], [], []>} : vector<2x32xf32>, vector<32x16xf32>, vector<2x16xf32> -> vector<2x16xf32>
    %c0_153 = arith.constant 0 : index
    %c0_154 = arith.constant 0 : index
    %357 = vector.load %arg17[%c0_153, %c0_154] : memref<1x16xf32, #tpu.memory_space<vmem>>, vector<1x16xf32>
    %358 = vector.broadcast %357 : vector<1x16xf32> to vector<2x16xf32>
    %359 = arith.addf %356, %358 : vector<2x16xf32>
    %cst_155 = arith.constant 0.000000e+00 : f32
    %360 = vector.broadcast %cst_155 : f32 to vector<2x16xf32>
    %361 = arith.maximumf %359, %360 : vector<2x16xf32>
    %c0_156 = arith.constant 0 : index
    %c0_157 = arith.constant 0 : index
    %362 = vector.load %arg18[%c0_156, %c0_157] : memref<16x8xf32, #tpu.memory_space<vmem>>, vector<16x8xf32>
    %cst_158 = arith.constant dense<0.000000e+00> : vector<2x8xf32>
    %363 = tpu.matmul %361, %362, %cst_158 {dimension_numbers = #tpu.dot_dimension_numbers<[1], [0], [0], [1], [0, 0, 1, 1], [], []>} : vector<2x16xf32>, vector<16x8xf32>, vector<2x8xf32> -> vector<2x8xf32>
    %c0_159 = arith.constant 0 : index
    %c0_160 = arith.constant 0 : index
    %364 = vector.load %arg19[%c0_159, %c0_160] : memref<1x8xf32, #tpu.memory_space<vmem>>, vector<1x8xf32>
    %365 = vector.broadcast %364 : vector<1x8xf32> to vector<2x8xf32>
    %366 = arith.addf %363, %365 : vector<2x8xf32>
    %cst_161 = arith.constant 0.000000e+00 : f32
    %367 = vector.broadcast %cst_161 : f32 to vector<2x8xf32>
    %368 = arith.maximumf %366, %367 : vector<2x8xf32>
    %c0_162 = arith.constant 0 : index
    %c0_163 = arith.constant 0 : index
    %369 = vector.load %arg20[%c0_162, %c0_163] : memref<8x3xf32, #tpu.memory_space<vmem>>, vector<8x3xf32>
    %cst_164 = arith.constant dense<0.000000e+00> : vector<2x3xf32>
    %370 = tpu.matmul %368, %369, %cst_164 {dimension_numbers = #tpu.dot_dimension_numbers<[1], [0], [0], [1], [0, 0, 1, 1], [], []>} : vector<2x8xf32>, vector<8x3xf32>, vector<2x3xf32> -> vector<2x3xf32>
    %c0_165 = arith.constant 0 : index
    %c0_166 = arith.constant 0 : index
    %371 = vector.load %arg21[%c0_165, %c0_166] : memref<1x3xf32, #tpu.memory_space<vmem>>, vector<1x3xf32>
    %372 = vector.broadcast %371 : vector<1x3xf32> to vector<2x3xf32>
    %373 = arith.addf %370, %372 : vector<2x3xf32>
    %c0_167 = arith.constant 0 : index
    %c0_168 = arith.constant 0 : index
    %374 = vector.load %arg22[%c0_167, %c0_168] : memref<2x3xf32, #tpu.memory_space<vmem>>, vector<2x3xf32>
    tpu.vector_store %arg22[%c0_167, %c0_168], %373 {strides = array<i32>} : memref<2x3xf32, #tpu.memory_space<vmem>>, vector<2x3xf32>,
    return
  }
}

</mosaic_0001>

<llo_original>
// kernel: sentiment_forward.1
$region0: #{sentiment_forward.1}
  #allocation0 [shape = 'u32[]', space=smem, size = 0x4, offset = 0x4, fixed_abs, tag = 'smem constant byte address 0x4 - core index']
  #allocation1 [shape = 'u32[144,128]{1,0:T(1,128)}', space=vmem, size = 0x12000, scoped, tag = 'internal scratch']
  %s0 = inlined_call_operand.vmem [shape: f32[16,32], index: 0, kind: input, shape index: {}]
  %s1 = inlined_call_operand.vmem [shape: f32[16,16], index: 1, kind: input, shape index: {}]
  %s2 = inlined_call_operand.vmem [shape: f32[1,32], index: 2, kind: input, shape index: {}]
  %s3 = inlined_call_operand.vmem [shape: f32[1,32], index: 3, kind: input, shape index: {}]
  %s4 = inlined_call_operand.vmem [shape: f32[2,32,96], index: 4, kind: input, shape index: {}]
  %s5 = inlined_call_operand.vmem [shape: f32[2,1,96], index: 5, kind: input, shape index: {}]
  %s6 = inlined_call_operand.vmem [shape: f32[2,32,32], index: 6, kind: input, shape index: {}]
  %s7 = inlined_call_operand.vmem [shape: f32[2,1,32], index: 7, kind: input, shape index: {}]
  %s8 = inlined_call_operand.vmem [shape: f32[2,1,32], index: 8, kind: input, shape index: {}]
  %s9 = inlined_call_operand.vmem [shape: f32[2,1,32], index: 9, kind: input, shape index: {}]
  %s10 = inlined_call_operand.vmem [shape: f32[2,32,64], index: 10, kind: input, shape index: {}]
  %s11 = inlined_call_operand.vmem [shape: f32[2,1,64], index: 11, kind: input, shape index: {}]
  %s12 = inlined_call_operand.vmem [shape: f32[2,64,32], index: 12, kind: input, shape index: {}]
  %s13 = inlined_call_operand.vmem [shape: f32[2,1,32], index: 13, kind: input, shape index: {}]
  %s14 = inlined_call_operand.vmem [shape: f32[2,1,32], index: 14, kind: input, shape index: {}]
  %s15 = inlined_call_operand.vmem [shape: f32[2,1,32], index: 15, kind: input, shape index: {}]
  %s16 = inlined_call_operand.vmem [shape: f32[32,16], index: 16, kind: input, shape index: {}]
  %s17 = inlined_call_operand.vmem [shape: f32[1,16], index: 17, kind: input, shape index: {}]
  %s18 = inlined_call_operand.vmem [shape: f32[16,8], index: 18, kind: input, shape index: {}]
  %s19 = inlined_call_operand.vmem [shape: f32[1,8], index: 19, kind: input, shape index: {}]
  %s20 = inlined_call_operand.vmem [shape: f32[8,3], index: 20, kind: input, shape index: {}]
  %s21 = inlined_call_operand.vmem [shape: f32[1,3], index: 21, kind: input, shape index: {}]
  %s22 = inlined_call_operand.hbm [shape: f32[2,3], index: 22, kind: output, shape index: {}]
  %s23 = sld [smem:[#allocation0]]
  $region98: #{sentiment_forward.1} parent=0
    _
  %s25 = ssub.s32 1, %s23
  %s26 = scalar_select 0, %s25, %s23
  $region1: #{sentiment_forward.1} parent=0
    #allocation2 [shape = 'u8[1024]{0}', space=vmem, size = 0x400, scoped, tag = 'output window, operand 0, single buffered']
    #allocation3 [shape = 's32[1]{0}', space=sflag, size = 0x4, scoped, tag = 'scoped memory for sentiment_forward.1']
    %27 = vsyncpa [#allocation3], 0
    // Predicated region
    $region2: #{sentiment_forward.1} parent=1 // pred_check
      _
    $region3: #{sentiment_forward.1} parent=1 // pred_check_branch
      %29 = sbr.rel (0) target = $region5
    $region4: #{sentiment_forward.1} parent=1 // pred_region
      _
    $region5: #{sentiment_forward.1} parent=1 // pred_fallthru
      _
    // Predicated region
    $region6: #{sentiment_forward.1} parent=1 // pred_check
      _
    $region7: #{sentiment_forward.1} parent=1 // pred_check_branch
      %31 = sbr.rel (0) target = $region9
    $region8: #{sentiment_forward.1} parent=1 // pred_region
      _
    $region9: #{sentiment_forward.1} parent=1 // pred_fallthru
      _
    // Predicated region
    $region10: #{sentiment_forward.1} parent=1 // pred_check
      _
    $region11: #{sentiment_forward.1} parent=1 // pred_check_branch
      %33 = sbr.rel (0) target = $region13
    $region12: #{sentiment_forward.1} parent=1 // pred_region
      _
    $region13: #{sentiment_forward.1} parent=1 // pred_fallthru
      _
    // Predicated region
    $region14: #{sentiment_forward.1} parent=1 // pred_check
      _
    $region15: #{sentiment_forward.1} parent=1 // pred_check_branch
      %35 = sbr.rel (0) target = $region17
    $region16: #{sentiment_forward.1} parent=1 // pred_region
      _
    $region17: #{sentiment_forward.1} parent=1 // pred_fallthru
      _
    // Predicated region
    $region18: #{sentiment_forward.1} parent=1 // pred_check
      _
    $region19: #{sentiment_forward.1} parent=1 // pred_check_branch
      %37 = sbr.rel (0) target = $region21
    $region20: #{sentiment_forward.1} parent=1 // pred_region
      _
    $region21: #{sentiment_forward.1} parent=1 // pred_fallthru
      _
    // Predicated region
    $region22: #{sentiment_forward.1} parent=1 // pred_check
      _
    $region23: #{sentiment_forward.1} parent=1 // pred_check_branch
      %39 = sbr.rel (0) target = $region25
    $region24: #{sentiment_forward.1} parent=1 // pred_region
      _
    $region25: #{sentiment_forward.1} parent=1 // pred_fallthru
      _
    // Predicated region
    $region26: #{sentiment_forward.1} parent=1 // pred_check
      _
    $region27: #{sentiment_forward.1} parent=1 // pred_check_branch
      %41 = sbr.rel (0) target = $region29
    $region28: #{sentiment_forward.1} parent=1 // pred_region
      _
    $region29: #{sentiment_forward.1} parent=1 // pred_fallthru
      _
    // Predicated region
    $region30: #{sentiment_forward.1} parent=1 // pred_check
      _
    $region31: #{sentiment_forward.1} parent=1 // pred_check_branch
      %43 = sbr.rel (0) target = $region33
    $region32: #{sentiment_forward.1} parent=1 // pred_region
      _
    $region33: #{sentiment_forward.1} parent=1 // pred_fallthru
      _
    // Predicated region
    $region34: #{sentiment_forward.1} parent=1 // pred_check
      _
    $region35: #{sentiment_forward.1} parent=1 // pred_check_branch
      %45 = sbr.rel (0) target = $region37
    $region36: #{sentiment_forward.1} parent=1 // pred_region
      _
    $region37: #{sentiment_forward.1} parent=1 // pred_fallthru
      _
    // Predicated region
    $region38: #{sentiment_forward.1} parent=1 // pred_check
      _
    $region39: #{sentiment_forward.1} parent=1 // pred_check_branch
      %47 = sbr.rel (0) target = $region41
    $region40: #{sentiment_forward.1} parent=1 // pred_region
      _
    $region41: #{sentiment_forward.1} parent=1 // pred_fallthru
      _
    // Predicated region
    $region42: #{sentiment_forward.1} parent=1 // pred_check
      _
    $region43: #{sentiment_forward.1} parent=1 // pred_check_branch
      %49 = sbr.rel (0) target = $region45
    $region44: #{sentiment_forward.1} parent=1 // pred_region
      _
    $region45: #{sentiment_forward.1} parent=1 // pred_fallthru
      _
    // Predicated region
    $region46: #{sentiment_forward.1} parent=1 // pred_check
      _
    $region47: #{sentiment_forward.1} parent=1 // pred_check_branch
      %51 = sbr.rel (0) target = $region49
    $region48: #{sentiment_forward.1} parent=1 // pred_region
      _
    $region49: #{sentiment_forward.1} parent=1 // pred_fallthru
      _
    // Predicated region
    $region50: #{sentiment_forward.1} parent=1 // pred_check
      _
    $region51: #{sentiment_forward.1} parent=1 // pred_check_branch
      %53 = sbr.rel (0) target = $region53
    $region52: #{sentiment_forward.1} parent=1 // pred_region
      _
    $region53: #{sentiment_forward.1} parent=1 // pred_fallthru
      _
    // Predicated region
    $region54: #{sentiment_forward.1} parent=1 // pred_check
      _
    $region55: #{sentiment_forward.1} parent=1 // pred_check_branch
      %55 = sbr.rel (0) target = $region57
    $region56: #{sentiment_forward.1} parent=1 // pred_region
      _
    $region57: #{sentiment_forward.1} parent=1 // pred_fallthru
      _
    // Predicated region
    $region58: #{sentiment_forward.1} parent=1 // pred_check
      _
    $region59: #{sentiment_forward.1} parent=1 // pred_check_branch
      %57 = sbr.rel (0) target = $region61
    $region60: #{sentiment_forward.1} parent=1 // pred_region
      _
    $region61: #{sentiment_forward.1} parent=1 // pred_fallthru
      _
    // Predicated region
    $region62: #{sentiment_forward.1} parent=1 // pred_check
      _
    $region63: #{sentiment_forward.1} parent=1 // pred_check_branch
      %59 = sbr.rel (0) target = $region65
    $region64: #{sentiment_forward.1} parent=1 // pred_region
      _
    $region65: #{sentiment_forward.1} parent=1 // pred_fallthru
      _
    // Predicated region
    $region66: #{sentiment_forward.1} parent=1 // pred_check
      _
    $region67: #{sentiment_forward.1} parent=1 // pred_check_branch
      %61 = sbr.rel (0) target = $region69
    $region68: #{sentiment_forward.1} parent=1 // pred_region
      _
    $region69: #{sentiment_forward.1} parent=1 // pred_fallthru
      _
    // Predicated region
    $region70: #{sentiment_forward.1} parent=1 // pred_check
      _
    $region71: #{sentiment_forward.1} parent=1 // pred_check_branch
      %63 = sbr.rel (0) target = $region73
    $region72: #{sentiment_forward.1} parent=1 // pred_region
      _
    $region73: #{sentiment_forward.1} parent=1 // pred_fallthru
      _
    // Predicated region
    $region74: #{sentiment_forward.1} parent=1 // pred_check
      _
    $region75: #{sentiment_forward.1} parent=1 // pred_check_branch
      %65 = sbr.rel (0) target = $region77
    $region76: #{sentiment_forward.1} parent=1 // pred_region
      _
    $region77: #{sentiment_forward.1} parent=1 // pred_fallthru
      _
    // Predicated region
    $region78: #{sentiment_forward.1} parent=1 // pred_check
      _
    $region79: #{sentiment_forward.1} parent=1 // pred_check_branch
      %67 = sbr.rel (0) target = $region81
    $region80: #{sentiment_forward.1} parent=1 // pred_region
      _
    $region81: #{sentiment_forward.1} parent=1 // pred_fallthru
      _
    // Predicated region
    $region82: #{sentiment_forward.1} parent=1 // pred_check
      _
    $region83: #{sentiment_forward.1} parent=1 // pred_check_branch
      %69 = sbr.rel (0) target = $region85
    $region84: #{sentiment_forward.1} parent=1 // pred_region
      _
    $region85: #{sentiment_forward.1} parent=1 // pred_fallthru
      _
    // Predicated region
    $region86: #{sentiment_forward.1} parent=1 // pred_check
      _
    $region87: #{sentiment_forward.1} parent=1 // pred_check_branch
      %71 = sbr.rel (0) target = $region89
    $region88: #{sentiment_forward.1} parent=1 // pred_region
      _
    $region89: #{sentiment_forward.1} parent=1 // pred_fallthru
      _
    %v72 = vld [vmem:[%s0] sm:$0xff]
    %v73 = vld [vmem:[%s0 + $0x8] sm:$0xff]
    %v74 = vld [vmem:[%s2] sm:$0x1]
    %v75 = vld [vmem:[%s3] sm:$0x1]
    %vm76 = vcmask 261120
    %v77 = vsel %vm76, %v72, 0.0
    %78 = vadd.xlane.f32.xlu0 %v77
    %v79 = vpop.xlane.xlu0 %78
    %v80 = vsel %vm76, %v73, 0.0
    %81 = vadd.xlane.f32.xlu0 %v80
    %v82 = vpop.xlane.xlu0 %81
    %v83 = vrcp.pop 32.0
    %v84 = vmul.f32 %v79, %v83
    %v85 = vmul.f32 %v82, %v83
    %v86 = vsub.f32 %v72, %v84
    %v87 = vsub.f32 %v73, %v85
    %v88 = vmul.f32 %v86, %v86
    %v89 = vmul.f32 %v87, %v87
    %v90 = vsel %vm76, %v88, 0.0
    %91 = vadd.xlane.f32.xlu0 %v90
    %v92 = vpop.xlane.xlu0 %91
    %v93 = vsel %vm76, %v89, 0.0
    %94 = vadd.xlane.f32.xlu0 %v93
    %v95 = vpop.xlane.xlu0 %94
    %v96 = vmul.f32 %v92, %v83
    %v97 = vmul.f32 %v95, %v83
    %v98 = vadd.f32 %v96, 1e-12
    %v99 = vadd.f32 %v97, 1e-12
    %v100 = vrsqrt.pop %v98
    %v101 = vrsqrt.pop %v99
    %v102 = vmul.f32 %v86, %v100
    %v103 = vmul.f32 %v87, %v101
    %v105 = vlaneseq
    %v106 = vshrl.u32 %v105, 7
    %v107 = vsub.s32 0, %v106
    %v108 = vrot.slane %v74, %v107
    %v110 = vmul.f32 %v102, %v108
    %v111 = vmul.f32 %v103, %v108
    %v113 = vlaneseq
    %v114 = vshrl.u32 %v113, 7
    %v115 = vsub.s32 0, %v114
    %v116 = vrot.slane %v75, %v115
    %v118 = vadd.f32 %v110, %v116
    %v119 = vadd.f32 %v111, %v116
    %v120 = vld [vmem:[%s1] sm:$0xff]
    %v121 = vld [vmem:[%s1 + $0x8] sm:$0xff]
    %v122 = vld [vmem:[%s4] sm:$0xff]
    %v123 = vld [vmem:[%s4 + $0x8] sm:$0xff]
    %v124 = vld [vmem:[%s4 + $0x10] sm:$0xff]
    %v125 = vld [vmem:[%s4 + $0x18] sm:$0xff]
    %v126 = vld [vmem:[%s5] sm:$0x1]
    %v128 = vlaneseq
    %v129 = vshrl.u32 %v128, 7
    %v130 = vsub.s32 0, %v129
    %v131 = vrot.slane %v126, %v130
    %v134 = vsel %vm76, %v118, 0
    %v137 = vsel %vm76, %v119, 0
    %139 = vmatprep.subr.mxu0 0.0
    %140 = vmatpush1.msra.mxu0 %v122
    %141 = vmatprep.subr.mxu0 0.0
    %142 = vmatpush1.msra.mxu0 %v123
    %143 = vmatprep.subr.mxu0 0.0
    %144 = vmatpush1.msra.mxu0 %v124
    %145 = vmatprep.subr.mxu0 0.0
    %146 = vmatpush1.msra.mxu0 %v125
    %147 = vmatprep.subr.mxu0 0.0
    %148 = vmatpush1.msra.mxu0 0.0
    %149 = vmatprep.subr.mxu0 0.0
    %150 = vmatpush1.msra.mxu0 0.0
    %151 = vmatprep.subr.mxu0 0.0
    %152 = vmatpush1.msra.mxu0 0.0
    %153 = vmatprep.subr.mxu0 0.0
    %154 = vmatpush1.msra.mxu0 0.0
    %155 = vmatprep.subr.mxu0 0.0
    %156 = vmatpush1.msra.mxu0 0.0
    %157 = vmatprep.subr.mxu0 0.0
    %158 = vmatpush1.msra.mxu0 0.0
    %159 = vmatprep.subr.mxu0 0.0
    %160 = vmatpush1.msra.mxu0 0.0
    %161 = vmatprep.subr.mxu0 0.0
    %162 = vmatpush1.msra.mxu0 0.0
    %163 = vmatprep.subr.mxu0 0.0
    %164 = vmatpush1.msra.mxu0 0.0
    %165 = vmatprep.subr.mxu0 0.0
    %166 = vmatpush1.msra.mxu0 0.0
    %167 = vmatprep.subr.mxu0 0.0
    %168 = vmatpush1.msra.mxu0 0.0
    %169 = vmatprep.subr.mxu0 0.0
    %170 = vmatpush1.msra.mxu0 0.0
    %171 = vmatprep.subr.mxu0 0.0
    %172 = vmatpush1.msra.mxu0 0.0
    %173 = vmatprep.subr.mxu0 0.0
    %174 = vmatpush1.msra.mxu0 0.0
    %175 = vmatprep.subr.mxu0 0.0
    %176 = vmatpush1.msra.mxu0 0.0
    %177 = vmatprep.subr.mxu0 0.0
    %178 = vmatpush1.msra.mxu0 0.0
    %179 = vmatprep.subr.mxu0 0.0
    %180 = vmatpush1.msra.mxu0 0.0
    %181 = vmatprep.subr.mxu0 0.0
    %182 = vmatpush1.msra.mxu0 0.0
    %183 = vmatprep.subr.mxu0 0.0
    %184 = vmatpush1.msra.mxu0 0.0
    %185 = vmatprep.subr.mxu0 0.0
    %186 = vmatpush1.msra.mxu0 0.0
    %187 = vmatprep.subr.mxu0 0.0
    %188 = vmatpush1.msra.mxu0 0.0
    %189 = vmatprep.subr.mxu0 0.0
    %190 = vmatpush1.msra.mxu0 0.0
    %191 = vmatprep.subr.mxu0 0.0
    %192 = vmatpush1.msra.mxu0 0.0
    %193 = vmatprep.subr.mxu0 0.0
    %194 = vmatpush1.msra.mxu0 0.0
    %195 = vmatprep.subr.mxu0 0.0
    %196 = vmatpush1.msra.mxu0 0.0
    %197 = vmatprep.subr.mxu0 0.0
    %198 = vmatpush1.msra.mxu0 0.0
    %199 = vmatprep.subr.mxu0 0.0
    %200 = vmatpush1.msra.mxu0 0.0
    %201 = vmatprep.subr.mxu0 0.0
    %202 = vmatpush1.msra.mxu0 0.0
    %203 = vmatprep.mubr.f32.mxu0 0.0
    %204 = vmatmul.mubr.f32.gmra.mrb[0].mxu0 %v134
    %v205 = vpop.f32.mrb[0].mxu0
    %v206 = vadd.f32 %v131, %v205
    %v207 = vpop.f32.mrb[0].mxu0
    %208 = vmatprep.mubr.f32.mxu0 0.0
    %209 = vmatmul.mubr.f32.gmra.mrb[0].mxu0 %v137
    %v210 = vpop.f32.mrb[0].mxu0
    %v211 = vadd.f32 %v131, %v210
    %v212 = vpop.f32.mrb[0].mxu0
    %213 = vdwg.mxu0
    %216 = vrot.lane.b32.xlu0 %v206, 96
    %v217 = vpop.permute.xlu0 %216
    %218 = vrot.lane.b32.xlu0 %v211, 96
    %v219 = vpop.permute.xlu0 %218
    %vm220 = vcmask 64512
    %v221 = vsel %vm220, %v206, 0
    %v223 = vsel %vm220, %v211, 0
    %v225 = vsel %vm220, %v217, 0
    %v227 = vsel %vm220, %v219, 0
    %229 = vmatprep.subr.mxu0 0.0
    %230 = vmatpush1.xpose.msra.mxu0 %v225
    %231 = vmatprep.subr.mxu0 0.0
    %232 = vmatpush1.xpose.msra.mxu0 %v227
    %233 = vmatprep.subr.mxu0 0.0
    %234 = vmatpush1.xpose.msra.mxu0 0.0
    %235 = vmatprep.subr.mxu0 0.0
    %236 = vmatpush1.xpose.msra.mxu0 0.0
    %237 = vmatprep.subr.mxu0 0.0
    %238 = vmatpush1.xpose.msra.mxu0 0.0
    %239 = vmatprep.subr.mxu0 0.0
    %240 = vmatpush1.xpose.msra.mxu0 0.0
    %241 = vmatprep.subr.mxu0 0.0
    %242 = vmatpush1.xpose.msra.mxu0 0.0
    %243 = vmatprep.subr.mxu0 0.0
    %244 = vmatpush1.xpose.msra.mxu0 0.0
    %245 = vmatprep.subr.mxu0 0.0
    %246 = vmatpush1.xpose.msra.mxu0 0.0
    %247 = vmatprep.subr.mxu0 0.0
    %248 = vmatpush1.xpose.msra.mxu0 0.0
    %249 = vmatprep.subr.mxu0 0.0
    %250 = vmatpush1.xpose.msra.mxu0 0.0
    %251 = vmatprep.subr.mxu0 0.0
    %252 = vmatpush1.xpose.msra.mxu0 0.0
    %253 = vmatprep.subr.mxu0 0.0
    %254 = vmatpush1.xpose.msra.mxu0 0.0
    %255 = vmatprep.subr.mxu0 0.0
    %256 = vmatpush1.xpose.msra.mxu0 0.0
    %257 = vmatprep.subr.mxu0 0.0
    %258 = vmatpush1.xpose.msra.mxu0 0.0
    %259 = vmatprep.subr.mxu0 0.0
    %260 = vmatpush1.xpose.msra.mxu0 0.0
    %261 = vmatprep.subr.mxu0 0.0
    %262 = vmatpush1.xpose.msra.mxu0 0.0
    %263 = vmatprep.subr.mxu0 0.0
    %264 = vmatpush1.xpose.msra.mxu0 0.0
    %265 = vmatprep.subr.mxu0 0.0
    %266 = vmatpush1.xpose.msra.mxu0 0.0
    %267 = vmatprep.subr.mxu0 0.0
    %268 = vmatpush1.xpose.msra.mxu0 0.0
    %269 = vmatprep.subr.mxu0 0.0
    %270 = vmatpush1.xpose.msra.mxu0 0.0
    %271 = vmatprep.subr.mxu0 0.0
    %272 = vmatpush1.xpose.msra.mxu0 0.0
    %273 = vmatprep.subr.mxu0 0.0
    %274 = vmatpush1.xpose.msra.mxu0 0.0
    %275 = vmatprep.subr.mxu0 0.0
    %276 = vmatpush1.xpose.msra.mxu0 0.0
    %277 = vmatprep.subr.mxu0 0.0
    %278 = vmatpush1.xpose.msra.mxu0 0.0
    %279 = vmatprep.subr.mxu0 0.0
    %280 = vmatpush1.xpose.msra.mxu0 0.0
    %281 = vmatprep.subr.mxu0 0.0
    %282 = vmatpush1.xpose.msra.mxu0 0.0
    %283 = vmatprep.subr.mxu0 0.0
    %284 = vmatpush1.xpose.msra.mxu0 0.0
    %285 = vmatprep.subr.mxu0 0.0
    %286 = vmatpush1.xpose.msra.mxu0 0.0
    %287 = vmatprep.subr.mxu0 0.0
    %288 = vmatpush1.xpose.msra.mxu0 0.0
    %289 = vmatprep.subr.mxu0 0.0
    %290 = vmatpush1.xpose.msra.mxu0 0.0
    %291 = vmatprep.subr.mxu0 0.0
    %292 = vmatpush1.xpose.msra.mxu0 0.0
    %293 = vmatprep.mubr.f32.mxu0 0.0
    %294 = vmatmul.mubr.f32.gmra.mrb[0].mxu0 %v221
    %v295 = vpop.f32.mrb[0].mxu0
    %v296 = vadd.f32 %v120, %v295
    %v297 = vpop.f32.mrb[0].mxu0
    %298 = vmatprep.mubr.f32.mxu0 0.0
    %299 = vmatmul.mubr.f32.gmra.mrb[0].mxu0 %v223
    %v300 = vpop.f32.mrb[0].mxu0
    %v301 = vadd.f32 %v121, %v300
    %v302 = vpop.f32.mrb[0].mxu0
    %303 = vdwg.mxu0
    %vm304 = vcmask 130048
    %v305 = vsel %vm304, %v296, -inf
    %306 = vmax.xlane.f32.xlu0 %v305
    %v307 = vpop.xlane.xlu0 %306
    %v308 = vsel %vm304, %v301, -inf
    %309 = vmax.xlane.f32.xlu0 %v308
    %v310 = vpop.xlane.xlu0 %309
    %v311 = vsub.f32 %v296, %v307
    %v312 = vsub.f32 %v301, %v310
    %v313 = vmul.f32 %v311, 1.442695
    %v314 = vpow.pop %v313
    %v315 = vmul.f32 %v312, 1.442695
    %v316 = vpow.pop %v315
    %v317 = vsel %vm304, %v314, 0.0
    %318 = vadd.xlane.f32.xlu0 %v317
    %v319 = vpop.xlane.xlu0 %318
    %v320 = vsel %vm304, %v316, 0.0
    %321 = vadd.xlane.f32.xlu0 %v320
    %v322 = vpop.xlane.xlu0 %321
    %v323 = vrcp.pop %v319
    %v324 = vrcp.pop %v322
    %v325 = vmul.f32 %v314, %v323
    %v326 = vmul.f32 %v316, %v324
    %327 = vrot.lane.b32.xlu0 %v206, 64
    %v328 = vpop.permute.xlu0 %327
    %329 = vrot.lane.b32.xlu0 %v211, 64
    %v330 = vpop.permute.xlu0 %329
    %v334 = vsel %vm304, %v325, 0
    %v337 = vsel %vm304, %v326, 0
    %339 = vmatprep.subr.mxu0 0.0
    %340 = vmatpush1.msra.mxu0 %v328
    %341 = vmatprep.subr.mxu0 0.0
    %342 = vmatpush1.msra.mxu0 %v330
    %343 = vmatprep.subr.mxu0 0.0
    %344 = vmatpush1.msra.mxu0 0.0
    %345 = vmatprep.subr.mxu0 0.0
    %346 = vmatpush1.msra.mxu0 0.0
    %347 = vmatprep.subr.mxu0 0.0
    %348 = vmatpush1.msra.mxu0 0.0
    %349 = vmatprep.subr.mxu0 0.0
    %350 = vmatpush1.msra.mxu0 0.0
    %351 = vmatprep.subr.mxu0 0.0
    %352 = vmatpush1.msra.mxu0 0.0
    %353 = vmatprep.subr.mxu0 0.0
    %354 = vmatpush1.msra.mxu0 0.0
    %355 = vmatprep.subr.mxu0 0.0
    %356 = vmatpush1.msra.mxu0 0.0
    %357 = vmatprep.subr.mxu0 0.0
    %358 = vmatpush1.msra.mxu0 0.0
    %359 = vmatprep.subr.mxu0 0.0
    %360 = vmatpush1.msra.mxu0 0.0
    %361 = vmatprep.subr.mxu0 0.0
    %362 = vmatpush1.msra.mxu0 0.0
    %363 = vmatprep.subr.mxu0 0.0
    %364 = vmatpush1.msra.mxu0 0.0
    %365 = vmatprep.subr.mxu0 0.0
    %366 = vmatpush1.msra.mxu0 0.0
    %367 = vmatprep.subr.mxu0 0.0
    %368 = vmatpush1.msra.mxu0 0.0
    %369 = vmatprep.subr.mxu0 0.0
    %370 = vmatpush1.msra.mxu0 0.0
    %371 = vmatprep.subr.mxu0 0.0
    %372 = vmatpush1.msra.mxu0 0.0
    %373 = vmatprep.subr.mxu0 0.0
    %374 = vmatpush1.msra.mxu0 0.0
    %375 = vmatprep.subr.mxu0 0.0
    %376 = vmatpush1.msra.mxu0 0.0
    %377 = vmatprep.subr.mxu0 0.0
    %378 = vmatpush1.msra.mxu0 0.0
    %379 = vmatprep.subr.mxu0 0.0
    %380 = vmatpush1.msra.mxu0 0.0
    %381 = vmatprep.subr.mxu0 0.0
    %382 = vmatpush1.msra.mxu0 0.0
    %383 = vmatprep.subr.mxu0 0.0
    %384 = vmatpush1.msra.mxu0 0.0
    %385 = vmatprep.subr.mxu0 0.0
    %386 = vmatpush1.msra.mxu0 0.0
    %387 = vmatprep.subr.mxu0 0.0
    %388 = vmatpush1.msra.mxu0 0.0
    %389 = vmatprep.subr.mxu0 0.0
    %390 = vmatpush1.msra.mxu0 0.0
    %391 = vmatprep.subr.mxu0 0.0
    %392 = vmatpush1.msra.mxu0 0.0
    %393 = vmatprep.subr.mxu0 0.0
    %394 = vmatpush1.msra.mxu0 0.0
    %395 = vmatprep.subr.mxu0 0.0
    %396 = vmatpush1.msra.mxu0 0.0
    %397 = vmatprep.subr.mxu0 0.0
    %398 = vmatpush1.msra.mxu0 0.0
    %399 = vmatprep.subr.mxu0 0.0
    %400 = vmatpush1.msra.mxu0 0.0
    %401 = vmatprep.subr.mxu0 0.0
    %402 = vmatpush1.msra.mxu0 0.0
    %403 = vmatprep.mubr.f32.mxu0 0.0
    %404 = vmatmul.mubr.f32.gmra.mrb[0].mxu0 %v334
    %v405 = vpop.f32.mrb[0].mxu0
    %v406 = vadd.f32 0.0, %v405
    %v407 = vpop.f32.mrb[0].mxu0
    %408 = vmatprep.mubr.f32.mxu0 0.0
    %409 = vmatmul.mubr.f32.gmra.mrb[0].mxu0 %v337
    %v410 = vpop.f32.mrb[0].mxu0
    %v411 = vadd.f32 0.0, %v410
    %v412 = vpop.f32.mrb[0].mxu0
    %413 = vdwg.mxu0
    %414 = vrot.lane.b32.xlu0 %v206, 120
    %v415 = vpop.permute.xlu0 %414
    %416 = vrot.lane.b32.xlu0 %v211, 120
    %v417 = vpop.permute.xlu0 %416
    %418 = vrot.lane.b32.xlu0 %v206, 88
    %v419 = vpop.permute.xlu0 %418
    %420 = vrot.lane.b32.xlu0 %v211, 88
    %v421 = vpop.permute.xlu0 %420
    %v422 = vsel %vm220, %v415, 0
    %v424 = vsel %vm220, %v417, 0
    %v426 = vsel %vm220, %v419, 0
    %v428 = vsel %vm220, %v421, 0
    %430 = vmatprep.subr.mxu0 0.0
    %431 = vmatpush1.xpose.msra.mxu0 %v426
    %432 = vmatprep.subr.mxu0 0.0
    %433 = vmatpush1.xpose.msra.mxu0 %v428
    %434 = vmatprep.subr.mxu0 0.0
    %435 = vmatpush1.xpose.msra.mxu0 0.0
    %436 = vmatprep.subr.mxu0 0.0
    %437 = vmatpush1.xpose.msra.mxu0 0.0
    %438 = vmatprep.subr.mxu0 0.0
    %439 = vmatpush1.xpose.msra.mxu0 0.0
    %440 = vmatprep.subr.mxu0 0.0
    %441 = vmatpush1.xpose.msra.mxu0 0.0
    %442 = vmatprep.subr.mxu0 0.0
    %443 = vmatpush1.xpose.msra.mxu0 0.0
    %444 = vmatprep.subr.mxu0 0.0
    %445 = vmatpush1.xpose.msra.mxu0 0.0
    %446 = vmatprep.subr.mxu0 0.0
    %447 = vmatpush1.xpose.msra.mxu0 0.0
    %448 = vmatprep.subr.mxu0 0.0
    %449 = vmatpush1.xpose.msra.mxu0 0.0
    %450 = vmatprep.subr.mxu0 0.0
    %451 = vmatpush1.xpose.msra.mxu0 0.0
    %452 = vmatprep.subr.mxu0 0.0
    %453 = vmatpush1.xpose.msra.mxu0 0.0
    %454 = vmatprep.subr.mxu0 0.0
    %455 = vmatpush1.xpose.msra.mxu0 0.0
    %456 = vmatprep.subr.mxu0 0.0
    %457 = vmatpush1.xpose.msra.mxu0 0.0
    %458 = vmatprep.subr.mxu0 0.0
    %459 = vmatpush1.xpose.msra.mxu0 0.0
    %460 = vmatprep.subr.mxu0 0.0
    %461 = vmatpush1.xpose.msra.mxu0 0.0
    %462 = vmatprep.subr.mxu0 0.0
    %463 = vmatpush1.xpose.msra.mxu0 0.0
    %464 = vmatprep.subr.mxu0 0.0
    %465 = vmatpush1.xpose.msra.mxu0 0.0
    %466 = vmatprep.subr.mxu0 0.0
    %467 = vmatpush1.xpose.msra.mxu0 0.0
    %468 = vmatprep.subr.mxu0 0.0
    %469 = vmatpush1.xpose.msra.mxu0 0.0
    %470 = vmatprep.subr.mxu0 0.0
    %471 = vmatpush1.xpose.msra.mxu0 0.0
    %472 = vmatprep.subr.mxu0 0.0
    %473 = vmatpush1.xpose.msra.mxu0 0.0
    %474 = vmatprep.subr.mxu0 0.0
    %475 = vmatpush1.xpose.msra.mxu0 0.0
    %476 = vmatprep.subr.mxu0 0.0
    %477 = vmatpush1.xpose.msra.mxu0 0.0
    %478 = vmatprep.subr.mxu0 0.0
    %479 = vmatpush1.xpose.msra.mxu0 0.0
    %480 = vmatprep.subr.mxu0 0.0
    %481 = vmatpush1.xpose.msra.mxu0 0.0
    %482 = vmatprep.subr.mxu0 0.0
    %483 = vmatpush1.xpose.msra.mxu0 0.0
    %484 = vmatprep.subr.mxu0 0.0
    %485 = vmatpush1.xpose.msra.mxu0 0.0
    %486 = vmatprep.subr.mxu0 0.0
    %487 = vmatpush1.xpose.msra.mxu0 0.0
    %488 = vmatprep.subr.mxu0 0.0
    %489 = vmatpush1.xpose.msra.mxu0 0.0
    %490 = vmatprep.subr.mxu0 0.0
    %491 = vmatpush1.xpose.msra.mxu0 0.0
    %492 = vmatprep.subr.mxu0 0.0
    %493 = vmatpush1.xpose.msra.mxu0 0.0
    %494 = vmatprep.mubr.f32.mxu0 0.0
    %495 = vmatmul.mubr.f32.gmra.mrb[0].mxu0 %v422
    %v496 = vpop.f32.mrb[0].mxu0
    %v497 = vadd.f32 %v120, %v496
    %v498 = vpop.f32.mrb[0].mxu0
    %499 = vmatprep.mubr.f32.mxu0 0.0
    %500 = vmatmul.mubr.f32.gmra.mrb[0].mxu0 %v424
    %v501 = vpop.f32.mrb[0].mxu0
    %v502 = vadd.f32 %v121, %v501
    %v503 = vpop.f32.mrb[0].mxu0
    %504 = vdwg.mxu0
    %v505 = vsel %vm304, %v497, -inf
    %506 = vmax.xlane.f32.xlu0 %v505
    %v507 = vpop.xlane.xlu0 %506
    %v508 = vsel %vm304, %v502, -inf
    %509 = vmax.xlane.f32.xlu0 %v508
    %v510 = vpop.xlane.xlu0 %509
    %v511 = vsub.f32 %v497, %v507
    %v512 = vsub.f32 %v502, %v510
    %v513 = vmul.f32 %v511, 1.442695
    %v514 = vpow.pop %v513
    %v515 = vmul.f32 %v512, 1.442695
    %v516 = vpow.pop %v515
    %v517 = vsel %vm304, %v514, 0.0
    %518 = vadd.xlane.f32.xlu0 %v517
    %v519 = vpop.xlane.xlu0 %518
    %v520 = vsel %vm304, %v516, 0.0
    %521 = vadd.xlane.f32.xlu0 %v520
    %v522 = vpop.xlane.xlu0 %521
    %v523 = vrcp.pop %v519
    %v524 = vrcp.pop %v522
    %v525 = vmul.f32 %v514, %v523
    %v526 = vmul.f32 %v516, %v524
    %527 = vrot.lane.b32.xlu0 %v206, 56
    %v528 = vpop.permute.xlu0 %527
    %529 = vrot.lane.b32.xlu0 %v211, 56
    %v530 = vpop.permute.xlu0 %529
    %v534 = vsel %vm304, %v525, 0
    %v537 = vsel %vm304, %v526, 0
    %539 = vmatprep.subr.mxu0 0.0
    %540 = vmatpush1.msra.mxu0 %v528
    %541 = vmatprep.subr.mxu0 0.0
    %542 = vmatpush1.msra.mxu0 %v530
    %543 = vmatprep.subr.mxu0 0.0
    %544 = vmatpush1.msra.mxu0 0.0
    %545 = vmatprep.subr.mxu0 0.0
    %546 = vmatpush1.msra.mxu0 0.0
    %547 = vmatprep.subr.mxu0 0.0
    %548 = vmatpush1.msra.mxu0 0.0
    %549 = vmatprep.subr.mxu0 0.0
    %550 = vmatpush1.msra.mxu0 0.0
    %551 = vmatprep.subr.mxu0 0.0
    %552 = vmatpush1.msra.mxu0 0.0
    %553 = vmatprep.subr.mxu0 0.0
    %554 = vmatpush1.msra.mxu0 0.0
    %555 = vmatprep.subr.mxu0 0.0
    %556 = vmatpush1.msra.mxu0 0.0
    %557 = vmatprep.subr.mxu0 0.0
    %558 = vmatpush1.msra.mxu0 0.0
    %559 = vmatprep.subr.mxu0 0.0
    %560 = vmatpush1.msra.mxu0 0.0
    %561 = vmatprep.subr.mxu0 0.0
    %562 = vmatpush1.msra.mxu0 0.0
    %563 = vmatprep.subr.mxu0 0.0
    %564 = vmatpush1.msra.mxu0 0.0
    %565 = vmatprep.subr.mxu0 0.0
    %566 = vmatpush1.msra.mxu0 0.0
    %567 = vmatprep.subr.mxu0 0.0
    %568 = vmatpush1.msra.mxu0 0.0
    %569 = vmatprep.subr.mxu0 0.0
    %570 = vmatpush1.msra.mxu0 0.0
    %571 = vmatprep.subr.mxu0 0.0
    %572 = vmatpush1.msra.mxu0 0.0
    %573 = vmatprep.subr.mxu0 0.0
    %574 = vmatpush1.msra.mxu0 0.0
    %575 = vmatprep.subr.mxu0 0.0
    %576 = vmatpush1.msra.mxu0 0.0
    %577 = vmatprep.subr.mxu0 0.0
    %578 = vmatpush1.msra.mxu0 0.0
    %579 = vmatprep.subr.mxu0 0.0
    %580 = vmatpush1.msra.mxu0 0.0
    %581 = vmatprep.subr.mxu0 0.0
    %582 = vmatpush1.msra.mxu0 0.0
    %583 = vmatprep.subr.mxu0 0.0
    %584 = vmatpush1.msra.mxu0 0.0
    %585 = vmatprep.subr.mxu0 0.0
    %586 = vmatpush1.msra.mxu0 0.0
    %587 = vmatprep.subr.mxu0 0.0
    %588 = vmatpush1.msra.mxu0 0.0
    %589 = vmatprep.subr.mxu0 0.0
    %590 = vmatpush1.msra.mxu0 0.0
    %591 = vmatprep.subr.mxu0 0.0
    %592 = vmatpush1.msra.mxu0 0.0
    %593 = vmatprep.subr.mxu0 0.0
    %594 = vmatpush1.msra.mxu0 0.0
    %595 = vmatprep.subr.mxu0 0.0
    %596 = vmatpush1.msra.mxu0 0.0
    %597 = vmatprep.subr.mxu0 0.0
    %598 = vmatpush1.msra.mxu0 0.0
    %599 = vmatprep.subr.mxu0 0.0
    %600 = vmatpush1.msra.mxu0 0.0
    %601 = vmatprep.subr.mxu0 0.0
    %602 = vmatpush1.msra.mxu0 0.0
    %603 = vmatprep.mubr.f32.mxu0 0.0
    %604 = vmatmul.mubr.f32.gmra.mrb[0].mxu0 %v534
    %v605 = vpop.f32.mrb[0].mxu0
    %v606 = vadd.f32 0.0, %v605
    %v607 = vpop.f32.mrb[0].mxu0
    %608 = vmatprep.mubr.f32.mxu0 0.0
    %609 = vmatmul.mubr.f32.gmra.mrb[0].mxu0 %v537
    %v610 = vpop.f32.mrb[0].mxu0
    %v611 = vadd.f32 0.0, %v610
    %v612 = vpop.f32.mrb[0].mxu0
    %613 = vdwg.mxu0
    %614 = vrot.lane.b32.xlu0 %v206, 112
    %v615 = vpop.permute.xlu0 %614
    %616 = vrot.lane.b32.xlu0 %v211, 112
    %v617 = vpop.permute.xlu0 %616
    %618 = vrot.lane.b32.xlu0 %v206, 80
    %v619 = vpop.permute.xlu0 %618
    %620 = vrot.lane.b32.xlu0 %v211, 80
    %v621 = vpop.permute.xlu0 %620
    %v622 = vsel %vm220, %v615, 0
    %v624 = vsel %vm220, %v617, 0
    %v626 = vsel %vm220, %v619, 0
    %v628 = vsel %vm220, %v621, 0
    %630 = vmatprep.subr.mxu0 0.0
    %631 = vmatpush1.xpose.msra.mxu0 %v626
    %632 = vmatprep.subr.mxu0 0.0
    %633 = vmatpush1.xpose.msra.mxu0 %v628
    %634 = vmatprep.subr.mxu0 0.0
    %635 = vmatpush1.xpose.msra.mxu0 0.0
    %636 = vmatprep.subr.mxu0 0.0
    %637 = vmatpush1.xpose.msra.mxu0 0.0
    %638 = vmatprep.subr.mxu0 0.0
    %639 = vmatpush1.xpose.msra.mxu0 0.0
    %640 = vmatprep.subr.mxu0 0.0
    %641 = vmatpush1.xpose.msra.mxu0 0.0
    %642 = vmatprep.subr.mxu0 0.0
    %643 = vmatpush1.xpose.msra.mxu0 0.0
    %644 = vmatprep.subr.mxu0 0.0
    %645 = vmatpush1.xpose.msra.mxu0 0.0
    %646 = vmatprep.subr.mxu0 0.0
    %647 = vmatpush1.xpose.msra.mxu0 0.0
    %648 = vmatprep.subr.mxu0 0.0
    %649 = vmatpush1.xpose.msra.mxu0 0.0
    %650 = vmatprep.subr.mxu0 0.0
    %651 = vmatpush1.xpose.msra.mxu0 0.0
    %652 = vmatprep.subr.mxu0 0.0
    %653 = vmatpush1.xpose.msra.mxu0 0.0
    %654 = vmatprep.subr.mxu0 0.0
    %655 = vmatpush1.xpose.msra.mxu0 0.0
    %656 = vmatprep.subr.mxu0 0.0
    %657 = vmatpush1.xpose.msra.mxu0 0.0
    %658 = vmatprep.subr.mxu0 0.0
    %659 = vmatpush1.xpose.msra.mxu0 0.0
    %660 = vmatprep.subr.mxu0 0.0
    %661 = vmatpush1.xpose.msra.mxu0 0.0
    %662 = vmatprep.subr.mxu0 0.0
    %663 = vmatpush1.xpose.msra.mxu0 0.0
    %664 = vmatprep.subr.mxu0 0.0
    %665 = vmatpush1.xpose.msra.mxu0 0.0
    %666 = vmatprep.subr.mxu0 0.0
    %667 = vmatpush1.xpose.msra.mxu0 0.0
    %668 = vmatprep.subr.mxu0 0.0
    %669 = vmatpush1.xpose.msra.mxu0 0.0
    %670 = vmatprep.subr.mxu0 0.0
    %671 = vmatpush1.xpose.msra.mxu0 0.0
    %672 = vmatprep.subr.mxu0 0.0
    %673 = vmatpush1.xpose.msra.mxu0 0.0
    %674 = vmatprep.subr.mxu0 0.0
    %675 = vmatpush1.xpose.msra.mxu0 0.0
    %676 = vmatprep.subr.mxu0 0.0
    %677 = vmatpush1.xpose.msra.mxu0 0.0
    %678 = vmatprep.subr.mxu0 0.0
    %679 = vmatpush1.xpose.msra.mxu0 0.0
    %680 = vmatprep.subr.mxu0 0.0
    %681 = vmatpush1.xpose.msra.mxu0 0.0
    %682 = vmatprep.subr.mxu0 0.0
    %683 = vmatpush1.xpose.msra.mxu0 0.0
    %684 = vmatprep.subr.mxu0 0.0
    %685 = vmatpush1.xpose.msra.mxu0 0.0
    %686 = vmatprep.subr.mxu0 0.0
    %687 = vmatpush1.xpose.msra.mxu0 0.0
    %688 = vmatprep.subr.mxu0 0.0
    %689 = vmatpush1.xpose.msra.mxu0 0.0
    %690 = vmatprep.subr.mxu0 0.0
    %691 = vmatpush1.xpose.msra.mxu0 0.0
    %692 = vmatprep.subr.mxu0 0.0
    %693 = vmatpush1.xpose.msra.mxu0 0.0
    %694 = vmatprep.mubr.f32.mxu0 0.0
    %695 = vmatmul.mubr.f32.gmra.mrb[0].mxu0 %v622
    %v696 = vpop.f32.mrb[0].mxu0
    %v697 = vadd.f32 %v120, %v696
    %v698 = vpop.f32.mrb[0].mxu0
    %699 = vmatprep.mubr.f32.mxu0 0.0
    %700 = vmatmul.mubr.f32.gmra.mrb[0].mxu0 %v624
    %v701 = vpop.f32.mrb[0].mxu0
    %v702 = vadd.f32 %v121, %v701
    %v703 = vpop.f32.mrb[0].mxu0
    %704 = vdwg.mxu0
    %v705 = vsel %vm304, %v697, -inf
    %706 = vmax.xlane.f32.xlu0 %v705
    %v707 = vpop.xlane.xlu0 %706
    %v708 = vsel %vm304, %v702, -inf
    %709 = vmax.xlane.f32.xlu0 %v708
    %v710 = vpop.xlane.xlu0 %709
    %v711 = vsub.f32 %v697, %v707
    %v712 = vsub.f32 %v702, %v710
    %v713 = vmul.f32 %v711, 1.442695
    %v714 = vpow.pop %v713
    %v715 = vmul.f32 %v712, 1.442695
    %v716 = vpow.pop %v715
    %v717 = vsel %vm304, %v714, 0.0
    %718 = vadd.xlane.f32.xlu0 %v717
    %v719 = vpop.xlane.xlu0 %718
    %v720 = vsel %vm304, %v716, 0.0
    %721 = vadd.xlane.f32.xlu0 %v720
    %v722 = vpop.xlane.xlu0 %721
    %v723 = vrcp.pop %v719
    %v724 = vrcp.pop %v722
    %v725 = vmul.f32 %v714, %v723
    %v726 = vmul.f32 %v716, %v724
    %727 = vrot.lane.b32.xlu0 %v206, 48
    %v728 = vpop.permute.xlu0 %727
    %729 = vrot.lane.b32.xlu0 %v211, 48
    %v730 = vpop.permute.xlu0 %729
    %v734 = vsel %vm304, %v725, 0
    %v737 = vsel %vm304, %v726, 0
    %739 = vmatprep.subr.mxu0 0.0
    %740 = vmatpush1.msra.mxu0 %v728
    %741 = vmatprep.subr.mxu0 0.0
    %742 = vmatpush1.msra.mxu0 %v730
    %743 = vmatprep.subr.mxu0 0.0
    %744 = vmatpush1.msra.mxu0 0.0
    %745 = vmatprep.subr.mxu0 0.0
    %746 = vmatpush1.msra.mxu0 0.0
    %747 = vmatprep.subr.mxu0 0.0
    %748 = vmatpush1.msra.mxu0 0.0
    %749 = vmatprep.subr.mxu0 0.0
    %750 = vmatpush1.msra.mxu0 0.0
    %751 = vmatprep.subr.mxu0 0.0
    %752 = vmatpush1.msra.mxu0 0.0
    %753 = vmatprep.subr.mxu0 0.0
    %754 = vmatpush1.msra.mxu0 0.0
    %755 = vmatprep.subr.mxu0 0.0
    %756 = vmatpush1.msra.mxu0 0.0
    %757 = vmatprep.subr.mxu0 0.0
    %758 = vmatpush1.msra.mxu0 0.0
    %759 = vmatprep.subr.mxu0 0.0
    %760 = vmatpush1.msra.mxu0 0.0
    %761 = vmatprep.subr.mxu0 0.0
    %762 = vmatpush1.msra.mxu0 0.0
    %763 = vmatprep.subr.mxu0 0.0
    %764 = vmatpush1.msra.mxu0 0.0
    %765 = vmatprep.subr.mxu0 0.0
    %766 = vmatpush1.msra.mxu0 0.0
    %767 = vmatprep.subr.mxu0 0.0
    %768 = vmatpush1.msra.mxu0 0.0
    %769 = vmatprep.subr.mxu0 0.0
    %770 = vmatpush1.msra.mxu0 0.0
    %771 = vmatprep.subr.mxu0 0.0
    %772 = vmatpush1.msra.mxu0 0.0
    %773 = vmatprep.subr.mxu0 0.0
    %774 = vmatpush1.msra.mxu0 0.0
    %775 = vmatprep.subr.mxu0 0.0
    %776 = vmatpush1.msra.mxu0 0.0
    %777 = vmatprep.subr.mxu0 0.0
    %778 = vmatpush1.msra.mxu0 0.0
    %779 = vmatprep.subr.mxu0 0.0
    %780 = vmatpush1.msra.mxu0 0.0
    %781 = vmatprep.subr.mxu0 0.0
    %782 = vmatpush1.msra.mxu0 0.0
    %783 = vmatprep.subr.mxu0 0.0
    %784 = vmatpush1.msra.mxu0 0.0
    %785 = vmatprep.subr.mxu0 0.0
    %786 = vmatpush1.msra.mxu0 0.0
    %787 = vmatprep.subr.mxu0 0.0
    %788 = vmatpush1.msra.mxu0 0.0
    %789 = vmatprep.subr.mxu0 0.0
    %790 = vmatpush1.msra.mxu0 0.0
    %791 = vmatprep.subr.mxu0 0.0
    %792 = vmatpush1.msra.mxu0 0.0
    %793 = vmatprep.subr.mxu0 0.0
    %794 = vmatpush1.msra.mxu0 0.0
    %795 = vmatprep.subr.mxu0 0.0
    %796 = vmatpush1.msra.mxu0 0.0
    %797 = vmatprep.subr.mxu0 0.0
    %798 = vmatpush1.msra.mxu0 0.0
    %799 = vmatprep.subr.mxu0 0.0
    %800 = vmatpush1.msra.mxu0 0.0
    %801 = vmatprep.subr.mxu0 0.0
    %802 = vmatpush1.msra.mxu0 0.0
    %803 = vmatprep.mubr.f32.mxu0 0.0
    %804 = vmatmul.mubr.f32.gmra.mrb[0].mxu0 %v734
    %v805 = vpop.f32.mrb[0].mxu0
    %v806 = vadd.f32 0.0, %v805
    %v807 = vpop.f32.mrb[0].mxu0
    %808 = vmatprep.mubr.f32.mxu0 0.0
    %809 = vmatmul.mubr.f32.gmra.mrb[0].mxu0 %v737
    %v810 = vpop.f32.mrb[0].mxu0
    %v811 = vadd.f32 0.0, %v810
    %v812 = vpop.f32.mrb[0].mxu0
    %813 = vdwg.mxu0
    %814 = vrot.lane.b32.xlu0 %v206, 104
    %v815 = vpop.permute.xlu0 %814
    %816 = vrot.lane.b32.xlu0 %v211, 104
    %v817 = vpop.permute.xlu0 %816
    %818 = vrot.lane.b32.xlu0 %v206, 72
    %v819 = vpop.permute.xlu0 %818
    %820 = vrot.lane.b32.xlu0 %v211, 72
    %v821 = vpop.permute.xlu0 %820
    %v822 = vsel %vm220, %v815, 0
    %v824 = vsel %vm220, %v817, 0
    %v826 = vsel %vm220, %v819, 0
    %v828 = vsel %vm220, %v821, 0
    %830 = vmatprep.subr.mxu0 0.0
    %831 = vmatpush1.xpose.msra.mxu0 %v826
    %832 = vmatprep.subr.mxu0 0.0
    %833 = vmatpush1.xpose.msra.mxu0 %v828
    %834 = vmatprep.subr.mxu0 0.0
    %835 = vmatpush1.xpose.msra.mxu0 0.0
    %836 = vmatprep.subr.mxu0 0.0
    %837 = vmatpush1.xpose.msra.mxu0 0.0
    %838 = vmatprep.subr.mxu0 0.0
    %839 = vmatpush1.xpose.msra.mxu0 0.0
    %840 = vmatprep.subr.mxu0 0.0
    %841 = vmatpush1.xpose.msra.mxu0 0.0
    %842 = vmatprep.subr.mxu0 0.0
    %843 = vmatpush1.xpose.msra.mxu0 0.0
    %844 = vmatprep.subr.mxu0 0.0
    %845 = vmatpush1.xpose.msra.mxu0 0.0
    %846 = vmatprep.subr.mxu0 0.0
    %847 = vmatpush1.xpose.msra.mxu0 0.0
    %848 = vmatprep.subr.mxu0 0.0
    %849 = vmatpush1.xpose.msra.mxu0 0.0
    %850 = vmatprep.subr.mxu0 0.0
    %851 = vmatpush1.xpose.msra.mxu0 0.0
    %852 = vmatprep.subr.mxu0 0.0
    %853 = vmatpush1.xpose.msra.mxu0 0.0
    %854 = vmatprep.subr.mxu0 0.0
    %855 = vmatpush1.xpose.msra.mxu0 0.0
    %856 = vmatprep.subr.mxu0 0.0
    %857 = vmatpush1.xpose.msra.mxu0 0.0
    %858 = vmatprep.subr.mxu0 0.0
    %859 = vmatpush1.xpose.msra.mxu0 0.0
    %860 = vmatprep.subr.mxu0 0.0
    %861 = vmatpush1.xpose.msra.mxu0 0.0
    %862 = vmatprep.subr.mxu0 0.0
    %863 = vmatpush1.xpose.msra.mxu0 0.0
    %864 = vmatprep.subr.mxu0 0.0
    %865 = vmatpush1.xpose.msra.mxu0 0.0
    %866 = vmatprep.subr.mxu0 0.0
    %867 = vmatpush1.xpose.msra.mxu0 0.0
    %868 = vmatprep.subr.mxu0 0.0
    %869 = vmatpush1.xpose.msra.mxu0 0.0
    %870 = vmatprep.subr.mxu0 0.0
    %871 = vmatpush1.xpose.msra.mxu0 0.0
    %872 = vmatprep.subr.mxu0 0.0
    %873 = vmatpush1.xpose.msra.mxu0 0.0
    %874 = vmatprep.subr.mxu0 0.0
    %875 = vmatpush1.xpose.msra.mxu0 0.0
    %876 = vmatprep.subr.mxu0 0.0
    %877 = vmatpush1.xpose.msra.mxu0 0.0
    %878 = vmatprep.subr.mxu0 0.0
    %879 = vmatpush1.xpose.msra.mxu0 0.0
    %880 = vmatprep.subr.mxu0 0.0
    %881 = vmatpush1.xpose.msra.mxu0 0.0
    %882 = vmatprep.subr.mxu0 0.0
    %883 = vmatpush1.xpose.msra.mxu0 0.0
    %884 = vmatprep.subr.mxu0 0.0
    %885 = vmatpush1.xpose.msra.mxu0 0.0
    %886 = vmatprep.subr.mxu0 0.0
    %887 = vmatpush1.xpose.msra.mxu0 0.0
    %888 = vmatprep.subr.mxu0 0.0
    %889 = vmatpush1.xpose.msra.mxu0 0.0
    %890 = vmatprep.subr.mxu0 0.0
    %891 = vmatpush1.xpose.msra.mxu0 0.0
    %892 = vmatprep.subr.mxu0 0.0
    %893 = vmatpush1.xpose.msra.mxu0 0.0
    %894 = vmatprep.mubr.f32.mxu0 0.0
    %895 = vmatmul.mubr.f32.gmra.mrb[0].mxu0 %v822
    %v896 = vpop.f32.mrb[0].mxu0
    %v897 = vadd.f32 %v120, %v896
    %v898 = vpop.f32.mrb[0].mxu0
    %899 = vmatprep.mubr.f32.mxu0 0.0
    %900 = vmatmul.mubr.f32.gmra.mrb[0].mxu0 %v824
    %v901 = vpop.f32.mrb[0].mxu0
    %v902 = vadd.f32 %v121, %v901
    %v903 = vpop.f32.mrb[0].mxu0
    %904 = vdwg.mxu0
    %v905 = vsel %vm304, %v897, -inf
    %906 = vmax.xlane.f32.xlu0 %v905
    %v907 = vpop.xlane.xlu0 %906
    %v908 = vsel %vm304, %v902, -inf
    %909 = vmax.xlane.f32.xlu0 %v908
    %v910 = vpop.xlane.xlu0 %909
    %v911 = vsub.f32 %v897, %v907
    %v912 = vsub.f32 %v902, %v910
    %v913 = vmul.f32 %v911, 1.442695
    %v914 = vpow.pop %v913
    %v915 = vmul.f32 %v912, 1.442695
    %v916 = vpow.pop %v915
    %v917 = vsel %vm304, %v914, 0.0
    %918 = vadd.xlane.f32.xlu0 %v917
    %v919 = vpop.xlane.xlu0 %918
    %v920 = vsel %vm304, %v916, 0.0
    %921 = vadd.xlane.f32.xlu0 %v920
    %v922 = vpop.xlane.xlu0 %921
    %v923 = vrcp.pop %v919
    %v924 = vrcp.pop %v922
    %v925 = vmul.f32 %v914, %v923
    %v926 = vmul.f32 %v916, %v924
    %927 = vrot.lane.b32.xlu0 %v206, 40
    %v928 = vpop.permute.xlu0 %927
    %929 = vrot.lane.b32.xlu0 %v211, 40
    %v930 = vpop.permute.xlu0 %929
    %v934 = vsel %vm304, %v925, 0
    %v937 = vsel %vm304, %v926, 0
    %939 = vmatprep.subr.mxu0 0.0
    %940 = vmatpush1.msra.mxu0 %v928
    %941 = vmatprep.subr.mxu0 0.0
    %942 = vmatpush1.msra.mxu0 %v930
    %943 = vmatprep.subr.mxu0 0.0
    %944 = vmatpush1.msra.mxu0 0.0
    %945 = vmatprep.subr.mxu0 0.0
    %946 = vmatpush1.msra.mxu0 0.0
    %947 = vmatprep.subr.mxu0 0.0
    %948 = vmatpush1.msra.mxu0 0.0
    %949 = vmatprep.subr.mxu0 0.0
    %950 = vmatpush1.msra.mxu0 0.0
    %951 = vmatprep.subr.mxu0 0.0
    %952 = vmatpush1.msra.mxu0 0.0
    %953 = vmatprep.subr.mxu0 0.0
    %954 = vmatpush1.msra.mxu0 0.0
    %955 = vmatprep.subr.mxu0 0.0
    %956 = vmatpush1.msra.mxu0 0.0
    %957 = vmatprep.subr.mxu0 0.0
    %958 = vmatpush1.msra.mxu0 0.0
    %959 = vmatprep.subr.mxu0 0.0
    %960 = vmatpush1.msra.mxu0 0.0
    %961 = vmatprep.subr.mxu0 0.0
    %962 = vmatpush1.msra.mxu0 0.0
    %963 = vmatprep.subr.mxu0 0.0
    %964 = vmatpush1.msra.mxu0 0.0
    %965 = vmatprep.subr.mxu0 0.0
    %966 = vmatpush1.msra.mxu0 0.0
    %967 = vmatprep.subr.mxu0 0.0
    %968 = vmatpush1.msra.mxu0 0.0
    %969 = vmatprep.subr.mxu0 0.0
    %970 = vmatpush1.msra.mxu0 0.0
    %971 = vmatprep.subr.mxu0 0.0
    %972 = vmatpush1.msra.mxu0 0.0
    %973 = vmatprep.subr.mxu0 0.0
    %974 = vmatpush1.msra.mxu0 0.0
    %975 = vmatprep.subr.mxu0 0.0
    %976 = vmatpush1.msra.mxu0 0.0
    %977 = vmatprep.subr.mxu0 0.0
    %978 = vmatpush1.msra.mxu0 0.0
    %979 = vmatprep.subr.mxu0 0.0
    %980 = vmatpush1.msra.mxu0 0.0
    %981 = vmatprep.subr.mxu0 0.0
    %982 = vmatpush1.msra.mxu0 0.0
    %983 = vmatprep.subr.mxu0 0.0
    %984 = vmatpush1.msra.mxu0 0.0
    %985 = vmatprep.subr.mxu0 0.0
    %986 = vmatpush1.msra.mxu0 0.0
    %987 = vmatprep.subr.mxu0 0.0
    %988 = vmatpush1.msra.mxu0 0.0
    %989 = vmatprep.subr.mxu0 0.0
    %990 = vmatpush1.msra.mxu0 0.0
    %991 = vmatprep.subr.mxu0 0.0
    %992 = vmatpush1.msra.mxu0 0.0
    %993 = vmatprep.subr.mxu0 0.0
    %994 = vmatpush1.msra.mxu0 0.0
    %995 = vmatprep.subr.mxu0 0.0
    %996 = vmatpush1.msra.mxu0 0.0
    %997 = vmatprep.subr.mxu0 0.0
    %998 = vmatpush1.msra.mxu0 0.0
    %999 = vmatprep.subr.mxu0 0.0
    %1000 = vmatpush1.msra.mxu0 0.0
    %1001 = vmatprep.subr.mxu0 0.0
    %1002 = vmatpush1.msra.mxu0 0.0
    %1003 = vmatprep.mubr.f32.mxu0 0.0
    %1004 = vmatmul.mubr.f32.gmra.mrb[0].mxu0 %v934
    %v1005 = vpop.f32.mrb[0].mxu0
    %v1006 = vadd.f32 0.0, %v1005
    %v1007 = vpop.f32.mrb[0].mxu0
    %1008 = vmatprep.mubr.f32.mxu0 0.0
    %1009 = vmatmul.mubr.f32.gmra.mrb[0].mxu0 %v937
    %v1010 = vpop.f32.mrb[0].mxu0
    %v1011 = vadd.f32 0.0, %v1010
    %v1012 = vpop.f32.mrb[0].mxu0
    %1013 = vdwg.mxu0
    %1016 = vrot.lane.b32.xlu0 %v606, 8
    %v1017 = vpop.permute.xlu0 %1016
    %1018 = vrot.lane.b32.xlu0 %v611, 8
    %v1019 = vpop.permute.xlu0 %1018
    %1024 = vrot.lane.b32.xlu0 %v806, 16
    %v1025 = vpop.permute.xlu0 %1024
    %1026 = vrot.lane.b32.xlu0 %v811, 16
    %v1027 = vpop.permute.xlu0 %1026
    %1032 = vrot.lane.b32.xlu0 %v1006, 24
    %v1033 = vpop.permute.xlu0 %1032
    %1034 = vrot.lane.b32.xlu0 %v1011, 24
    %v1035 = vpop.permute.xlu0 %1034
    %v1038 = vsel %vm220, %v406, %v1017
    %v1039 = vsel %vm220, %v411, %v1019
    %v1040 = vsel %vm304, %v1038, %v1025
    %v1041 = vsel %vm304, %v1039, %v1027
    %vm1042 = vcmask 195584
    %v1043 = vsel %vm1042, %v1040, %v1033
    %v1044 = vsel %vm1042, %v1041, %v1035
    %v1045 = vld [vmem:[%s6] sm:$0xff]
    %v1046 = vld [vmem:[%s6 + $0x8] sm:$0xff]
    %v1047 = vld [vmem:[%s6 + $0x10] sm:$0xff]
    %v1048 = vld [vmem:[%s6 + $0x18] sm:$0xff]
    %v1049 = vld [vmem:[%s7] sm:$0x1]
    %v1051 = vlaneseq
    %v1052 = vshrl.u32 %v1051, 7
    %v1053 = vsub.s32 0, %v1052
    %v1054 = vrot.slane %v1049, %v1053
    %v1057 = vsel %vm76, %v1043, 0
    %v1060 = vsel %vm76, %v1044, 0
    %1062 = vmatprep.subr.mxu0 0.0
    %1063 = vmatpush1.msra.mxu0 %v1045
    %1064 = vmatprep.subr.mxu0 0.0
    %1065 = vmatpush1.msra.mxu0 %v1046
    %1066 = vmatprep.subr.mxu0 0.0
    %1067 = vmatpush1.msra.mxu0 %v1047
    %1068 = vmatprep.subr.mxu0 0.0
    %1069 = vmatpush1.msra.mxu0 %v1048
    %1070 = vmatprep.subr.mxu0 0.0
    %1071 = vmatpush1.msra.mxu0 0.0
    %1072 = vmatprep.subr.mxu0 0.0
    %1073 = vmatpush1.msra.mxu0 0.0
    %1074 = vmatprep.subr.mxu0 0.0
    %1075 = vmatpush1.msra.mxu0 0.0
    %1076 = vmatprep.subr.mxu0 0.0
    %1077 = vmatpush1.msra.mxu0 0.0
    %1078 = vmatprep.subr.mxu0 0.0
    %1079 = vmatpush1.msra.mxu0 0.0
    %1080 = vmatprep.subr.mxu0 0.0
    %1081 = vmatpush1.msra.mxu0 0.0
    %1082 = vmatprep.subr.mxu0 0.0
    %1083 = vmatpush1.msra.mxu0 0.0
    %1084 = vmatprep.subr.mxu0 0.0
    %1085 = vmatpush1.msra.mxu0 0.0
    %1086 = vmatprep.subr.mxu0 0.0
    %1087 = vmatpush1.msra.mxu0 0.0
    %1088 = vmatprep.subr.mxu0 0.0
    %1089 = vmatpush1.msra.mxu0 0.0
    %1090 = vmatprep.subr.mxu0 0.0
    %1091 = vmatpush1.msra.mxu0 0.0
    %1092 = vmatprep.subr.mxu0 0.0
    %1093 = vmatpush1.msra.mxu0 0.0
    %1094 = vmatprep.subr.mxu0 0.0
    %1095 = vmatpush1.msra.mxu0 0.0
    %1096 = vmatprep.subr.mxu0 0.0
    %1097 = vmatpush1.msra.mxu0 0.0
    %1098 = vmatprep.subr.mxu0 0.0
    %1099 = vmatpush1.msra.mxu0 0.0
    %1100 = vmatprep.subr.mxu0 0.0
    %1101 = vmatpush1.msra.mxu0 0.0
    %1102 = vmatprep.subr.mxu0 0.0
    %1103 = vmatpush1.msra.mxu0 0.0
    %1104 = vmatprep.subr.mxu0 0.0
    %1105 = vmatpush1.msra.mxu0 0.0
    %1106 = vmatprep.subr.mxu0 0.0
    %1107 = vmatpush1.msra.mxu0 0.0
    %1108 = vmatprep.subr.mxu0 0.0
    %1109 = vmatpush1.msra.mxu0 0.0
    %1110 = vmatprep.subr.mxu0 0.0
    %1111 = vmatpush1.msra.mxu0 0.0
    %1112 = vmatprep.subr.mxu0 0.0
    %1113 = vmatpush1.msra.mxu0 0.0
    %1114 = vmatprep.subr.mxu0 0.0
    %1115 = vmatpush1.msra.mxu0 0.0
    %1116 = vmatprep.subr.mxu0 0.0
    %1117 = vmatpush1.msra.mxu0 0.0
    %1118 = vmatprep.subr.mxu0 0.0
    %1119 = vmatpush1.msra.mxu0 0.0
    %1120 = vmatprep.subr.mxu0 0.0
    %1121 = vmatpush1.msra.mxu0 0.0
    %1122 = vmatprep.subr.mxu0 0.0
    %1123 = vmatpush1.msra.mxu0 0.0
    %1124 = vmatprep.subr.mxu0 0.0
    %1125 = vmatpush1.msra.mxu0 0.0
    %1126 = vmatprep.mubr.f32.mxu0 0.0
    %1127 = vmatmul.mubr.f32.gmra.mrb[0].mxu0 %v1057
    %v1128 = vpop.f32.mrb[0].mxu0
    %v1129 = vadd.f32 %v1054, %v1128
    %v1130 = vpop.f32.mrb[0].mxu0
    %1131 = vmatprep.mubr.f32.mxu0 0.0
    %1132 = vmatmul.mubr.f32.gmra.mrb[0].mxu0 %v1060
    %v1133 = vpop.f32.mrb[0].mxu0
    %v1134 = vadd.f32 %v1054, %v1133
    %v1135 = vpop.f32.mrb[0].mxu0
    %1136 = vdwg.mxu0
    %v1137 = vadd.f32 %v118, %v1129
    %v1138 = vadd.f32 %v119, %v1134
    %v1139 = vld [vmem:[%s8] sm:$0x1]
    %v1140 = vld [vmem:[%s9] sm:$0x1]
    %v1141 = vsel %vm76, %v1137, 0.0
    %1142 = vadd.xlane.f32.xlu0 %v1141
    %v1143 = vpop.xlane.xlu0 %1142
    %v1144 = vsel %vm76, %v1138, 0.0
    %1145 = vadd.xlane.f32.xlu0 %v1144
    %v1146 = vpop.xlane.xlu0 %1145
    %v1147 = vmul.f32 %v1143, %v83
    %v1148 = vmul.f32 %v1146, %v83
    %v1149 = vsub.f32 %v1137, %v1147
    %v1150 = vsub.f32 %v1138, %v1148
    %v1151 = vmul.f32 %v1149, %v1149
    %v1152 = vmul.f32 %v1150, %v1150
    %v1153 = vsel %vm76, %v1151, 0.0
    %1154 = vadd.xlane.f32.xlu0 %v1153
    %v1155 = vpop.xlane.xlu0 %1154
    %v1156 = vsel %vm76, %v1152, 0.0
    %1157 = vadd.xlane.f32.xlu0 %v1156
    %v1158 = vpop.xlane.xlu0 %1157
    %v1159 = vmul.f32 %v1155, %v83
    %v1160 = vmul.f32 %v1158, %v83
    %v1161 = vadd.f32 %v1159, 1e-12
    %v1162 = vadd.f32 %v1160, 1e-12
    %v1163 = vrsqrt.pop %v1161
    %v1164 = vrsqrt.pop %v1162
    %v1165 = vmul.f32 %v1149, %v1163
    %v1166 = vmul.f32 %v1150, %v1164
    %v1168 = vlaneseq
    %v1169 = vshrl.u32 %v1168, 7
    %v1170 = vsub.s32 0, %v1169
    %v1171 = vrot.slane %v1139, %v1170
    %v1173 = vmul.f32 %v1165, %v1171
    %v1174 = vmul.f32 %v1166, %v1171
    %v1176 = vlaneseq
    %v1177 = vshrl.u32 %v1176, 7
    %v1178 = vsub.s32 0, %v1177
    %v1179 = vrot.slane %v1140, %v1178
    %v1181 = vadd.f32 %v1173, %v1179
    %v1182 = vadd.f32 %v1174, %v1179
    %v1183 = vld [vmem:[%s10] sm:$0xff]
    %v1184 = vld [vmem:[%s10 + $0x8] sm:$0xff]
    %v1185 = vld [vmem:[%s10 + $0x10] sm:$0xff]
    %v1186 = vld [vmem:[%s10 + $0x18] sm:$0xff]
    %v1187 = vld [vmem:[%s11] sm:$0x1]
    %v1189 = vlaneseq
    %v1190 = vshrl.u32 %v1189, 7
    %v1191 = vsub.s32 0, %v1190
    %v1192 = vrot.slane %v1187, %v1191
    %v1195 = vsel %vm76, %v1181, 0
    %v1198 = vsel %vm76, %v1182, 0
    %1200 = vmatprep.subr.mxu0 0.0
    %1201 = vmatpush1.msra.mxu0 %v1183
    %1202 = vmatprep.subr.mxu0 0.0
    %1203 = vmatpush1.msra.mxu0 %v1184
    %1204 = vmatprep.subr.mxu0 0.0
    %1205 = vmatpush1.msra.mxu0 %v1185
    %1206 = vmatprep.subr.mxu0 0.0
    %1207 = vmatpush1.msra.mxu0 %v1186
    %1208 = vmatprep.subr.mxu0 0.0
    %1209 = vmatpush1.msra.mxu0 0.0
    %1210 = vmatprep.subr.mxu0 0.0
    %1211 = vmatpush1.msra.mxu0 0.0
    %1212 = vmatprep.subr.mxu0 0.0
    %1213 = vmatpush1.msra.mxu0 0.0
    %1214 = vmatprep.subr.mxu0 0.0
    %1215 = vmatpush1.msra.mxu0 0.0
    %1216 = vmatprep.subr.mxu0 0.0
    %1217 = vmatpush1.msra.mxu0 0.0
    %1218 = vmatprep.subr.mxu0 0.0
    %1219 = vmatpush1.msra.mxu0 0.0
    %1220 = vmatprep.subr.mxu0 0.0
    %1221 = vmatpush1.msra.mxu0 0.0
    %1222 = vmatprep.subr.mxu0 0.0
    %1223 = vmatpush1.msra.mxu0 0.0
    %1224 = vmatprep.subr.mxu0 0.0
    %1225 = vmatpush1.msra.mxu0 0.0
    %1226 = vmatprep.subr.mxu0 0.0
    %1227 = vmatpush1.msra.mxu0 0.0
    %1228 = vmatprep.subr.mxu0 0.0
    %1229 = vmatpush1.msra.mxu0 0.0
    %1230 = vmatprep.subr.mxu0 0.0
    %1231 = vmatpush1.msra.mxu0 0.0
    %1232 = vmatprep.subr.mxu0 0.0
    %1233 = vmatpush1.msra.mxu0 0.0
    %1234 = vmatprep.subr.mxu0 0.0
    %1235 = vmatpush1.msra.mxu0 0.0
    %1236 = vmatprep.subr.mxu0 0.0
    %1237 = vmatpush1.msra.mxu0 0.0
    %1238 = vmatprep.subr.mxu0 0.0
    %1239 = vmatpush1.msra.mxu0 0.0
    %1240 = vmatprep.subr.mxu0 0.0
    %1241 = vmatpush1.msra.mxu0 0.0
    %1242 = vmatprep.subr.mxu0 0.0
    %1243 = vmatpush1.msra.mxu0 0.0
    %1244 = vmatprep.subr.mxu0 0.0
    %1245 = vmatpush1.msra.mxu0 0.0
    %1246 = vmatprep.subr.mxu0 0.0
    %1247 = vmatpush1.msra.mxu0 0.0
    %1248 = vmatprep.subr.mxu0 0.0
    %1249 = vmatpush1.msra.mxu0 0.0
    %1250 = vmatprep.subr.mxu0 0.0
    %1251 = vmatpush1.msra.mxu0 0.0
    %1252 = vmatprep.subr.mxu0 0.0
    %1253 = vmatpush1.msra.mxu0 0.0
    %1254 = vmatprep.subr.mxu0 0.0
    %1255 = vmatpush1.msra.mxu0 0.0
    %1256 = vmatprep.subr.mxu0 0.0
    %1257 = vmatpush1.msra.mxu0 0.0
    %1258 = vmatprep.subr.mxu0 0.0
    %1259 = vmatpush1.msra.mxu0 0.0
    %1260 = vmatprep.subr.mxu0 0.0
    %1261 = vmatpush1.msra.mxu0 0.0
    %1262 = vmatprep.subr.mxu0 0.0
    %1263 = vmatpush1.msra.mxu0 0.0
    %1264 = vmatprep.mubr.f32.mxu0 0.0
    %1265 = vmatmul.mubr.f32.gmra.mrb[0].mxu0 %v1195
    %v1266 = vpop.f32.mrb[0].mxu0
    %v1267 = vadd.f32 %v1192, %v1266
    %v1268 = vpop.f32.mrb[0].mxu0
    %1269 = vmatprep.mubr.f32.mxu0 0.0
    %1270 = vmatmul.mubr.f32.gmra.mrb[0].mxu0 %v1198
    %v1271 = vpop.f32.mrb[0].mxu0
    %v1272 = vadd.f32 %v1192, %v1271
    %v1273 = vpop.f32.mrb[0].mxu0
    %1274 = vdwg.mxu0
    %v1275 = vmul.f32 %v1267, %v1267
    %v1276 = vmul.f32 %v1272, %v1272
    %v1277 = vmul.f32 %v1267, %v1275
    %v1278 = vmul.f32 %v1272, %v1276
    %v1279 = vmul.f32 %v1277, 0.044715
    %v1280 = vmul.f32 %v1278, 0.044715
    %v1281 = vadd.f32 %v1267, %v1279
    %v1282 = vadd.f32 %v1272, %v1280
    %v1283 = vmul.f32 %v1281, 0.7978846
    %v1284 = vmul.f32 %v1282, 0.7978846
    %v1285 = vtanh.pop %v1283
    %v1286 = vtanh.pop %v1284
    %v1287 = vadd.f32 %v1285, 1.0
    %v1288 = vadd.f32 %v1286, 1.0
    %v1289 = vmul.f32 %v1287, 0.5
    %v1290 = vmul.f32 %v1288, 0.5
    %v1291 = vmul.f32 %v1267, %v1289
    %v1292 = vmul.f32 %v1272, %v1290
    %v1293 = vld [vmem:[%s12] sm:$0xff]
    %v1294 = vld [vmem:[%s12 + $0x8] sm:$0xff]
    %v1295 = vld [vmem:[%s12 + $0x10] sm:$0xff]
    %v1296 = vld [vmem:[%s12 + $0x18] sm:$0xff]
    %v1297 = vld [vmem:[%s12 + $0x20] sm:$0xff]
    %v1298 = vld [vmem:[%s12 + $0x28] sm:$0xff]
    %v1299 = vld [vmem:[%s12 + $0x30] sm:$0xff]
    %v1300 = vld [vmem:[%s12 + $0x38] sm:$0xff]
    %v1301 = vld [vmem:[%s13] sm:$0x1]
    %v1303 = vlaneseq
    %v1304 = vshrl.u32 %v1303, 7
    %v1305 = vsub.s32 0, %v1304
    %v1306 = vrot.slane %v1301, %v1305
    %vm1308 = vcmask 523264
    %v1310 = vsel %vm1308, %v1291, 0
    %v1313 = vsel %vm1308, %v1292, 0
    %1315 = vmatprep.subr.mxu0 0.0
    %1316 = vmatpush1.msra.mxu0 %v1293
    %1317 = vmatprep.subr.mxu0 0.0
    %1318 = vmatpush1.msra.mxu0 %v1294
    %1319 = vmatprep.subr.mxu0 0.0
    %1320 = vmatpush1.msra.mxu0 %v1295
    %1321 = vmatprep.subr.mxu0 0.0
    %1322 = vmatpush1.msra.mxu0 %v1296
    %1323 = vmatprep.subr.mxu0 0.0
    %1324 = vmatpush1.msra.mxu0 %v1297
    %1325 = vmatprep.subr.mxu0 0.0
    %1326 = vmatpush1.msra.mxu0 %v1298
    %1327 = vmatprep.subr.mxu0 0.0
    %1328 = vmatpush1.msra.mxu0 %v1299
    %1329 = vmatprep.subr.mxu0 0.0
    %1330 = vmatpush1.msra.mxu0 %v1300
    %1331 = vmatprep.subr.mxu0 0.0
    %1332 = vmatpush1.msra.mxu0 0.0
    %1333 = vmatprep.subr.mxu0 0.0
    %1334 = vmatpush1.msra.mxu0 0.0
    %1335 = vmatprep.subr.mxu0 0.0
    %1336 = vmatpush1.msra.mxu0 0.0
    %1337 = vmatprep.subr.mxu0 0.0
    %1338 = vmatpush1.msra.mxu0 0.0
    %1339 = vmatprep.subr.mxu0 0.0
    %1340 = vmatpush1.msra.mxu0 0.0
    %1341 = vmatprep.subr.mxu0 0.0
    %1342 = vmatpush1.msra.mxu0 0.0
    %1343 = vmatprep.subr.mxu0 0.0
    %1344 = vmatpush1.msra.mxu0 0.0
    %1345 = vmatprep.subr.mxu0 0.0
    %1346 = vmatpush1.msra.mxu0 0.0
    %1347 = vmatprep.subr.mxu0 0.0
    %1348 = vmatpush1.msra.mxu0 0.0
    %1349 = vmatprep.subr.mxu0 0.0
    %1350 = vmatpush1.msra.mxu0 0.0
    %1351 = vmatprep.subr.mxu0 0.0
    %1352 = vmatpush1.msra.mxu0 0.0
    %1353 = vmatprep.subr.mxu0 0.0
    %1354 = vmatpush1.msra.mxu0 0.0
    %1355 = vmatprep.subr.mxu0 0.0
    %1356 = vmatpush1.msra.mxu0 0.0
    %1357 = vmatprep.subr.mxu0 0.0
    %1358 = vmatpush1.msra.mxu0 0.0
    %1359 = vmatprep.subr.mxu0 0.0
    %1360 = vmatpush1.msra.mxu0 0.0
    %1361 = vmatprep.subr.mxu0 0.0
    %1362 = vmatpush1.msra.mxu0 0.0
    %1363 = vmatprep.subr.mxu0 0.0
    %1364 = vmatpush1.msra.mxu0 0.0
    %1365 = vmatprep.subr.mxu0 0.0
    %1366 = vmatpush1.msra.mxu0 0.0
    %1367 = vmatprep.subr.mxu0 0.0
    %1368 = vmatpush1.msra.mxu0 0.0
    %1369 = vmatprep.subr.mxu0 0.0
    %1370 = vmatpush1.msra.mxu0 0.0
    %1371 = vmatprep.subr.mxu0 0.0
    %1372 = vmatpush1.msra.mxu0 0.0
    %1373 = vmatprep.subr.mxu0 0.0
    %1374 = vmatpush1.msra.mxu0 0.0
    %1375 = vmatprep.subr.mxu0 0.0
    %1376 = vmatpush1.msra.mxu0 0.0
    %1377 = vmatprep.subr.mxu0 0.0
    %1378 = vmatpush1.msra.mxu0 0.0
    %1379 = vmatprep.mubr.f32.mxu0 0.0
    %1380 = vmatmul.mubr.f32.gmra.mrb[0].mxu0 %v1310
    %v1381 = vpop.f32.mrb[0].mxu0
    %v1382 = vadd.f32 %v1306, %v1381
    %v1383 = vpop.f32.mrb[0].mxu0
    %1384 = vmatprep.mubr.f32.mxu0 0.0
    %1385 = vmatmul.mubr.f32.gmra.mrb[0].mxu0 %v1313
    %v1386 = vpop.f32.mrb[0].mxu0
    %v1387 = vadd.f32 %v1306, %v1386
    %v1388 = vpop.f32.mrb[0].mxu0
    %1389 = vdwg.mxu0
    %v1390 = vadd.f32 %v1181, %v1382
    %v1391 = vadd.f32 %v1182, %v1387
    %v1392 = vld [vmem:[%s14] sm:$0x1]
    %v1393 = vld [vmem:[%s15] sm:$0x1]
    %v1394 = vsel %vm76, %v1390, 0.0
    %1395 = vadd.xlane.f32.xlu0 %v1394
    %v1396 = vpop.xlane.xlu0 %1395
    %v1397 = vsel %vm76, %v1391, 0.0
    %1398 = vadd.xlane.f32.xlu0 %v1397
    %v1399 = vpop.xlane.xlu0 %1398
    %v1400 = vmul.f32 %v1396, %v83
    %v1401 = vmul.f32 %v1399, %v83
    %v1402 = vsub.f32 %v1390, %v1400
    %v1403 = vsub.f32 %v1391, %v1401
    %v1404 = vmul.f32 %v1402, %v1402
    %v1405 = vmul.f32 %v1403, %v1403
    %v1406 = vsel %vm76, %v1404, 0.0
    %1407 = vadd.xlane.f32.xlu0 %v1406
    %v1408 = vpop.xlane.xlu0 %1407
    %v1409 = vsel %vm76, %v1405, 0.0
    %1410 = vadd.xlane.f32.xlu0 %v1409
    %v1411 = vpop.xlane.xlu0 %1410
    %v1412 = vmul.f32 %v1408, %v83
    %v1413 = vmul.f32 %v1411, %v83
    %v1414 = vadd.f32 %v1412, 1e-12
    %v1415 = vadd.f32 %v1413, 1e-12
    %v1416 = vrsqrt.pop %v1414
    %v1417 = vrsqrt.pop %v1415
    %v1418 = vmul.f32 %v1402, %v1416
    %v1419 = vmul.f32 %v1403, %v1417
    %v1421 = vlaneseq
    %v1422 = vshrl.u32 %v1421, 7
    %v1423 = vsub.s32 0, %v1422
    %v1424 = vrot.slane %v1392, %v1423
    %v1426 = vmul.f32 %v1418, %v1424
    %v1427 = vmul.f32 %v1419, %v1424
    %v1429 = vlaneseq
    %v1430 = vshrl.u32 %v1429, 7
    %v1431 = vsub.s32 0, %v1430
    %v1432 = vrot.slane %v1393, %v1431
    %v1434 = vadd.f32 %v1426, %v1432
    %v1435 = vadd.f32 %v1427, %v1432
    %s1436 = scalar_lea.vmem %s4, 32
    %v1437 = vld [vmem:[%s1436] sm:$0xff]
    %v1438 = vld [vmem:[%s1436 + $0x8] sm:$0xff]
    %v1439 = vld [vmem:[%s1436 + $0x10] sm:$0xff]
    %v1440 = vld [vmem:[%s1436 + $0x18] sm:$0xff]
    %s1441 = scalar_lea.vmem %s5, 1
    %v1442 = vld [vmem:[%s1441] sm:$0x1]
    %v1444 = vlaneseq
    %v1445 = vshrl.u32 %v1444, 7
    %v1446 = vsub.s32 0, %v1445
    %v1447 = vrot.slane %v1442, %v1446
    %v1450 = vsel %vm76, %v1434, 0
    %v1453 = vsel %vm76, %v1435, 0
    %1455 = vmatprep.subr.mxu0 0.0
    %1456 = vmatpush1.msra.mxu0 %v1437
    %1457 = vmatprep.subr.mxu0 0.0
    %1458 = vmatpush1.msra.mxu0 %v1438
    %1459 = vmatprep.subr.mxu0 0.0
    %1460 = vmatpush1.msra.mxu0 %v1439
    %1461 = vmatprep.subr.mxu0 0.0
    %1462 = vmatpush1.msra.mxu0 %v1440
    %1463 = vmatprep.subr.mxu0 0.0
    %1464 = vmatpush1.msra.mxu0 0.0
    %1465 = vmatprep.subr.mxu0 0.0
    %1466 = vmatpush1.msra.mxu0 0.0
    %1467 = vmatprep.subr.mxu0 0.0
    %1468 = vmatpush1.msra.mxu0 0.0
    %1469 = vmatprep.subr.mxu0 0.0
    %1470 = vmatpush1.msra.mxu0 0.0
    %1471 = vmatprep.subr.mxu0 0.0
    %1472 = vmatpush1.msra.mxu0 0.0
    %1473 = vmatprep.subr.mxu0 0.0
    %1474 = vmatpush1.msra.mxu0 0.0
    %1475 = vmatprep.subr.mxu0 0.0
    %1476 = vmatpush1.msra.mxu0 0.0
    %1477 = vmatprep.subr.mxu0 0.0
    %1478 = vmatpush1.msra.mxu0 0.0
    %1479 = vmatprep.subr.mxu0 0.0
    %1480 = vmatpush1.msra.mxu0 0.0
    %1481 = vmatprep.subr.mxu0 0.0
    %1482 = vmatpush1.msra.mxu0 0.0
    %1483 = vmatprep.subr.mxu0 0.0
    %1484 = vmatpush1.msra.mxu0 0.0
    %1485 = vmatprep.subr.mxu0 0.0
    %1486 = vmatpush1.msra.mxu0 0.0
    %1487 = vmatprep.subr.mxu0 0.0
    %1488 = vmatpush1.msra.mxu0 0.0
    %1489 = vmatprep.subr.mxu0 0.0
    %1490 = vmatpush1.msra.mxu0 0.0
    %1491 = vmatprep.subr.mxu0 0.0
    %1492 = vmatpush1.msra.mxu0 0.0
    %1493 = vmatprep.subr.mxu0 0.0
    %1494 = vmatpush1.msra.mxu0 0.0
    %1495 = vmatprep.subr.mxu0 0.0
    %1496 = vmatpush1.msra.mxu0 0.0
    %1497 = vmatprep.subr.mxu0 0.0
    %1498 = vmatpush1.msra.mxu0 0.0
    %1499 = vmatprep.subr.mxu0 0.0
    %1500 = vmatpush1.msra.mxu0 0.0
    %1501 = vmatprep.subr.mxu0 0.0
    %1502 = vmatpush1.msra.mxu0 0.0
    %1503 = vmatprep.subr.mxu0 0.0
    %1504 = vmatpush1.msra.mxu0 0.0
    %1505 = vmatprep.subr.mxu0 0.0
    %1506 = vmatpush1.msra.mxu0 0.0
    %1507 = vmatprep.subr.mxu0 0.0
    %1508 = vmatpush1.msra.mxu0 0.0
    %1509 = vmatprep.subr.mxu0 0.0
    %1510 = vmatpush1.msra.mxu0 0.0
    %1511 = vmatprep.subr.mxu0 0.0
    %1512 = vmatpush1.msra.mxu0 0.0
    %1513 = vmatprep.subr.mxu0 0.0
    %1514 = vmatpush1.msra.mxu0 0.0
    %1515 = vmatprep.subr.mxu0 0.0
    %1516 = vmatpush1.msra.mxu0 0.0
    %1517 = vmatprep.subr.mxu0 0.0
    %1518 = vmatpush1.msra.mxu0 0.0
    %1519 = vmatprep.mubr.f32.mxu0 0.0
    %1520 = vmatmul.mubr.f32.gmra.mrb[0].mxu0 %v1450
    %v1521 = vpop.f32.mrb[0].mxu0
    %v1522 = vadd.f32 %v1447, %v1521
    %v1523 = vpop.f32.mrb[0].mxu0
    %1524 = vmatprep.mubr.f32.mxu0 0.0
    %1525 = vmatmul.mubr.f32.gmra.mrb[0].mxu0 %v1453
    %v1526 = vpop.f32.mrb[0].mxu0
    %v1527 = vadd.f32 %v1447, %v1526
    %v1528 = vpop.f32.mrb[0].mxu0
    %1529 = vdwg.mxu0
    %1532 = vrot.lane.b32.xlu0 %v1522, 96
    %v1533 = vpop.permute.xlu0 %1532
    %1534 = vrot.lane.b32.xlu0 %v1527, 96
    %v1535 = vpop.permute.xlu0 %1534
    %v1536 = vsel %vm220, %v1522, 0
    %v1538 = vsel %vm220, %v1527, 0
    %v1540 = vsel %vm220, %v1533, 0
    %v1542 = vsel %vm220, %v1535, 0
    %1544 = vmatprep.subr.mxu0 0.0
    %1545 = vmatpush1.xpose.msra.mxu0 %v1540
    %1546 = vmatprep.subr.mxu0 0.0
    %1547 = vmatpush1.xpose.msra.mxu0 %v1542
    %1548 = vmatprep.subr.mxu0 0.0
    %1549 = vmatpush1.xpose.msra.mxu0 0.0
    %1550 = vmatprep.subr.mxu0 0.0
    %1551 = vmatpush1.xpose.msra.mxu0 0.0
    %1552 = vmatprep.subr.mxu0 0.0
    %1553 = vmatpush1.xpose.msra.mxu0 0.0
    %1554 = vmatprep.subr.mxu0 0.0
    %1555 = vmatpush1.xpose.msra.mxu0 0.0
    %1556 = vmatprep.subr.mxu0 0.0
    %1557 = vmatpush1.xpose.msra.mxu0 0.0
    %1558 = vmatprep.subr.mxu0 0.0
    %1559 = vmatpush1.xpose.msra.mxu0 0.0
    %1560 = vmatprep.subr.mxu0 0.0
    %1561 = vmatpush1.xpose.msra.mxu0 0.0
    %1562 = vmatprep.subr.mxu0 0.0
    %1563 = vmatpush1.xpose.msra.mxu0 0.0
    %1564 = vmatprep.subr.mxu0 0.0
    %1565 = vmatpush1.xpose.msra.mxu0 0.0
    %1566 = vmatprep.subr.mxu0 0.0
    %1567 = vmatpush1.xpose.msra.mxu0 0.0
    %1568 = vmatprep.subr.mxu0 0.0
    %1569 = vmatpush1.xpose.msra.mxu0 0.0
    %1570 = vmatprep.subr.mxu0 0.0
    %1571 = vmatpush1.xpose.msra.mxu0 0.0
    %1572 = vmatprep.subr.mxu0 0.0
    %1573 = vmatpush1.xpose.msra.mxu0 0.0
    %1574 = vmatprep.subr.mxu0 0.0
    %1575 = vmatpush1.xpose.msra.mxu0 0.0
    %1576 = vmatprep.subr.mxu0 0.0
    %1577 = vmatpush1.xpose.msra.mxu0 0.0
    %1578 = vmatprep.subr.mxu0 0.0
    %1579 = vmatpush1.xpose.msra.mxu0 0.0
    %1580 = vmatprep.subr.mxu0 0.0
    %1581 = vmatpush1.xpose.msra.mxu0 0.0
    %1582 = vmatprep.subr.mxu0 0.0
    %1583 = vmatpush1.xpose.msra.mxu0 0.0
    %1584 = vmatprep.subr.mxu0 0.0
    %1585 = vmatpush1.xpose.msra.mxu0 0.0
    %1586 = vmatprep.subr.mxu0 0.0
    %1587 = vmatpush1.xpose.msra.mxu0 0.0
    %1588 = vmatprep.subr.mxu0 0.0
    %1589 = vmatpush1.xpose.msra.mxu0 0.0
    %1590 = vmatprep.subr.mxu0 0.0
    %1591 = vmatpush1.xpose.msra.mxu0 0.0
    %1592 = vmatprep.subr.mxu0 0.0
    %1593 = vmatpush1.xpose.msra.mxu0 0.0
    %1594 = vmatprep.subr.mxu0 0.0
    %1595 = vmatpush1.xpose.msra.mxu0 0.0
    %1596 = vmatprep.subr.mxu0 0.0
    %1597 = vmatpush1.xpose.msra.mxu0 0.0
    %1598 = vmatprep.subr.mxu0 0.0
    %1599 = vmatpush1.xpose.msra.mxu0 0.0
    %1600 = vmatprep.subr.mxu0 0.0
    %1601 = vmatpush1.xpose.msra.mxu0 0.0
    %1602 = vmatprep.subr.mxu0 0.0
    %1603 = vmatpush1.xpose.msra.mxu0 0.0
    %1604 = vmatprep.subr.mxu0 0.0
    %1605 = vmatpush1.xpose.msra.mxu0 0.0
    %1606 = vmatprep.subr.mxu0 0.0
    %1607 = vmatpush1.xpose.msra.mxu0 0.0
    %1608 = vmatprep.mubr.f32.mxu0 0.0
    %1609 = vmatmul.mubr.f32.gmra.mrb[0].mxu0 %v1536
    %v1610 = vpop.f32.mrb[0].mxu0
    %v1611 = vadd.f32 %v120, %v1610
    %v1612 = vpop.f32.mrb[0].mxu0
    %1613 = vmatprep.mubr.f32.mxu0 0.0
    %1614 = vmatmul.mubr.f32.gmra.mrb[0].mxu0 %v1538
    %v1615 = vpop.f32.mrb[0].mxu0
    %v1616 = vadd.f32 %v121, %v1615
    %v1617 = vpop.f32.mrb[0].mxu0
    %1618 = vdwg.mxu0
    %v1619 = vsel %vm304, %v1611, -inf
    %1620 = vmax.xlane.f32.xlu0 %v1619
    %v1621 = vpop.xlane.xlu0 %1620
    %v1622 = vsel %vm304, %v1616, -inf
    %1623 = vmax.xlane.f32.xlu0 %v1622
    %v1624 = vpop.xlane.xlu0 %1623
    %v1625 = vsub.f32 %v1611, %v1621
    %v1626 = vsub.f32 %v1616, %v1624
    %v1627 = vmul.f32 %v1625, 1.442695
    %v1628 = vpow.pop %v1627
    %v1629 = vmul.f32 %v1626, 1.442695
    %v1630 = vpow.pop %v1629
    %v1631 = vsel %vm304, %v1628, 0.0
    %1632 = vadd.xlane.f32.xlu0 %v1631
    %v1633 = vpop.xlane.xlu0 %1632
    %v1634 = vsel %vm304, %v1630, 0.0
    %1635 = vadd.xlane.f32.xlu0 %v1634
    %v1636 = vpop.xlane.xlu0 %1635
    %v1637 = vrcp.pop %v1633
    %v1638 = vrcp.pop %v1636
    %v1639 = vmul.f32 %v1628, %v1637
    %v1640 = vmul.f32 %v1630, %v1638
    %1641 = vrot.lane.b32.xlu0 %v1522, 64
    %v1642 = vpop.permute.xlu0 %1641
    %1643 = vrot.lane.b32.xlu0 %v1527, 64
    %v1644 = vpop.permute.xlu0 %1643
    %v1648 = vsel %vm304, %v1639, 0
    %v1651 = vsel %vm304, %v1640, 0
    %1653 = vmatprep.subr.mxu0 0.0
    %1654 = vmatpush1.msra.mxu0 %v1642
    %1655 = vmatprep.subr.mxu0 0.0
    %1656 = vmatpush1.msra.mxu0 %v1644
    %1657 = vmatprep.subr.mxu0 0.0
    %1658 = vmatpush1.msra.mxu0 0.0
    %1659 = vmatprep.subr.mxu0 0.0
    %1660 = vmatpush1.msra.mxu0 0.0
    %1661 = vmatprep.subr.mxu0 0.0
    %1662 = vmatpush1.msra.mxu0 0.0
    %1663 = vmatprep.subr.mxu0 0.0
    %1664 = vmatpush1.msra.mxu0 0.0
    %1665 = vmatprep.subr.mxu0 0.0
    %1666 = vmatpush1.msra.mxu0 0.0
    %1667 = vmatprep.subr.mxu0 0.0
    %1668 = vmatpush1.msra.mxu0 0.0
    %1669 = vmatprep.subr.mxu0 0.0
    %1670 = vmatpush1.msra.mxu0 0.0
    %1671 = vmatprep.subr.mxu0 0.0
    %1672 = vmatpush1.msra.mxu0 0.0
    %1673 = vmatprep.subr.mxu0 0.0
    %1674 = vmatpush1.msra.mxu0 0.0
    %1675 = vmatprep.subr.mxu0 0.0
    %1676 = vmatpush1.msra.mxu0 0.0
    %1677 = vmatprep.subr.mxu0 0.0
    %1678 = vmatpush1.msra.mxu0 0.0
    %1679 = vmatprep.subr.mxu0 0.0
    %1680 = vmatpush1.msra.mxu0 0.0
    %1681 = vmatprep.subr.mxu0 0.0
    %1682 = vmatpush1.msra.mxu0 0.0
    %1683 = vmatprep.subr.mxu0 0.0
    %1684 = vmatpush1.msra.mxu0 0.0
    %1685 = vmatprep.subr.mxu0 0.0
    %1686 = vmatpush1.msra.mxu0 0.0
    %1687 = vmatprep.subr.mxu0 0.0
    %1688 = vmatpush1.msra.mxu0 0.0
    %1689 = vmatprep.subr.mxu0 0.0
    %1690 = vmatpush1.msra.mxu0 0.0
    %1691 = vmatprep.subr.mxu0 0.0
    %1692 = vmatpush1.msra.mxu0 0.0
    %1693 = vmatprep.subr.mxu0 0.0
    %1694 = vmatpush1.msra.mxu0 0.0
    %1695 = vmatprep.subr.mxu0 0.0
    %1696 = vmatpush1.msra.mxu0 0.0
    %1697 = vmatprep.subr.mxu0 0.0
    %1698 = vmatpush1.msra.mxu0 0.0
    %1699 = vmatprep.subr.mxu0 0.0
    %1700 = vmatpush1.msra.mxu0 0.0
    %1701 = vmatprep.subr.mxu0 0.0
    %1702 = vmatpush1.msra.mxu0 0.0
    %1703 = vmatprep.subr.mxu0 0.0
    %1704 = vmatpush1.msra.mxu0 0.0
    %1705 = vmatprep.subr.mxu0 0.0
    %1706 = vmatpush1.msra.mxu0 0.0
    %1707 = vmatprep.subr.mxu0 0.0
    %1708 = vmatpush1.msra.mxu0 0.0
    %1709 = vmatprep.subr.mxu0 0.0
    %1710 = vmatpush1.msra.mxu0 0.0
    %1711 = vmatprep.subr.mxu0 0.0
    %1712 = vmatpush1.msra.mxu0 0.0
    %1713 = vmatprep.subr.mxu0 0.0
    %1714 = vmatpush1.msra.mxu0 0.0
    %1715 = vmatprep.subr.mxu0 0.0
    %1716 = vmatpush1.msra.mxu0 0.0
    %1717 = vmatprep.mubr.f32.mxu0 0.0
    %1718 = vmatmul.mubr.f32.gmra.mrb[0].mxu0 %v1648
    %v1719 = vpop.f32.mrb[0].mxu0
    %v1720 = vadd.f32 0.0, %v1719
    %v1721 = vpop.f32.mrb[0].mxu0
    %1722 = vmatprep.mubr.f32.mxu0 0.0
    %1723 = vmatmul.mubr.f32.gmra.mrb[0].mxu0 %v1651
    %v1724 = vpop.f32.mrb[0].mxu0
    %v1725 = vadd.f32 0.0, %v1724
    %v1726 = vpop.f32.mrb[0].mxu0
    %1727 = vdwg.mxu0
    %1728 = vrot.lane.b32.xlu0 %v1522, 120
    %v1729 = vpop.permute.xlu0 %1728
    %1730 = vrot.lane.b32.xlu0 %v1527, 120
    %v1731 = vpop.permute.xlu0 %1730
    %1732 = vrot.lane.b32.xlu0 %v1522, 88
    %v1733 = vpop.permute.xlu0 %1732
    %1734 = vrot.lane.b32.xlu0 %v1527, 88
    %v1735 = vpop.permute.xlu0 %1734
    %v1736 = vsel %vm220, %v1729, 0
    %v1738 = vsel %vm220, %v1731, 0
    %v1740 = vsel %vm220, %v1733, 0
    %v1742 = vsel %vm220, %v1735, 0
    %1744 = vmatprep.subr.mxu0 0.0
    %1745 = vmatpush1.xpose.msra.mxu0 %v1740
    %1746 = vmatprep.subr.mxu0 0.0
    %1747 = vmatpush1.xpose.msra.mxu0 %v1742
    %1748 = vmatprep.subr.mxu0 0.0
    %1749 = vmatpush1.xpose.msra.mxu0 0.0
    %1750 = vmatprep.subr.mxu0 0.0
    %1751 = vmatpush1.xpose.msra.mxu0 0.0
    %1752 = vmatprep.subr.mxu0 0.0
    %1753 = vmatpush1.xpose.msra.mxu0 0.0
    %1754 = vmatprep.subr.mxu0 0.0
    %1755 = vmatpush1.xpose.msra.mxu0 0.0
    %1756 = vmatprep.subr.mxu0 0.0
    %1757 = vmatpush1.xpose.msra.mxu0 0.0
    %1758 = vmatprep.subr.mxu0 0.0
    %1759 = vmatpush1.xpose.msra.mxu0 0.0
    %1760 = vmatprep.subr.mxu0 0.0
    %1761 = vmatpush1.xpose.msra.mxu0 0.0
    %1762 = vmatprep.subr.mxu0 0.0
    %1763 = vmatpush1.xpose.msra.mxu0 0.0
    %1764 = vmatprep.subr.mxu0 0.0
    %1765 = vmatpush1.xpose.msra.mxu0 0.0
    %1766 = vmatprep.subr.mxu0 0.0
    %1767 = vmatpush1.xpose.msra.mxu0 0.0
    %1768 = vmatprep.subr.mxu0 0.0
    %1769 = vmatpush1.xpose.msra.mxu0 0.0
    %1770 = vmatprep.subr.mxu0 0.0
    %1771 = vmatpush1.xpose.msra.mxu0 0.0
    %1772 = vmatprep.subr.mxu0 0.0
    %1773 = vmatpush1.xpose.msra.mxu0 0.0
    %1774 = vmatprep.subr.mxu0 0.0
    %1775 = vmatpush1.xpose.msra.mxu0 0.0
    %1776 = vmatprep.subr.mxu0 0.0
    %1777 = vmatpush1.xpose.msra.mxu0 0.0
    %1778 = vmatprep.subr.mxu0 0.0
    %1779 = vmatpush1.xpose.msra.mxu0 0.0
    %1780 = vmatprep.subr.mxu0 0.0
    %1781 = vmatpush1.xpose.msra.mxu0 0.0
    %1782 = vmatprep.subr.mxu0 0.0
    %1783 = vmatpush1.xpose.msra.mxu0 0.0
    %1784 = vmatprep.subr.mxu0 0.0
    %1785 = vmatpush1.xpose.msra.mxu0 0.0
    %1786 = vmatprep.subr.mxu0 0.0
    %1787 = vmatpush1.xpose.msra.mxu0 0.0
    %1788 = vmatprep.subr.mxu0 0.0
    %1789 = vmatpush1.xpose.msra.mxu0 0.0
    %1790 = vmatprep.subr.mxu0 0.0
    %1791 = vmatpush1.xpose.msra.mxu0 0.0
    %1792 = vmatprep.subr.mxu0 0.0
    %1793 = vmatpush1.xpose.msra.mxu0 0.0
    %1794 = vmatprep.subr.mxu0 0.0
    %1795 = vmatpush1.xpose.msra.mxu0 0.0
    %1796 = vmatprep.subr.mxu0 0.0
    %1797 = vmatpush1.xpose.msra.mxu0 0.0
    %1798 = vmatprep.subr.mxu0 0.0
    %1799 = vmatpush1.xpose.msra.mxu0 0.0
    %1800 = vmatprep.subr.mxu0 0.0
    %1801 = vmatpush1.xpose.msra.mxu0 0.0
    %1802 = vmatprep.subr.mxu0 0.0
    %1803 = vmatpush1.xpose.msra.mxu0 0.0
    %1804 = vmatprep.subr.mxu0 0.0
    %1805 = vmatpush1.xpose.msra.mxu0 0.0
    %1806 = vmatprep.subr.mxu0 0.0
    %1807 = vmatpush1.xpose.msra.mxu0 0.0
    %1808 = vmatprep.mubr.f32.mxu0 0.0
    %1809 = vmatmul.mubr.f32.gmra.mrb[0].mxu0 %v1736
    %v1810 = vpop.f32.mrb[0].mxu0
    %v1811 = vadd.f32 %v120, %v1810
    %v1812 = vpop.f32.mrb[0].mxu0
    %1813 = vmatprep.mubr.f32.mxu0 0.0
    %1814 = vmatmul.mubr.f32.gmra.mrb[0].mxu0 %v1738
    %v1815 = vpop.f32.mrb[0].mxu0
    %v1816 = vadd.f32 %v121, %v1815
    %v1817 = vpop.f32.mrb[0].mxu0
    %1818 = vdwg.mxu0
    %v1819 = vsel %vm304, %v1811, -inf
    %1820 = vmax.xlane.f32.xlu0 %v1819
    %v1821 = vpop.xlane.xlu0 %1820
    %v1822 = vsel %vm304, %v1816, -inf
    %1823 = vmax.xlane.f32.xlu0 %v1822
    %v1824 = vpop.xlane.xlu0 %1823
    %v1825 = vsub.f32 %v1811, %v1821
    %v1826 = vsub.f32 %v1816, %v1824
    %v1827 = vmul.f32 %v1825, 1.442695
    %v1828 = vpow.pop %v1827
    %v1829 = vmul.f32 %v1826, 1.442695
    %v1830 = vpow.pop %v1829
    %v1831 = vsel %vm304, %v1828, 0.0
    %1832 = vadd.xlane.f32.xlu0 %v1831
    %v1833 = vpop.xlane.xlu0 %1832
    %v1834 = vsel %vm304, %v1830, 0.0
    %1835 = vadd.xlane.f32.xlu0 %v1834
    %v1836 = vpop.xlane.xlu0 %1835
    %v1837 = vrcp.pop %v1833
    %v1838 = vrcp.pop %v1836
    %v1839 = vmul.f32 %v1828, %v1837
    %v1840 = vmul.f32 %v1830, %v1838
    %1841 = vrot.lane.b32.xlu0 %v1522, 56
    %v1842 = vpop.permute.xlu0 %1841
    %1843 = vrot.lane.b32.xlu0 %v1527, 56
    %v1844 = vpop.permute.xlu0 %1843
    %v1848 = vsel %vm304, %v1839, 0
    %v1851 = vsel %vm304, %v1840, 0
    %1853 = vmatprep.subr.mxu0 0.0
    %1854 = vmatpush1.msra.mxu0 %v1842
    %1855 = vmatprep.subr.mxu0 0.0
    %1856 = vmatpush1.msra.mxu0 %v1844
    %1857 = vmatprep.subr.mxu0 0.0
    %1858 = vmatpush1.msra.mxu0 0.0
    %1859 = vmatprep.subr.mxu0 0.0
    %1860 = vmatpush1.msra.mxu0 0.0
    %1861 = vmatprep.subr.mxu0 0.0
    %1862 = vmatpush1.msra.mxu0 0.0
    %1863 = vmatprep.subr.mxu0 0.0
    %1864 = vmatpush1.msra.mxu0 0.0
    %1865 = vmatprep.subr.mxu0 0.0
    %1866 = vmatpush1.msra.mxu0 0.0
    %1867 = vmatprep.subr.mxu0 0.0
    %1868 = vmatpush1.msra.mxu0 0.0
    %1869 = vmatprep.subr.mxu0 0.0
    %1870 = vmatpush1.msra.mxu0 0.0
    %1871 = vmatprep.subr.mxu0 0.0
    %1872 = vmatpush1.msra.mxu0 0.0
    %1873 = vmatprep.subr.mxu0 0.0
    %1874 = vmatpush1.msra.mxu0 0.0
    %1875 = vmatprep.subr.mxu0 0.0
    %1876 = vmatpush1.msra.mxu0 0.0
    %1877 = vmatprep.subr.mxu0 0.0
    %1878 = vmatpush1.msra.mxu0 0.0
    %1879 = vmatprep.subr.mxu0 0.0
    %1880 = vmatpush1.msra.mxu0 0.0
    %1881 = vmatprep.subr.mxu0 0.0
    %1882 = vmatpush1.msra.mxu0 0.0
    %1883 = vmatprep.subr.mxu0 0.0
    %1884 = vmatpush1.msra.mxu0 0.0
    %1885 = vmatprep.subr.mxu0 0.0
    %1886 = vmatpush1.msra.mxu0 0.0
    %1887 = vmatprep.subr.mxu0 0.0
    %1888 = vmatpush1.msra.mxu0 0.0
    %1889 = vmatprep.subr.mxu0 0.0
    %1890 = vmatpush1.msra.mxu0 0.0
    %1891 = vmatprep.subr.mxu0 0.0
    %1892 = vmatpush1.msra.mxu0 0.0
    %1893 = vmatprep.subr.mxu0 0.0
    %1894 = vmatpush1.msra.mxu0 0.0
    %1895 = vmatprep.subr.mxu0 0.0
    %1896 = vmatpush1.msra.mxu0 0.0
    %1897 = vmatprep.subr.mxu0 0.0
    %1898 = vmatpush1.msra.mxu0 0.0
    %1899 = vmatprep.subr.mxu0 0.0
    %1900 = vmatpush1.msra.mxu0 0.0
    %1901 = vmatprep.subr.mxu0 0.0
    %1902 = vmatpush1.msra.mxu0 0.0
    %1903 = vmatprep.subr.mxu0 0.0
    %1904 = vmatpush1.msra.mxu0 0.0
    %1905 = vmatprep.subr.mxu0 0.0
    %1906 = vmatpush1.msra.mxu0 0.0
    %1907 = vmatprep.subr.mxu0 0.0
    %1908 = vmatpush1.msra.mxu0 0.0
    %1909 = vmatprep.subr.mxu0 0.0
    %1910 = vmatpush1.msra.mxu0 0.0
    %1911 = vmatprep.subr.mxu0 0.0
    %1912 = vmatpush1.msra.mxu0 0.0
    %1913 = vmatprep.subr.mxu0 0.0
    %1914 = vmatpush1.msra.mxu0 0.0
    %1915 = vmatprep.subr.mxu0 0.0
    %1916 = vmatpush1.msra.mxu0 0.0
    %1917 = vmatprep.mubr.f32.mxu0 0.0
    %1918 = vmatmul.mubr.f32.gmra.mrb[0].mxu0 %v1848
    %v1919 = vpop.f32.mrb[0].mxu0
    %v1920 = vadd.f32 0.0, %v1919
    %v1921 = vpop.f32.mrb[0].mxu0
    %1922 = vmatprep.mubr.f32.mxu0 0.0
    %1923 = vmatmul.mubr.f32.gmra.mrb[0].mxu0 %v1851
    %v1924 = vpop.f32.mrb[0].mxu0
    %v1925 = vadd.f32 0.0, %v1924
    %v1926 = vpop.f32.mrb[0].mxu0
    %1927 = vdwg.mxu0
    %1928 = vrot.lane.b32.xlu0 %v1522, 112
    %v1929 = vpop.permute.xlu0 %1928
    %1930 = vrot.lane.b32.xlu0 %v1527, 112
    %v1931 = vpop.permute.xlu0 %1930
    %1932 = vrot.lane.b32.xlu0 %v1522, 80
    %v1933 = vpop.permute.xlu0 %1932
    %1934 = vrot.lane.b32.xlu0 %v1527, 80
    %v1935 = vpop.permute.xlu0 %1934
    %v1936 = vsel %vm220, %v1929, 0
    %v1938 = vsel %vm220, %v1931, 0
    %v1940 = vsel %vm220, %v1933, 0
    %v1942 = vsel %vm220, %v1935, 0
    %1944 = vmatprep.subr.mxu0 0.0
    %1945 = vmatpush1.xpose.msra.mxu0 %v1940
    %1946 = vmatprep.subr.mxu0 0.0
    %1947 = vmatpush1.xpose.msra.mxu0 %v1942
    %1948 = vmatprep.subr.mxu0 0.0
    %1949 = vmatpush1.xpose.msra.mxu0 0.0
    %1950 = vmatprep.subr.mxu0 0.0
    %1951 = vmatpush1.xpose.msra.mxu0 0.0
    %1952 = vmatprep.subr.mxu0 0.0
    %1953 = vmatpush1.xpose.msra.mxu0 0.0
    %1954 = vmatprep.subr.mxu0 0.0
    %1955 = vmatpush1.xpose.msra.mxu0 0.0
    %1956 = vmatprep.subr.mxu0 0.0
    %1957 = vmatpush1.xpose.msra.mxu0 0.0
    %1958 = vmatprep.subr.mxu0 0.0
    %1959 = vmatpush1.xpose.msra.mxu0 0.0
    %1960 = vmatprep.subr.mxu0 0.0
    %1961 = vmatpush1.xpose.msra.mxu0 0.0
    %1962 = vmatprep.subr.mxu0 0.0
    %1963 = vmatpush1.xpose.msra.mxu0 0.0
    %1964 = vmatprep.subr.mxu0 0.0
    %1965 = vmatpush1.xpose.msra.mxu0 0.0
    %1966 = vmatprep.subr.mxu0 0.0
    %1967 = vmatpush1.xpose.msra.mxu0 0.0
    %1968 = vmatprep.subr.mxu0 0.0
    %1969 = vmatpush1.xpose.msra.mxu0 0.0
    %1970 = vmatprep.subr.mxu0 0.0
    %1971 = vmatpush1.xpose.msra.mxu0 0.0
    %1972 = vmatprep.subr.mxu0 0.0
    %1973 = vmatpush1.xpose.msra.mxu0 0.0
    %1974 = vmatprep.subr.mxu0 0.0
    %1975 = vmatpush1.xpose.msra.mxu0 0.0
    %1976 = vmatprep.subr.mxu0 0.0
    %1977 = vmatpush1.xpose.msra.mxu0 0.0
    %1978 = vmatprep.subr.mxu0 0.0
    %1979 = vmatpush1.xpose.msra.mxu0 0.0
    %1980 = vmatprep.subr.mxu0 0.0
    %1981 = vmatpush1.xpose.msra.mxu0 0.0
    %1982 = vmatprep.subr.mxu0 0.0
    %1983 = vmatpush1.xpose.msra.mxu0 0.0
    %1984 = vmatprep.subr.mxu0 0.0
    %1985 = vmatpush1.xpose.msra.mxu0 0.0
    %1986 = vmatprep.subr.mxu0 0.0
    %1987 = vmatpush1.xpose.msra.mxu0 0.0
    %1988 = vmatprep.subr.mxu0 0.0
    %1989 = vmatpush1.xpose.msra.mxu0 0.0
    %1990 = vmatprep.subr.mxu0 0.0
    %1991 = vmatpush1.xpose.msra.mxu0 0.0
    %1992 = vmatprep.subr.mxu0 0.0
    %1993 = vmatpush1.xpose.msra.mxu0 0.0
    %1994 = vmatprep.subr.mxu0 0.0
    %1995 = vmatpush1.xpose.msra.mxu0 0.0
    %1996 = vmatprep.subr.mxu0 0.0
    %1997 = vmatpush1.xpose.msra.mxu0 0.0
    %1998 = vmatprep.subr.mxu0 0.0
    %1999 = vmatpush1.xpose.msra.mxu0 0.0
    %2000 = vmatprep.subr.mxu0 0.0
    %2001 = vmatpush1.xpose.msra.mxu0 0.0
    %2002 = vmatprep.subr.mxu0 0.0
    %2003 = vmatpush1.xpose.msra.mxu0 0.0
    %2004 = vmatprep.subr.mxu0 0.0
    %2005 = vmatpush1.xpose.msra.mxu0 0.0
    %2006 = vmatprep.subr.mxu0 0.0
    %2007 = vmatpush1.xpose.msra.mxu0 0.0
    %2008 = vmatprep.mubr.f32.mxu0 0.0
    %2009 = vmatmul.mubr.f32.gmra.mrb[0].mxu0 %v1936
    %v2010 = vpop.f32.mrb[0].mxu0
    %v2011 = vadd.f32 %v120, %v2010
    %v2012 = vpop.f32.mrb[0].mxu0
    %2013 = vmatprep.mubr.f32.mxu0 0.0
    %2014 = vmatmul.mubr.f32.gmra.mrb[0].mxu0 %v1938
    %v2015 = vpop.f32.mrb[0].mxu0
    %v2016 = vadd.f32 %v121, %v2015
    %v2017 = vpop.f32.mrb[0].mxu0
    %2018 = vdwg.mxu0
    %v2019 = vsel %vm304, %v2011, -inf
    %2020 = vmax.xlane.f32.xlu0 %v2019
    %v2021 = vpop.xlane.xlu0 %2020
    %v2022 = vsel %vm304, %v2016, -inf
    %2023 = vmax.xlane.f32.xlu0 %v2022
    %v2024 = vpop.xlane.xlu0 %2023
    %v2025 = vsub.f32 %v2011, %v2021
    %v2026 = vsub.f32 %v2016, %v2024
    %v2027 = vmul.f32 %v2025, 1.442695
    %v2028 = vpow.pop %v2027
    %v2029 = vmul.f32 %v2026, 1.442695
    %v2030 = vpow.pop %v2029
    %v2031 = vsel %vm304, %v2028, 0.0
    %2032 = vadd.xlane.f32.xlu0 %v2031
    %v2033 = vpop.xlane.xlu0 %2032
    %v2034 = vsel %vm304, %v2030, 0.0
    %2035 = vadd.xlane.f32.xlu0 %v2034
    %v2036 = vpop.xlane.xlu0 %2035
    %v2037 = vrcp.pop %v2033
    %v2038 = vrcp.pop %v2036
    %v2039 = vmul.f32 %v2028, %v2037
    %v2040 = vmul.f32 %v2030, %v2038
    %2041 = vrot.lane.b32.xlu0 %v1522, 48
    %v2042 = vpop.permute.xlu0 %2041
    %2043 = vrot.lane.b32.xlu0 %v1527, 48
    %v2044 = vpop.permute.xlu0 %2043
    %v2048 = vsel %vm304, %v2039, 0
    %v2051 = vsel %vm304, %v2040, 0
    %2053 = vmatprep.subr.mxu0 0.0
    %2054 = vmatpush1.msra.mxu0 %v2042
    %2055 = vmatprep.subr.mxu0 0.0
    %2056 = vmatpush1.msra.mxu0 %v2044
    %2057 = vmatprep.subr.mxu0 0.0
    %2058 = vmatpush1.msra.mxu0 0.0
    %2059 = vmatprep.subr.mxu0 0.0
    %2060 = vmatpush1.msra.mxu0 0.0
    %2061 = vmatprep.subr.mxu0 0.0
    %2062 = vmatpush1.msra.mxu0 0.0
    %2063 = vmatprep.subr.mxu0 0.0
    %2064 = vmatpush1.msra.mxu0 0.0
    %2065 = vmatprep.subr.mxu0 0.0
    %2066 = vmatpush1.msra.mxu0 0.0
    %2067 = vmatprep.subr.mxu0 0.0
    %2068 = vmatpush1.msra.mxu0 0.0
    %2069 = vmatprep.subr.mxu0 0.0
    %2070 = vmatpush1.msra.mxu0 0.0
    %2071 = vmatprep.subr.mxu0 0.0
    %2072 = vmatpush1.msra.mxu0 0.0
    %2073 = vmatprep.subr.mxu0 0.0
    %2074 = vmatpush1.msra.mxu0 0.0
    %2075 = vmatprep.subr.mxu0 0.0
    %2076 = vmatpush1.msra.mxu0 0.0
    %2077 = vmatprep.subr.mxu0 0.0
    %2078 = vmatpush1.msra.mxu0 0.0
    %2079 = vmatprep.subr.mxu0 0.0
    %2080 = vmatpush1.msra.mxu0 0.0
    %2081 = vmatprep.subr.mxu0 0.0
    %2082 = vmatpush1.msra.mxu0 0.0
    %2083 = vmatprep.subr.mxu0 0.0
    %2084 = vmatpush1.msra.mxu0 0.0
    %2085 = vmatprep.subr.mxu0 0.0
    %2086 = vmatpush1.msra.mxu0 0.0
    %2087 = vmatprep.subr.mxu0 0.0
    %2088 = vmatpush1.msra.mxu0 0.0
    %2089 = vmatprep.subr.mxu0 0.0
    %2090 = vmatpush1.msra.mxu0 0.0
    %2091 = vmatprep.subr.mxu0 0.0
    %2092 = vmatpush1.msra.mxu0 0.0
    %2093 = vmatprep.subr.mxu0 0.0
    %2094 = vmatpush1.msra.mxu0 0.0
    %2095 = vmatprep.subr.mxu0 0.0
    %2096 = vmatpush1.msra.mxu0 0.0
    %2097 = vmatprep.subr.mxu0 0.0
    %2098 = vmatpush1.msra.mxu0 0.0
    %2099 = vmatprep.subr.mxu0 0.0
    %2100 = vmatpush1.msra.mxu0 0.0
    %2101 = vmatprep.subr.mxu0 0.0
    %2102 = vmatpush1.msra.mxu0 0.0
    %2103 = vmatprep.subr.mxu0 0.0
    %2104 = vmatpush1.msra.mxu0 0.0
    %2105 = vmatprep.subr.mxu0 0.0
    %2106 = vmatpush1.msra.mxu0 0.0
    %2107 = vmatprep.subr.mxu0 0.0
    %2108 = vmatpush1.msra.mxu0 0.0
    %2109 = vmatprep.subr.mxu0 0.0
    %2110 = vmatpush1.msra.mxu0 0.0
    %2111 = vmatprep.subr.mxu0 0.0
    %2112 = vmatpush1.msra.mxu0 0.0
    %2113 = vmatprep.subr.mxu0 0.0
    %2114 = vmatpush1.msra.mxu0 0.0
    %2115 = vmatprep.subr.mxu0 0.0
    %2116 = vmatpush1.msra.mxu0 0.0
    %2117 = vmatprep.mubr.f32.mxu0 0.0
    %2118 = vmatmul.mubr.f32.gmra.mrb[0].mxu0 %v2048
    %v2119 = vpop.f32.mrb[0].mxu0
    %v2120 = vadd.f32 0.0, %v2119
    %v2121 = vpop.f32.mrb[0].mxu0
    %2122 = vmatprep.mubr.f32.mxu0 0.0
    %2123 = vmatmul.mubr.f32.gmra.mrb[0].mxu0 %v2051
    %v2124 = vpop.f32.mrb[0].mxu0
    %v2125 = vadd.f32 0.0, %v2124
    %v2126 = vpop.f32.mrb[0].mxu0
    %2127 = vdwg.mxu0
    %2128 = vrot.lane.b32.xlu0 %v1522, 104
    %v2129 = vpop.permute.xlu0 %2128
    %2130 = vrot.lane.b32.xlu0 %v1527, 104
    %v2131 = vpop.permute.xlu0 %2130
    %2132 = vrot.lane.b32.xlu0 %v1522, 72
    %v2133 = vpop.permute.xlu0 %2132
    %2134 = vrot.lane.b32.xlu0 %v1527, 72
    %v2135 = vpop.permute.xlu0 %2134
    %v2136 = vsel %vm220, %v2129, 0
    %v2138 = vsel %vm220, %v2131, 0
    %v2140 = vsel %vm220, %v2133, 0
    %v2142 = vsel %vm220, %v2135, 0
    %2144 = vmatprep.subr.mxu0 0.0
    %2145 = vmatpush1.xpose.msra.mxu0 %v2140
    %2146 = vmatprep.subr.mxu0 0.0
    %2147 = vmatpush1.xpose.msra.mxu0 %v2142
    %2148 = vmatprep.subr.mxu0 0.0
    %2149 = vmatpush1.xpose.msra.mxu0 0.0
    %2150 = vmatprep.subr.mxu0 0.0
    %2151 = vmatpush1.xpose.msra.mxu0 0.0
    %2152 = vmatprep.subr.mxu0 0.0
    %2153 = vmatpush1.xpose.msra.mxu0 0.0
    %2154 = vmatprep.subr.mxu0 0.0
    %2155 = vmatpush1.xpose.msra.mxu0 0.0
    %2156 = vmatprep.subr.mxu0 0.0
    %2157 = vmatpush1.xpose.msra.mxu0 0.0
    %2158 = vmatprep.subr.mxu0 0.0
    %2159 = vmatpush1.xpose.msra.mxu0 0.0
    %2160 = vmatprep.subr.mxu0 0.0
    %2161 = vmatpush1.xpose.msra.mxu0 0.0
    %2162 = vmatprep.subr.mxu0 0.0
    %2163 = vmatpush1.xpose.msra.mxu0 0.0
    %2164 = vmatprep.subr.mxu0 0.0
    %2165 = vmatpush1.xpose.msra.mxu0 0.0
    %2166 = vmatprep.subr.mxu0 0.0
    %2167 = vmatpush1.xpose.msra.mxu0 0.0
    %2168 = vmatprep.subr.mxu0 0.0
    %2169 = vmatpush1.xpose.msra.mxu0 0.0
    %2170 = vmatprep.subr.mxu0 0.0
    %2171 = vmatpush1.xpose.msra.mxu0 0.0
    %2172 = vmatprep.subr.mxu0 0.0
    %2173 = vmatpush1.xpose.msra.mxu0 0.0
    %2174 = vmatprep.subr.mxu0 0.0
    %2175 = vmatpush1.xpose.msra.mxu0 0.0
    %2176 = vmatprep.subr.mxu0 0.0
    %2177 = vmatpush1.xpose.msra.mxu0 0.0
    %2178 = vmatprep.subr.mxu0 0.0
    %2179 = vmatpush1.xpose.msra.mxu0 0.0
    %2180 = vmatprep.subr.mxu0 0.0
    %2181 = vmatpush1.xpose.msra.mxu0 0.0
    %2182 = vmatprep.subr.mxu0 0.0
    %2183 = vmatpush1.xpose.msra.mxu0 0.0
    %2184 = vmatprep.subr.mxu0 0.0
    %2185 = vmatpush1.xpose.msra.mxu0 0.0
    %2186 = vmatprep.subr.mxu0 0.0
    %2187 = vmatpush1.xpose.msra.mxu0 0.0
    %2188 = vmatprep.subr.mxu0 0.0
    %2189 = vmatpush1.xpose.msra.mxu0 0.0
    %2190 = vmatprep.subr.mxu0 0.0
    %2191 = vmatpush1.xpose.msra.mxu0 0.0
    %2192 = vmatprep.subr.mxu0 0.0
    %2193 = vmatpush1.xpose.msra.mxu0 0.0
    %2194 = vmatprep.subr.mxu0 0.0
    %2195 = vmatpush1.xpose.msra.mxu0 0.0
    %2196 = vmatprep.subr.mxu0 0.0
    %2197 = vmatpush1.xpose.msra.mxu0 0.0
    %2198 = vmatprep.subr.mxu0 0.0
    %2199 = vmatpush1.xpose.msra.mxu0 0.0
    %2200 = vmatprep.subr.mxu0 0.0
    %2201 = vmatpush1.xpose.msra.mxu0 0.0
    %2202 = vmatprep.subr.mxu0 0.0
    %2203 = vmatpush1.xpose.msra.mxu0 0.0
    %2204 = vmatprep.subr.mxu0 0.0
    %2205 = vmatpush1.xpose.msra.mxu0 0.0
    %2206 = vmatprep.subr.mxu0 0.0
    %2207 = vmatpush1.xpose.msra.mxu0 0.0
    %2208 = vmatprep.mubr.f32.mxu0 0.0
    %2209 = vmatmul.mubr.f32.gmra.mrb[0].mxu0 %v2136
    %v2210 = vpop.f32.mrb[0].mxu0
    %v2211 = vadd.f32 %v120, %v2210
    %v2212 = vpop.f32.mrb[0].mxu0
    %2213 = vmatprep.mubr.f32.mxu0 0.0
    %2214 = vmatmul.mubr.f32.gmra.mrb[0].mxu0 %v2138
    %v2215 = vpop.f32.mrb[0].mxu0
    %v2216 = vadd.f32 %v121, %v2215
    %v2217 = vpop.f32.mrb[0].mxu0
    %2218 = vdwg.mxu0
    %v2219 = vsel %vm304, %v2211, -inf
    %2220 = vmax.xlane.f32.xlu0 %v2219
    %v2221 = vpop.xlane.xlu0 %2220
    %v2222 = vsel %vm304, %v2216, -inf
    %2223 = vmax.xlane.f32.xlu0 %v2222
    %v2224 = vpop.xlane.xlu0 %2223
    %v2225 = vsub.f32 %v2211, %v2221
    %v2226 = vsub.f32 %v2216, %v2224
    %v2227 = vmul.f32 %v2225, 1.442695
    %v2228 = vpow.pop %v2227
    %v2229 = vmul.f32 %v2226, 1.442695
    %v2230 = vpow.pop %v2229
    %v2231 = vsel %vm304, %v2228, 0.0
    %2232 = vadd.xlane.f32.xlu0 %v2231
    %v2233 = vpop.xlane.xlu0 %2232
    %v2234 = vsel %vm304, %v2230, 0.0
    %2235 = vadd.xlane.f32.xlu0 %v2234
    %v2236 = vpop.xlane.xlu0 %2235
    %v2237 = vrcp.pop %v2233
    %v2238 = vrcp.pop %v2236
    %v2239 = vmul.f32 %v2228, %v2237
    %v2240 = vmul.f32 %v2230, %v2238
    %2241 = vrot.lane.b32.xlu0 %v1522, 40
    %v2242 = vpop.permute.xlu0 %2241
    %2243 = vrot.lane.b32.xlu0 %v1527, 40
    %v2244 = vpop.permute.xlu0 %2243
    %v2248 = vsel %vm304, %v2239, 0
    %v2251 = vsel %vm304, %v2240, 0
    %2253 = vmatprep.subr.mxu0 0.0
    %2254 = vmatpush1.msra.mxu0 %v2242
    %2255 = vmatprep.subr.mxu0 0.0
    %2256 = vmatpush1.msra.mxu0 %v2244
    %2257 = vmatprep.subr.mxu0 0.0
    %2258 = vmatpush1.msra.mxu0 0.0
    %2259 = vmatprep.subr.mxu0 0.0
    %2260 = vmatpush1.msra.mxu0 0.0
    %2261 = vmatprep.subr.mxu0 0.0
    %2262 = vmatpush1.msra.mxu0 0.0
    %2263 = vmatprep.subr.mxu0 0.0
    %2264 = vmatpush1.msra.mxu0 0.0
    %2265 = vmatprep.subr.mxu0 0.0
    %2266 = vmatpush1.msra.mxu0 0.0
    %2267 = vmatprep.subr.mxu0 0.0
    %2268 = vmatpush1.msra.mxu0 0.0
    %2269 = vmatprep.subr.mxu0 0.0
    %2270 = vmatpush1.msra.mxu0 0.0
    %2271 = vmatprep.subr.mxu0 0.0
    %2272 = vmatpush1.msra.mxu0 0.0
    %2273 = vmatprep.subr.mxu0 0.0
    %2274 = vmatpush1.msra.mxu0 0.0
    %2275 = vmatprep.subr.mxu0 0.0
    %2276 = vmatpush1.msra.mxu0 0.0
    %2277 = vmatprep.subr.mxu0 0.0
    %2278 = vmatpush1.msra.mxu0 0.0
    %2279 = vmatprep.subr.mxu0 0.0
    %2280 = vmatpush1.msra.mxu0 0.0
    %2281 = vmatprep.subr.mxu0 0.0
    %2282 = vmatpush1.msra.mxu0 0.0
    %2283 = vmatprep.subr.mxu0 0.0
    %2284 = vmatpush1.msra.mxu0 0.0
    %2285 = vmatprep.subr.mxu0 0.0
    %2286 = vmatpush1.msra.mxu0 0.0
    %2287 = vmatprep.subr.mxu0 0.0
    %2288 = vmatpush1.msra.mxu0 0.0
    %2289 = vmatprep.subr.mxu0 0.0
    %2290 = vmatpush1.msra.mxu0 0.0
    %2291 = vmatprep.subr.mxu0 0.0
    %2292 = vmatpush1.msra.mxu0 0.0
    %2293 = vmatprep.subr.mxu0 0.0
    %2294 = vmatpush1.msra.mxu0 0.0
    %2295 = vmatprep.subr.mxu0 0.0
    %2296 = vmatpush1.msra.mxu0 0.0
    %2297 = vmatprep.subr.mxu0 0.0
    %2298 = vmatpush1.msra.mxu0 0.0
    %2299 = vmatprep.subr.mxu0 0.0
    %2300 = vmatpush1.msra.mxu0 0.0
    %2301 = vmatprep.subr.mxu0 0.0
    %2302 = vmatpush1.msra.mxu0 0.0
    %2303 = vmatprep.subr.mxu0 0.0
    %2304 = vmatpush1.msra.mxu0 0.0
    %2305 = vmatprep.subr.mxu0 0.0
    %2306 = vmatpush1.msra.mxu0 0.0
    %2307 = vmatprep.subr.mxu0 0.0
    %2308 = vmatpush1.msra.mxu0 0.0
    %2309 = vmatprep.subr.mxu0 0.0
    %2310 = vmatpush1.msra.mxu0 0.0
    %2311 = vmatprep.subr.mxu0 0.0
    %2312 = vmatpush1.msra.mxu0 0.0
    %2313 = vmatprep.subr.mxu0 0.0
    %2314 = vmatpush1.msra.mxu0 0.0
    %2315 = vmatprep.subr.mxu0 0.0
    %2316 = vmatpush1.msra.mxu0 0.0
    %2317 = vmatprep.mubr.f32.mxu0 0.0
    %2318 = vmatmul.mubr.f32.gmra.mrb[0].mxu0 %v2248
    %v2319 = vpop.f32.mrb[0].mxu0
    %v2320 = vadd.f32 0.0, %v2319
    %v2321 = vpop.f32.mrb[0].mxu0
    %2322 = vmatprep.mubr.f32.mxu0 0.0
    %2323 = vmatmul.mubr.f32.gmra.mrb[0].mxu0 %v2251
    %v2324 = vpop.f32.mrb[0].mxu0
    %v2325 = vadd.f32 0.0, %v2324
    %v2326 = vpop.f32.mrb[0].mxu0
    %2327 = vdwg.mxu0
    %2330 = vrot.lane.b32.xlu0 %v1920, 8
    %v2331 = vpop.permute.xlu0 %2330
    %2332 = vrot.lane.b32.xlu0 %v1925, 8
    %v2333 = vpop.permute.xlu0 %2332
    %2338 = vrot.lane.b32.xlu0 %v2120, 16
    %v2339 = vpop.permute.xlu0 %2338
    %2340 = vrot.lane.b32.xlu0 %v2125, 16
    %v2341 = vpop.permute.xlu0 %2340
    %2346 = vrot.lane.b32.xlu0 %v2320, 24
    %v2347 = vpop.permute.xlu0 %2346
    %2348 = vrot.lane.b32.xlu0 %v2325, 24
    %v2349 = vpop.permute.xlu0 %2348
    %v2352 = vsel %vm220, %v1720, %v2331
    %v2353 = vsel %vm220, %v1725, %v2333
    %v2354 = vsel %vm304, %v2352, %v2339
    %v2355 = vsel %vm304, %v2353, %v2341
    %v2356 = vsel %vm1042, %v2354, %v2347
    %v2357 = vsel %vm1042, %v2355, %v2349
    %s2358 = scalar_lea.vmem %s6, 32
    %v2359 = vld [vmem:[%s2358] sm:$0xff]
    %v2360 = vld [vmem:[%s2358 + $0x8] sm:$0xff]
    %v2361 = vld [vmem:[%s2358 + $0x10] sm:$0xff]
    %v2362 = vld [vmem:[%s2358 + $0x18] sm:$0xff]
    %s2363 = scalar_lea.vmem %s7, 1
    %v2364 = vld [vmem:[%s2363] sm:$0x1]
    %v2366 = vlaneseq
    %v2367 = vshrl.u32 %v2366, 7
    %v2368 = vsub.s32 0, %v2367
    %v2369 = vrot.slane %v2364, %v2368
    %v2372 = vsel %vm76, %v2356, 0
    %v2375 = vsel %vm76, %v2357, 0
    %2377 = vmatprep.subr.mxu0 0.0
    %2378 = vmatpush1.msra.mxu0 %v2359
    %2379 = vmatprep.subr.mxu0 0.0
    %2380 = vmatpush1.msra.mxu0 %v2360
    %2381 = vmatprep.subr.mxu0 0.0
    %2382 = vmatpush1.msra.mxu0 %v2361
    %2383 = vmatprep.subr.mxu0 0.0
    %2384 = vmatpush1.msra.mxu0 %v2362
    %2385 = vmatprep.subr.mxu0 0.0
    %2386 = vmatpush1.msra.mxu0 0.0
    %2387 = vmatprep.subr.mxu0 0.0
    %2388 = vmatpush1.msra.mxu0 0.0
    %2389 = vmatprep.subr.mxu0 0.0
    %2390 = vmatpush1.msra.mxu0 0.0
    %2391 = vmatprep.subr.mxu0 0.0
    %2392 = vmatpush1.msra.mxu0 0.0
    %2393 = vmatprep.subr.mxu0 0.0
    %2394 = vmatpush1.msra.mxu0 0.0
    %2395 = vmatprep.subr.mxu0 0.0
    %2396 = vmatpush1.msra.mxu0 0.0
    %2397 = vmatprep.subr.mxu0 0.0
    %2398 = vmatpush1.msra.mxu0 0.0
    %2399 = vmatprep.subr.mxu0 0.0
    %2400 = vmatpush1.msra.mxu0 0.0
    %2401 = vmatprep.subr.mxu0 0.0
    %2402 = vmatpush1.msra.mxu0 0.0
    %2403 = vmatprep.subr.mxu0 0.0
    %2404 = vmatpush1.msra.mxu0 0.0
    %2405 = vmatprep.subr.mxu0 0.0
    %2406 = vmatpush1.msra.mxu0 0.0
    %2407 = vmatprep.subr.mxu0 0.0
    %2408 = vmatpush1.msra.mxu0 0.0
    %2409 = vmatprep.subr.mxu0 0.0
    %2410 = vmatpush1.msra.mxu0 0.0
    %2411 = vmatprep.subr.mxu0 0.0
    %2412 = vmatpush1.msra.mxu0 0.0
    %2413 = vmatprep.subr.mxu0 0.0
    %2414 = vmatpush1.msra.mxu0 0.0
    %2415 = vmatprep.subr.mxu0 0.0
    %2416 = vmatpush1.msra.mxu0 0.0
    %2417 = vmatprep.subr.mxu0 0.0
    %2418 = vmatpush1.msra.mxu0 0.0
    %2419 = vmatprep.subr.mxu0 0.0
    %2420 = vmatpush1.msra.mxu0 0.0
    %2421 = vmatprep.subr.mxu0 0.0
    %2422 = vmatpush1.msra.mxu0 0.0
    %2423 = vmatprep.subr.mxu0 0.0
    %2424 = vmatpush1.msra.mxu0 0.0
    %2425 = vmatprep.subr.mxu0 0.0
    %2426 = vmatpush1.msra.mxu0 0.0
    %2427 = vmatprep.subr.mxu0 0.0
    %2428 = vmatpush1.msra.mxu0 0.0
    %2429 = vmatprep.subr.mxu0 0.0
    %2430 = vmatpush1.msra.mxu0 0.0
    %2431 = vmatprep.subr.mxu0 0.0
    %2432 = vmatpush1.msra.mxu0 0.0
    %2433 = vmatprep.subr.mxu0 0.0
    %2434 = vmatpush1.msra.mxu0 0.0
    %2435 = vmatprep.subr.mxu0 0.0
    %2436 = vmatpush1.msra.mxu0 0.0
    %2437 = vmatprep.subr.mxu0 0.0
    %2438 = vmatpush1.msra.mxu0 0.0
    %2439 = vmatprep.subr.mxu0 0.0
    %2440 = vmatpush1.msra.mxu0 0.0
    %2441 = vmatprep.mubr.f32.mxu0 0.0
    %2442 = vmatmul.mubr.f32.gmra.mrb[0].mxu0 %v2372
    %v2443 = vpop.f32.mrb[0].mxu0
    %v2444 = vadd.f32 %v2369, %v2443
    %v2445 = vpop.f32.mrb[0].mxu0
    %2446 = vmatprep.mubr.f32.mxu0 0.0
    %2447 = vmatmul.mubr.f32.gmra.mrb[0].mxu0 %v2375
    %v2448 = vpop.f32.mrb[0].mxu0
    %v2449 = vadd.f32 %v2369, %v2448
    %v2450 = vpop.f32.mrb[0].mxu0
    %2451 = vdwg.mxu0
    %v2452 = vadd.f32 %v1434, %v2444
    %v2453 = vadd.f32 %v1435, %v2449
    %s2454 = scalar_lea.vmem %s8, 1
    %v2455 = vld [vmem:[%s2454] sm:$0x1]
    %s2456 = scalar_lea.vmem %s9, 1
    %v2457 = vld [vmem:[%s2456] sm:$0x1]
    %v2458 = vsel %vm76, %v2452, 0.0
    %2459 = vadd.xlane.f32.xlu0 %v2458
    %v2460 = vpop.xlane.xlu0 %2459
    %v2461 = vsel %vm76, %v2453, 0.0
    %2462 = vadd.xlane.f32.xlu0 %v2461
    %v2463 = vpop.xlane.xlu0 %2462
    %v2464 = vmul.f32 %v2460, %v83
    %v2465 = vmul.f32 %v2463, %v83
    %v2466 = vsub.f32 %v2452, %v2464
    %v2467 = vsub.f32 %v2453, %v2465
    %v2468 = vmul.f32 %v2466, %v2466
    %v2469 = vmul.f32 %v2467, %v2467
    %v2470 = vsel %vm76, %v2468, 0.0
    %2471 = vadd.xlane.f32.xlu0 %v2470
    %v2472 = vpop.xlane.xlu0 %2471
    %v2473 = vsel %vm76, %v2469, 0.0
    %2474 = vadd.xlane.f32.xlu0 %v2473
    %v2475 = vpop.xlane.xlu0 %2474
    %v2476 = vmul.f32 %v2472, %v83
    %v2477 = vmul.f32 %v2475, %v83
    %v2478 = vadd.f32 %v2476, 1e-12
    %v2479 = vadd.f32 %v2477, 1e-12
    %v2480 = vrsqrt.pop %v2478
    %v2481 = vrsqrt.pop %v2479
    %v2482 = vmul.f32 %v2466, %v2480
    %v2483 = vmul.f32 %v2467, %v2481
    %v2485 = vlaneseq
    %v2486 = vshrl.u32 %v2485, 7
    %v2487 = vsub.s32 0, %v2486
    %v2488 = vrot.slane %v2455, %v2487
    %v2490 = vmul.f32 %v2482, %v2488
    %v2491 = vmul.f32 %v2483, %v2488
    %v2493 = vlaneseq
    %v2494 = vshrl.u32 %v2493, 7
    %v2495 = vsub.s32 0, %v2494
    %v2496 = vrot.slane %v2457, %v2495
    %v2498 = vadd.f32 %v2490, %v2496
    %v2499 = vadd.f32 %v2491, %v2496
    %s2500 = scalar_lea.vmem %s10, 32
    %v2501 = vld [vmem:[%s2500] sm:$0xff]
    %v2502 = vld [vmem:[%s2500 + $0x8] sm:$0xff]
    %v2503 = vld [vmem:[%s2500 + $0x10] sm:$0xff]
    %v2504 = vld [vmem:[%s2500 + $0x18] sm:$0xff]
    %s2505 = scalar_lea.vmem %s11, 1
    %v2506 = vld [vmem:[%s2505] sm:$0x1]
    %v2508 = vlaneseq
    %v2509 = vshrl.u32 %v2508, 7
    %v2510 = vsub.s32 0, %v2509
    %v2511 = vrot.slane %v2506, %v2510
    %v2514 = vsel %vm76, %v2498, 0
    %v2517 = vsel %vm76, %v2499, 0
    %2519 = vmatprep.subr.mxu0 0.0
    %2520 = vmatpush1.msra.mxu0 %v2501
    %2521 = vmatprep.subr.mxu0 0.0
    %2522 = vmatpush1.msra.mxu0 %v2502
    %2523 = vmatprep.subr.mxu0 0.0
    %2524 = vmatpush1.msra.mxu0 %v2503
    %2525 = vmatprep.subr.mxu0 0.0
    %2526 = vmatpush1.msra.mxu0 %v2504
    %2527 = vmatprep.subr.mxu0 0.0
    %2528 = vmatpush1.msra.mxu0 0.0
    %2529 = vmatprep.subr.mxu0 0.0
    %2530 = vmatpush1.msra.mxu0 0.0
    %2531 = vmatprep.subr.mxu0 0.0
    %2532 = vmatpush1.msra.mxu0 0.0
    %2533 = vmatprep.subr.mxu0 0.0
    %2534 = vmatpush1.msra.mxu0 0.0
    %2535 = vmatprep.subr.mxu0 0.0
    %2536 = vmatpush1.msra.mxu0 0.0
    %2537 = vmatprep.subr.mxu0 0.0
    %2538 = vmatpush1.msra.mxu0 0.0
    %2539 = vmatprep.subr.mxu0 0.0
    %2540 = vmatpush1.msra.mxu0 0.0
    %2541 = vmatprep.subr.mxu0 0.0
    %2542 = vmatpush1.msra.mxu0 0.0
    %2543 = vmatprep.subr.mxu0 0.0
    %2544 = vmatpush1.msra.mxu0 0.0
    %2545 = vmatprep.subr.mxu0 0.0
    %2546 = vmatpush1.msra.mxu0 0.0
    %2547 = vmatprep.subr.mxu0 0.0
    %2548 = vmatpush1.msra.mxu0 0.0
    %2549 = vmatprep.subr.mxu0 0.0
    %2550 = vmatpush1.msra.mxu0 0.0
    %2551 = vmatprep.subr.mxu0 0.0
    %2552 = vmatpush1.msra.mxu0 0.0
    %2553 = vmatprep.subr.mxu0 0.0
    %2554 = vmatpush1.msra.mxu0 0.0
    %2555 = vmatprep.subr.mxu0 0.0
    %2556 = vmatpush1.msra.mxu0 0.0
    %2557 = vmatprep.subr.mxu0 0.0
    %2558 = vmatpush1.msra.mxu0 0.0
    %2559 = vmatprep.subr.mxu0 0.0
    %2560 = vmatpush1.msra.mxu0 0.0
    %2561 = vmatprep.subr.mxu0 0.0
    %2562 = vmatpush1.msra.mxu0 0.0
    %2563 = vmatprep.subr.mxu0 0.0
    %2564 = vmatpush1.msra.mxu0 0.0
    %2565 = vmatprep.subr.mxu0 0.0
    %2566 = vmatpush1.msra.mxu0 0.0
    %2567 = vmatprep.subr.mxu0 0.0
    %2568 = vmatpush1.msra.mxu0 0.0
    %2569 = vmatprep.subr.mxu0 0.0
    %2570 = vmatpush1.msra.mxu0 0.0
    %2571 = vmatprep.subr.mxu0 0.0
    %2572 = vmatpush1.msra.mxu0 0.0
    %2573 = vmatprep.subr.mxu0 0.0
    %2574 = vmatpush1.msra.mxu0 0.0
    %2575 = vmatprep.subr.mxu0 0.0
    %2576 = vmatpush1.msra.mxu0 0.0
    %2577 = vmatprep.subr.mxu0 0.0
    %2578 = vmatpush1.msra.mxu0 0.0
    %2579 = vmatprep.subr.mxu0 0.0
    %2580 = vmatpush1.msra.mxu0 0.0
    %2581 = vmatprep.subr.mxu0 0.0
    %2582 = vmatpush1.msra.mxu0 0.0
    %2583 = vmatprep.mubr.f32.mxu0 0.0
    %2584 = vmatmul.mubr.f32.gmra.mrb[0].mxu0 %v2514
    %v2585 = vpop.f32.mrb[0].mxu0
    %v2586 = vadd.f32 %v2511, %v2585
    %v2587 = vpop.f32.mrb[0].mxu0
    %2588 = vmatprep.mubr.f32.mxu0 0.0
    %2589 = vmatmul.mubr.f32.gmra.mrb[0].mxu0 %v2517
    %v2590 = vpop.f32.mrb[0].mxu0
    %v2591 = vadd.f32 %v2511, %v2590
    %v2592 = vpop.f32.mrb[0].mxu0
    %2593 = vdwg.mxu0
    %v2594 = vmul.f32 %v2586, %v2586
    %v2595 = vmul.f32 %v2591, %v2591
    %v2596 = vmul.f32 %v2586, %v2594
    %v2597 = vmul.f32 %v2591, %v2595
    %v2598 = vmul.f32 %v2596, 0.044715
    %v2599 = vmul.f32 %v2597, 0.044715
    %v2600 = vadd.f32 %v2586, %v2598
    %v2601 = vadd.f32 %v2591, %v2599
    %v2602 = vmul.f32 %v2600, 0.7978846
    %v2603 = vmul.f32 %v2601, 0.7978846
    %v2604 = vtanh.pop %v2602
    %v2605 = vtanh.pop %v2603
    %v2606 = vadd.f32 %v2604, 1.0
    %v2607 = vadd.f32 %v2605, 1.0
    %v2608 = vmul.f32 %v2606, 0.5
    %v2609 = vmul.f32 %v2607, 0.5
    %v2610 = vmul.f32 %v2586, %v2608
    %v2611 = vmul.f32 %v2591, %v2609
    %s2612 = scalar_lea.vmem %s12, 64
    %v2613 = vld [vmem:[%s2612] sm:$0xff]
    %v2614 = vld [vmem:[%s2612 + $0x8] sm:$0xff]
    %v2615 = vld [vmem:[%s2612 + $0x10] sm:$0xff]
    %v2616 = vld [vmem:[%s2612 + $0x18] sm:$0xff]
    %v2617 = vld [vmem:[%s2612 + $0x20] sm:$0xff]
    %v2618 = vld [vmem:[%s2612 + $0x28] sm:$0xff]
    %v2619 = vld [vmem:[%s2612 + $0x30] sm:$0xff]
    %v2620 = vld [vmem:[%s2612 + $0x38] sm:$0xff]
    %s2621 = scalar_lea.vmem %s13, 1
    %v2622 = vld [vmem:[%s2621] sm:$0x1]
    %v2624 = vlaneseq
    %v2625 = vshrl.u32 %v2624, 7
    %v2626 = vsub.s32 0, %v2625
    %v2627 = vrot.slane %v2622, %v2626
    %v2630 = vsel %vm1308, %v2610, 0
    %v2633 = vsel %vm1308, %v2611, 0
    %2635 = vmatprep.subr.mxu0 0.0
    %2636 = vmatpush1.msra.mxu0 %v2613
    %2637 = vmatprep.subr.mxu0 0.0
    %2638 = vmatpush1.msra.mxu0 %v2614
    %2639 = vmatprep.subr.mxu0 0.0
    %2640 = vmatpush1.msra.mxu0 %v2615
    %2641 = vmatprep.subr.mxu0 0.0
    %2642 = vmatpush1.msra.mxu0 %v2616
    %2643 = vmatprep.subr.mxu0 0.0
    %2644 = vmatpush1.msra.mxu0 %v2617
    %2645 = vmatprep.subr.mxu0 0.0
    %2646 = vmatpush1.msra.mxu0 %v2618
    %2647 = vmatprep.subr.mxu0 0.0
    %2648 = vmatpush1.msra.mxu0 %v2619
    %2649 = vmatprep.subr.mxu0 0.0
    %2650 = vmatpush1.msra.mxu0 %v2620
    %2651 = vmatprep.subr.mxu0 0.0
    %2652 = vmatpush1.msra.mxu0 0.0
    %2653 = vmatprep.subr.mxu0 0.0
    %2654 = vmatpush1.msra.mxu0 0.0
    %2655 = vmatprep.subr.mxu0 0.0
    %2656 = vmatpush1.msra.mxu0 0.0
    %2657 = vmatprep.subr.mxu0 0.0
    %2658 = vmatpush1.msra.mxu0 0.0
    %2659 = vmatprep.subr.mxu0 0.0
    %2660 = vmatpush1.msra.mxu0 0.0
    %2661 = vmatprep.subr.mxu0 0.0
    %2662 = vmatpush1.msra.mxu0 0.0
    %2663 = vmatprep.subr.mxu0 0.0
    %2664 = vmatpush1.msra.mxu0 0.0
    %2665 = vmatprep.subr.mxu0 0.0
    %2666 = vmatpush1.msra.mxu0 0.0
    %2667 = vmatprep.subr.mxu0 0.0
    %2668 = vmatpush1.msra.mxu0 0.0
    %2669 = vmatprep.subr.mxu0 0.0
    %2670 = vmatpush1.msra.mxu0 0.0
    %2671 = vmatprep.subr.mxu0 0.0
    %2672 = vmatpush1.msra.mxu0 0.0
    %2673 = vmatprep.subr.mxu0 0.0
    %2674 = vmatpush1.msra.mxu0 0.0
    %2675 = vmatprep.subr.mxu0 0.0
    %2676 = vmatpush1.msra.mxu0 0.0
    %2677 = vmatprep.subr.mxu0 0.0
    %2678 = vmatpush1.msra.mxu0 0.0
    %2679 = vmatprep.subr.mxu0 0.0
    %2680 = vmatpush1.msra.mxu0 0.0
    %2681 = vmatprep.subr.mxu0 0.0
    %2682 = vmatpush1.msra.mxu0 0.0
    %2683 = vmatprep.subr.mxu0 0.0
    %2684 = vmatpush1.msra.mxu0 0.0
    %2685 = vmatprep.subr.mxu0 0.0
    %2686 = vmatpush1.msra.mxu0 0.0
    %2687 = vmatprep.subr.mxu0 0.0
    %2688 = vmatpush1.msra.mxu0 0.0
    %2689 = vmatprep.subr.mxu0 0.0
    %2690 = vmatpush1.msra.mxu0 0.0
    %2691 = vmatprep.subr.mxu0 0.0
    %2692 = vmatpush1.msra.mxu0 0.0
    %2693 = vmatprep.subr.mxu0 0.0
    %2694 = vmatpush1.msra.mxu0 0.0
    %2695 = vmatprep.subr.mxu0 0.0
    %2696 = vmatpush1.msra.mxu0 0.0
    %2697 = vmatprep.subr.mxu0 0.0
    %2698 = vmatpush1.msra.mxu0 0.0
    %2699 = vmatprep.mubr.f32.mxu0 0.0
    %2700 = vmatmul.mubr.f32.gmra.mrb[0].mxu0 %v2630
    %v2701 = vpop.f32.mrb[0].mxu0
    %v2702 = vadd.f32 %v2627, %v2701
    %v2703 = vpop.f32.mrb[0].mxu0
    %2704 = vmatprep.mubr.f32.mxu0 0.0
    %2705 = vmatmul.mubr.f32.gmra.mrb[0].mxu0 %v2633
    %v2706 = vpop.f32.mrb[0].mxu0
    %v2707 = vadd.f32 %v2627, %v2706
    %v2708 = vpop.f32.mrb[0].mxu0
    %2709 = vdwg.mxu0
    %v2710 = vadd.f32 %v2498, %v2702
    %v2711 = vadd.f32 %v2499, %v2707
    %s2712 = scalar_lea.vmem %s14, 1
    %v2713 = vld [vmem:[%s2712] sm:$0x1]
    %s2714 = scalar_lea.vmem %s15, 1
    %v2715 = vld [vmem:[%s2714] sm:$0x1]
    %v2716 = vsel %vm76, %v2710, 0.0
    %2717 = vadd.xlane.f32.xlu0 %v2716
    %v2718 = vpop.xlane.xlu0 %2717
    %v2719 = vsel %vm76, %v2711, 0.0
    %2720 = vadd.xlane.f32.xlu0 %v2719
    %v2721 = vpop.xlane.xlu0 %2720
    %v2722 = vmul.f32 %v2718, %v83
    %v2723 = vmul.f32 %v2721, %v83
    %v2724 = vsub.f32 %v2710, %v2722
    %v2725 = vsub.f32 %v2711, %v2723
    %v2726 = vmul.f32 %v2724, %v2724
    %v2727 = vmul.f32 %v2725, %v2725
    %v2728 = vsel %vm76, %v2726, 0.0
    %2729 = vadd.xlane.f32.xlu0 %v2728
    %v2730 = vpop.xlane.xlu0 %2729
    %v2731 = vsel %vm76, %v2727, 0.0
    %2732 = vadd.xlane.f32.xlu0 %v2731
    %v2733 = vpop.xlane.xlu0 %2732
    %v2734 = vmul.f32 %v2730, %v83
    %v2735 = vmul.f32 %v2733, %v83
    %v2736 = vadd.f32 %v2734, 1e-12
    %v2737 = vadd.f32 %v2735, 1e-12
    %v2738 = vrsqrt.pop %v2736
    %v2739 = vrsqrt.pop %v2737
    %v2740 = vmul.f32 %v2724, %v2738
    %v2741 = vmul.f32 %v2725, %v2739
    %v2743 = vlaneseq
    %v2744 = vshrl.u32 %v2743, 7
    %v2745 = vsub.s32 0, %v2744
    %v2746 = vrot.slane %v2713, %v2745
    %v2748 = vmul.f32 %v2740, %v2746
    %v2749 = vmul.f32 %v2741, %v2746
    %v2751 = vlaneseq
    %v2752 = vshrl.u32 %v2751, 7
    %v2753 = vsub.s32 0, %v2752
    %v2754 = vrot.slane %v2715, %v2753
    %v2756 = vadd.f32 %v2748, %v2754
    %v2757 = vadd.f32 %v2749, %v2754
    %v2759 = vrot.slane %v2757, 7
    %vm2761 = vcmask 1040384
    %v2762 = vsel %vm2761, %v2756, %v2759
    %v2763 = vld [vmem:[%s16] sm:$0xff]
    %v2764 = vld [vmem:[%s16 + $0x8] sm:$0xff]
    %v2765 = vld [vmem:[%s16 + $0x10] sm:$0xff]
    %v2766 = vld [vmem:[%s16 + $0x18] sm:$0xff]
    %v2767 = vld [vmem:[%s17] sm:$0x1]
    %v2769 = vlaneseq
    %v2770 = vshrl.u32 %v2769, 7
    %v2771 = vsub.s32 0, %v2770
    %v2772 = vrot.slane %v2767, %v2771
    %v2775 = vsel %vm76, %v2762, 0
    %2777 = vmatprep.subr.mxu0 0.0
    %2778 = vmatpush1.msra.mxu0 %v2763
    %2779 = vmatprep.subr.mxu0 0.0
    %2780 = vmatpush1.msra.mxu0 %v2764
    %2781 = vmatprep.subr.mxu0 0.0
    %2782 = vmatpush1.msra.mxu0 %v2765
    %2783 = vmatprep.subr.mxu0 0.0
    %2784 = vmatpush1.msra.mxu0 %v2766
    %2785 = vmatprep.subr.mxu0 0.0
    %2786 = vmatpush1.msra.mxu0 0.0
    %2787 = vmatprep.subr.mxu0 0.0
    %2788 = vmatpush1.msra.mxu0 0.0
    %2789 = vmatprep.subr.mxu0 0.0
    %2790 = vmatpush1.msra.mxu0 0.0
    %2791 = vmatprep.subr.mxu0 0.0
    %2792 = vmatpush1.msra.mxu0 0.0
    %2793 = vmatprep.subr.mxu0 0.0
    %2794 = vmatpush1.msra.mxu0 0.0
    %2795 = vmatprep.subr.mxu0 0.0
    %2796 = vmatpush1.msra.mxu0 0.0
    %2797 = vmatprep.subr.mxu0 0.0
    %2798 = vmatpush1.msra.mxu0 0.0
    %2799 = vmatprep.subr.mxu0 0.0
    %2800 = vmatpush1.msra.mxu0 0.0
    %2801 = vmatprep.subr.mxu0 0.0
    %2802 = vmatpush1.msra.mxu0 0.0
    %2803 = vmatprep.subr.mxu0 0.0
    %2804 = vmatpush1.msra.mxu0 0.0
    %2805 = vmatprep.subr.mxu0 0.0
    %2806 = vmatpush1.msra.mxu0 0.0
    %2807 = vmatprep.subr.mxu0 0.0
    %2808 = vmatpush1.msra.mxu0 0.0
    %2809 = vmatprep.subr.mxu0 0.0
    %2810 = vmatpush1.msra.mxu0 0.0
    %2811 = vmatprep.subr.mxu0 0.0
    %2812 = vmatpush1.msra.mxu0 0.0
    %2813 = vmatprep.subr.mxu0 0.0
    %2814 = vmatpush1.msra.mxu0 0.0
    %2815 = vmatprep.subr.mxu0 0.0
    %2816 = vmatpush1.msra.mxu0 0.0
    %2817 = vmatprep.subr.mxu0 0.0
    %2818 = vmatpush1.msra.mxu0 0.0
    %2819 = vmatprep.subr.mxu0 0.0
    %2820 = vmatpush1.msra.mxu0 0.0
    %2821 = vmatprep.subr.mxu0 0.0
    %2822 = vmatpush1.msra.mxu0 0.0
    %2823 = vmatprep.subr.mxu0 0.0
    %2824 = vmatpush1.msra.mxu0 0.0
    %2825 = vmatprep.subr.mxu0 0.0
    %2826 = vmatpush1.msra.mxu0 0.0
    %2827 = vmatprep.subr.mxu0 0.0
    %2828 = vmatpush1.msra.mxu0 0.0
    %2829 = vmatprep.subr.mxu0 0.0
    %2830 = vmatpush1.msra.mxu0 0.0
    %2831 = vmatprep.subr.mxu0 0.0
    %2832 = vmatpush1.msra.mxu0 0.0
    %2833 = vmatprep.subr.mxu0 0.0
    %2834 = vmatpush1.msra.mxu0 0.0
    %2835 = vmatprep.subr.mxu0 0.0
    %2836 = vmatpush1.msra.mxu0 0.0
    %2837 = vmatprep.subr.mxu0 0.0
    %2838 = vmatpush1.msra.mxu0 0.0
    %2839 = vmatprep.subr.mxu0 0.0
    %2840 = vmatpush1.msra.mxu0 0.0
    %2841 = vmatprep.mubr.f32.mxu0 0.0
    %2842 = vmatmul.mubr.f32.gmra.mrb[0].mxu0 %v2775
    %v2843 = vpop.f32.mrb[0].mxu0
    %v2844 = vadd.f32 %v2772, %v2843
    %v2845 = vpop.f32.mrb[0].mxu0
    %2846 = vdwg.mxu0
    %v2847 = vmax.f32 %v2844, 0.0
    %v2848 = vld [vmem:[%s18] sm:$0xff]
    %v2849 = vld [vmem:[%s18 + $0x8] sm:$0xff]
    %v2850 = vld [vmem:[%s19] sm:$0x1]
    %v2852 = vlaneseq
    %v2853 = vshrl.u32 %v2852, 7
    %v2854 = vsub.s32 0, %v2853
    %v2855 = vrot.slane %v2850, %v2854
    %v2858 = vsel %vm304, %v2847, 0
    %2860 = vmatprep.subr.mxu0 0.0
    %2861 = vmatpush1.msra.mxu0 %v2848
    %2862 = vmatprep.subr.mxu0 0.0
    %2863 = vmatpush1.msra.mxu0 %v2849
    %2864 = vmatprep.subr.mxu0 0.0
    %2865 = vmatpush1.msra.mxu0 0.0
    %2866 = vmatprep.subr.mxu0 0.0
    %2867 = vmatpush1.msra.mxu0 0.0
    %2868 = vmatprep.subr.mxu0 0.0
    %2869 = vmatpush1.msra.mxu0 0.0
    %2870 = vmatprep.subr.mxu0 0.0
    %2871 = vmatpush1.msra.mxu0 0.0
    %2872 = vmatprep.subr.mxu0 0.0
    %2873 = vmatpush1.msra.mxu0 0.0
    %2874 = vmatprep.subr.mxu0 0.0
    %2875 = vmatpush1.msra.mxu0 0.0
    %2876 = vmatprep.subr.mxu0 0.0
    %2877 = vmatpush1.msra.mxu0 0.0
    %2878 = vmatprep.subr.mxu0 0.0
    %2879 = vmatpush1.msra.mxu0 0.0
    %2880 = vmatprep.subr.mxu0 0.0
    %2881 = vmatpush1.msra.mxu0 0.0
    %2882 = vmatprep.subr.mxu0 0.0
    %2883 = vmatpush1.msra.mxu0 0.0
    %2884 = vmatprep.subr.mxu0 0.0
    %2885 = vmatpush1.msra.mxu0 0.0
    %2886 = vmatprep.subr.mxu0 0.0
    %2887 = vmatpush1.msra.mxu0 0.0
    %2888 = vmatprep.subr.mxu0 0.0
    %2889 = vmatpush1.msra.mxu0 0.0
    %2890 = vmatprep.subr.mxu0 0.0
    %2891 = vmatpush1.msra.mxu0 0.0
    %2892 = vmatprep.subr.mxu0 0.0
    %2893 = vmatpush1.msra.mxu0 0.0
    %2894 = vmatprep.subr.mxu0 0.0
    %2895 = vmatpush1.msra.mxu0 0.0
    %2896 = vmatprep.subr.mxu0 0.0
    %2897 = vmatpush1.msra.mxu0 0.0
    %2898 = vmatprep.subr.mxu0 0.0
    %2899 = vmatpush1.msra.mxu0 0.0
    %2900 = vmatprep.subr.mxu0 0.0
    %2901 = vmatpush1.msra.mxu0 0.0
    %2902 = vmatprep.subr.mxu0 0.0
    %2903 = vmatpush1.msra.mxu0 0.0
    %2904 = vmatprep.subr.mxu0 0.0
    %2905 = vmatpush1.msra.mxu0 0.0
    %2906 = vmatprep.subr.mxu0 0.0
    %2907 = vmatpush1.msra.mxu0 0.0
    %2908 = vmatprep.subr.mxu0 0.0
    %2909 = vmatpush1.msra.mxu0 0.0
    %2910 = vmatprep.subr.mxu0 0.0
    %2911 = vmatpush1.msra.mxu0 0.0
    %2912 = vmatprep.subr.mxu0 0.0
    %2913 = vmatpush1.msra.mxu0 0.0
    %2914 = vmatprep.subr.mxu0 0.0
    %2915 = vmatpush1.msra.mxu0 0.0
    %2916 = vmatprep.subr.mxu0 0.0
    %2917 = vmatpush1.msra.mxu0 0.0
    %2918 = vmatprep.subr.mxu0 0.0
    %2919 = vmatpush1.msra.mxu0 0.0
    %2920 = vmatprep.subr.mxu0 0.0
    %2921 = vmatpush1.msra.mxu0 0.0
    %2922 = vmatprep.subr.mxu0 0.0
    %2923 = vmatpush1.msra.mxu0 0.0
    %2924 = vmatprep.mubr.f32.mxu0 0.0
    %2925 = vmatmul.mubr.f32.gmra.mrb[0].mxu0 %v2858
    %v2926 = vpop.f32.mrb[0].mxu0
    %v2927 = vadd.f32 %v2855, %v2926
    %v2928 = vpop.f32.mrb[0].mxu0
    %2929 = vdwg.mxu0
    %v2930 = vmax.f32 %v2927, 0.0
    %v2931 = vld [vmem:[%s20] sm:$0xff]
    %v2932 = vld [vmem:[%s21] sm:$0x1]
    %v2934 = vlaneseq
    %v2935 = vshrl.u32 %v2934, 7
    %v2936 = vsub.s32 0, %v2935
    %v2937 = vrot.slane %v2932, %v2936
    %v2940 = vsel %vm220, %v2930, 0
    %2942 = vmatprep.subr.mxu0 0.0
    %2943 = vmatpush1.msra.mxu0 %v2931
    %2944 = vmatprep.subr.mxu0 0.0
    %2945 = vmatpush1.msra.mxu0 0.0
    %2946 = vmatprep.subr.mxu0 0.0
    %2947 = vmatpush1.msra.mxu0 0.0
    %2948 = vmatprep.subr.mxu0 0.0
    %2949 = vmatpush1.msra.mxu0 0.0
    %2950 = vmatprep.subr.mxu0 0.0
    %2951 = vmatpush1.msra.mxu0 0.0
    %2952 = vmatprep.subr.mxu0 0.0
    %2953 = vmatpush1.msra.mxu0 0.0
    %2954 = vmatprep.subr.mxu0 0.0
    %2955 = vmatpush1.msra.mxu0 0.0
    %2956 = vmatprep.subr.mxu0 0.0
    %2957 = vmatpush1.msra.mxu0 0.0
    %2958 = vmatprep.subr.mxu0 0.0
    %2959 = vmatpush1.msra.mxu0 0.0
    %2960 = vmatprep.subr.mxu0 0.0
    %2961 = vmatpush1.msra.mxu0 0.0
    %2962 = vmatprep.subr.mxu0 0.0
    %2963 = vmatpush1.msra.mxu0 0.0
    %2964 = vmatprep.subr.mxu0 0.0
    %2965 = vmatpush1.msra.mxu0 0.0
    %2966 = vmatprep.subr.mxu0 0.0
    %2967 = vmatpush1.msra.mxu0 0.0
    %2968 = vmatprep.subr.mxu0 0.0
    %2969 = vmatpush1.msra.mxu0 0.0
    %2970 = vmatprep.subr.mxu0 0.0
    %2971 = vmatpush1.msra.mxu0 0.0
    %2972 = vmatprep.subr.mxu0 0.0
    %2973 = vmatpush1.msra.mxu0 0.0
    %2974 = vmatprep.subr.mxu0 0.0
    %2975 = vmatpush1.msra.mxu0 0.0
    %2976 = vmatprep.subr.mxu0 0.0
    %2977 = vmatpush1.msra.mxu0 0.0
    %2978 = vmatprep.subr.mxu0 0.0
    %2979 = vmatpush1.msra.mxu0 0.0
    %2980 = vmatprep.subr.mxu0 0.0
    %2981 = vmatpush1.msra.mxu0 0.0
    %2982 = vmatprep.subr.mxu0 0.0
    %2983 = vmatpush1.msra.mxu0 0.0
    %2984 = vmatprep.subr.mxu0 0.0
    %2985 = vmatpush1.msra.mxu0 0.0
    %2986 = vmatprep.subr.mxu0 0.0
    %2987 = vmatpush1.msra.mxu0 0.0
    %2988 = vmatprep.subr.mxu0 0.0
    %2989 = vmatpush1.msra.mxu0 0.0
    %2990 = vmatprep.subr.mxu0 0.0
    %2991 = vmatpush1.msra.mxu0 0.0
    %2992 = vmatprep.subr.mxu0 0.0
    %2993 = vmatpush1.msra.mxu0 0.0
    %2994 = vmatprep.subr.mxu0 0.0
    %2995 = vmatpush1.msra.mxu0 0.0
    %2996 = vmatprep.subr.mxu0 0.0
    %2997 = vmatpush1.msra.mxu0 0.0
    %2998 = vmatprep.subr.mxu0 0.0
    %2999 = vmatpush1.msra.mxu0 0.0
    %3000 = vmatprep.subr.mxu0 0.0
    %3001 = vmatpush1.msra.mxu0 0.0
    %3002 = vmatprep.subr.mxu0 0.0
    %3003 = vmatpush1.msra.mxu0 0.0
    %3004 = vmatprep.subr.mxu0 0.0
    %3005 = vmatpush1.msra.mxu0 0.0
    %3006 = vmatprep.mubr.f32.mxu0 0.0
    %3007 = vmatmul.mubr.f32.gmra.mrb[0].mxu0 %v2940
    %v3008 = vpop.f32.mrb[0].mxu0
    %v3009 = vadd.f32 %v2937, %v3008
    %v3010 = vpop.f32.mrb[0].mxu0
    %3011 = vdwg.mxu0
    %vm3012 = vcmask 17408
    %3013 = vst.msk [vmem:[#allocation2] sm:$0x3] %vm3012, %v3009
    // Predicated region
    $region90: #{sentiment_forward.1} parent=1 // pred_check
      _
    $region91: #{sentiment_forward.1} parent=1 // pred_check_branch
      %3015 = sbr.rel (0) target = $region93
    $region92: #{sentiment_forward.1} parent=1 // pred_region
      %s3017 = ssub.s32 32, 32
      %3018 = vsyncadd [#allocation3], %s3017
      %s3020 = sshll.u32 [#allocation2], 4
      %s3021 = int_to_ptr.vmem [resolvable:$true] %s3020
      %3023 = dma.vmem_to_hbm [thread:$0]  %s3021, 32, %s22, [#allocation3]
    $region93: #{sentiment_forward.1} parent=1 // pred_fallthru
      _
    // Predicated region
    $region94: #{sentiment_forward.1} parent=1 // pred_check
      _
    $region95: #{sentiment_forward.1} parent=1 // pred_check_branch
      %3025 = sbr.rel (0) target = $region97
    $region96: #{sentiment_forward.1} parent=1 // pred_region
      %3026 = dma.done [#allocation3], 32
    $region97: #{sentiment_forward.1} parent=1 // pred_fallthru
      _
    %3027 = vsyncpa [#allocation3], 1

</llo_original>
